<compile_context>
chip_gen: v7x
topology: tpu7x:2x2x1
jax: 0.10.0
libtpu: 0.0.40
codegen_flags: <defaults>
</compile_context>

<pallas_src>
import math
import numpy as np
import jax
import jax.numpy as jnp
from jax.experimental import pallas as pl
from jax.experimental.pallas import tpu as pltpu

# ---------------- small, module-consistent config ----------------
DIM        = 64                       # args.dim
N_HEADS    = 4                        # args.n_heads
N_KV_HEADS = 2                        # args.n_kv_heads
HEAD_DIM   = DIM // N_HEADS           # 16
HALF       = HEAD_DIM // 2            # 8
N_REP      = N_HEADS // N_KV_HEADS    # 2
HIDDEN_DIM = DIM * 4                  # ModelConfig default hidden_dim = dim * 4
EPS        = 1e-5
BATCH      = 2
SEQ        = 8
NTOK       = BATCH * SEQ              # 16 tokens total (batch folded in)
NQ         = N_HEADS * HEAD_DIM       # 64 (== DIM)
QK         = 2 * NQ                   # 128 — lane width of the fused [Q|K] RoPE slab

assert NQ == DIM                      # required for the wqkv|wo slab packing below


# ---------------- Pallas kernel ----------------
def decoder_layer_kernel(x_ref, consts_ref, w_attn_ref, w13_ref, w2_ref, out_ref):
    x = x_ref[...]                                   # (T, D) f32, T = B*S

    cosf = consts_ref[0]                             # (T, 128) cos, per-head [c|c] layout
    sneg = consts_ref[1]                             # (T, 128) [-sin | 0]
    spos = consts_ref[2]                             # (T, 128) [ 0   | sin]
    mask = consts_ref[3][:, :NTOK]                   # (T, T) additive causal + batch-block mask
    wn_attn = consts_ref[4][0:1, :DIM]               # (1, D) attention_norm weight
    wn_ffn  = consts_ref[4][1:2, :DIM]               # (1, D) ffn_norm weight

    def rmsnorm(v, w):                               # f32 vector math
        ms = jnp.mean(v * v, axis=-1, keepdims=True)
        return v * jax.lax.rsqrt(ms + EPS) * w

    # ---------------- attention ----------------
    xn = rmsnorm(x, wn_attn).astype(jnp.bfloat16)    # (T, D)

    # fused token-major QKV projection: (T, 3*NQ); bf16 operands, f32 accumulate
    qkv = jnp.dot(xn, w_attn_ref[:, :3 * NQ], preferred_element_type=jnp.float32)

    # RoPE on the fused (T, 128) [Q|K] slab. Per-head column layout is [reals | imags]
    # (the even/odd de-interleave and the 1/sqrt(hd) scale on Q are folded into the weights).
    qk = qkv[:, :QK]
    qk = (qk * cosf
          + pltpu.roll(qk, shift=QK - HALF, axis=1) * sneg     # pulls i_f onto the real slots
          + pltpu.roll(qk, shift=HALF,      axis=1) * spos)    # pulls r_f onto the imag slots

    q = qk[:, :NQ].reshape(NTOK, N_HEADS, HEAD_DIM).astype(jnp.bfloat16)   # (T, H, hd)
    k = qk[:, NQ:].reshape(NTOK, N_HEADS, HEAD_DIM).astype(jnp.bfloat16)   # kv heads pre-repeated
    v = qkv[:, QK:].reshape(NTOK, N_HEADS, HEAD_DIM).astype(jnp.bfloat16)

    # scores (1/sqrt(hd) already folded into wq offline)
    s = jnp.einsum('ihd,jhd->hij', q, k, preferred_element_type=jnp.float32)   # (H, T, T)
    s = s + mask                                                                # broadcast over H

    m = jnp.max(s, axis=-1, keepdims=True)
    e = jnp.exp(s - m)                                                          # f32 EUP
    p = (e * pl.reciprocal(jnp.sum(e, axis=-1, keepdims=True), approx=True)).astype(jnp.bfloat16)

    o = jnp.einsum('hij,jhd->ihd', p, v, preferred_element_type=jnp.float32)    # (T, H, hd)

    # single fused output projection: (T, H*hd) @ (H*hd, D) with K = 64
    attn = jnp.dot(o.reshape(NTOK, NQ).astype(jnp.bfloat16), w_attn_ref[:, 3 * NQ:],
                   preferred_element_type=jnp.float32)                           # (T, D)
    h1 = x + attn                                                                # residual

    # ---------------- SwiGLU MLP ----------------
    hn = rmsnorm(h1, wn_ffn).astype(jnp.bfloat16)
    h13 = jnp.dot(hn, w13_ref[...], preferred_element_type=jnp.float32)          # (T, 2*hidden)
    act = (jax.nn.silu(h13[:, :HIDDEN_DIM]) * h13[:, HIDDEN_DIM:]).astype(jnp.bfloat16)
    mlp = jnp.dot(act, w2_ref[...], preferred_element_type=jnp.float32)          # (T, D)

    out_ref[...] = h1 + mlp


def decoder_layer_pallas(x, kp):
    B, S, D = x.shape
    vmem = pl.BlockSpec(memory_space=pltpu.MemorySpace.VMEM)
    out = pl.pallas_call(
        decoder_layer_kernel,
        out_shape=jax.ShapeDtypeStruct((B * S, D), jnp.float32),
        in_specs=[vmem, vmem, vmem, vmem, vmem],
        out_specs=vmem,
        compiler_params=pltpu.CompilerParams(vmem_limit_bytes=32 * 1024 * 1024),
    )(x.reshape(B * S, D), kp['consts'], kp['w_attn'], kp['w13'], kp['w2'])
    return out.reshape(B, S, D)


# ---------------- pure-JAX reference (exact PyTorch semantics, f32) ----------------
def ref_decoder_layer(x, cos, sin, p):
    def rms(v, w):
        return v * jax.lax.rsqrt(jnp.mean(v * v, -1, keepdims=True) + EPS) * w

    B, S, D = x.shape
    xn = rms(x, p['attn_norm'])
    xq = (xn @ p['wq']).reshape(B, S, N_HEADS, HEAD_DIM)
    xk = (xn @ p['wk']).reshape(B, S, N_KV_HEADS, HEAD_DIM)
    xv = (xn @ p['wv']).reshape(B, S, N_KV_HEADS, HEAD_DIM)

    def rope_interleaved(t):
        tr = t.reshape(t.shape[:-1] + (HEAD_DIM // 2, 2))
        r, i = tr[..., 0], tr[..., 1]
        c = cos[None, :, None, :]
        s = sin[None, :, None, :]
        return jnp.stack([r * c - i * s, r * s + i * c], axis=-1).reshape(t.shape)

    xq = rope_interleaved(xq)
    xk = rope_interleaved(xk)
    xk = jnp.repeat(xk, N_REP, axis=2)
    xv = jnp.repeat(xv, N_REP, axis=2)

    q = xq.transpose(0, 2, 1, 3)
    k = xk.transpose(0, 2, 1, 3)
    v = xv.transpose(0, 2, 1, 3)
    scores = (q @ k.transpose(0, 1, 3, 2)) / math.sqrt(HEAD_DIM)
    mask = jnp.tril(jnp.ones((S, S), bool))
    scores = jnp.where(mask[None, None], scores, -jnp.inf)
    pattn = jax.nn.softmax(scores, axis=-1)
    o = (pattn @ v).transpose(0, 2, 1, 3).reshape(B, S, -1)
    h = x + o @ p['wo']

    hn = rms(h, p['ffn_norm'])
    return h + (jax.nn.silu(hn @ p['w1']) * (hn @ p['w3'])) @ p['w2']


# ---------------- deterministic parameters / constants ----------------
def make_logical_params(key):
    ks = jax.random.split(key, 7)

    def lin(k, fi, fo):                               # stored (in, out): y = x @ W
        return jax.random.normal(k, (fi, fo), jnp.float32) / math.sqrt(fi)

    return {
        'wq': lin(ks[0], DIM, N_HEADS * HEAD_DIM),
        'wk': lin(ks[1], DIM, N_KV_HEADS * HEAD_DIM),
        'wv': lin(ks[2], DIM, N_KV_HEADS * HEAD_DIM),
        'wo': lin(ks[3], N_HEADS * HEAD_DIM, DIM),
        'w1': lin(ks[4], DIM, HIDDEN_DIM),
        'w2': lin(ks[5], HIDDEN_DIM, DIM),
        'w3': lin(ks[6], DIM, HIDDEN_DIM),
        'attn_norm': jnp.ones((DIM,), jnp.float32),   # RMSNorm init = ones
        'ffn_norm': jnp.ones((DIM,), jnp.float32),
    }


def make_freqs(seq_len, head_dim, theta=10000.0):
    inv = 1.0 / (theta ** (np.arange(0, head_dim, 2, dtype=np.float32) / head_dim))
    t = np.arange(seq_len, dtype=np.float32)
    ang = np.outer(t, inv)                            # (S, hd/2)
    return np.cos(ang), np.sin(ang)


def pack_kernel_params(p, cos_np, sin_np):
    """Offline packing: RoPE de-interleave, repeat_kv, score scale, wqkv|wo and w1|w3 fusion,
    and one consolidated f32 constant slab (trig / additive mask / RMSNorm weights)."""
    # per-head column permutation: interleaved (r0,i0,r1,i1,...) -> [reals(8) | imags(8)]
    per_head = np.concatenate([np.arange(0, HEAD_DIM, 2), np.arange(1, HEAD_DIM, 2)])
    idx_q = np.concatenate([h * HEAD_DIM + per_head for h in range(N_HEADS)])
    idx_k = np.concatenate([(h // N_REP) * HEAD_DIM + per_head for h in range(N_HEADS)])
    idx_v = np.concatenate([(h // N_REP) * HEAD_DIM + np.arange(HEAD_DIM) for h in range(N_HEADS)])

    wq = np.asarray(p['wq'])[:, idx_q] * (1.0 / math.sqrt(HEAD_DIM))   # (D, NQ) scale folded
    wk = np.asarray(p['wk'])[:, idx_k]                                 # (D, NQ) repeat_kv folded
    wv = np.asarray(p['wv'])[:, idx_v]                                 # (D, NQ) repeat_kv folded
    wo = np.asarray(p['wo'])                                           # (NQ, D); NQ == D
    # fused (D, 3*NQ + D) slab: cols [0:192) contract over D (x features), cols [192:256) over NQ
    w_attn = np.concatenate([wq, wk, wv, wo], axis=1)

    w13 = np.concatenate([np.asarray(p['w1']), np.asarray(p['w3'])], axis=1)   # (D, 2*hidden)
    w2 = np.asarray(p['w2'])                                                   # (hidden, D)

    # trig for the (T, 128) [Q|K] slab; per-head block = [cos(f0..f7), cos(f0..f7)] etc.
    cos_head = np.concatenate([cos_np, cos_np], axis=1)                        # (S, hd)
    sneg_head = np.concatenate([-sin_np, np.zeros_like(sin_np)], axis=1)       # real slots only
    spos_head = np.concatenate([np.zeros_like(sin_np), sin_np], axis=1)        # imag slots only

    def expand(tab):                                   # (S, hd) -> (NTOK, 2*NQ)
        return np.tile(tab, (BATCH, 2 * N_HEADS)).astype(np.float32)

    rows = np.arange(NTOK)[:, None]
    cols = np.arange(NTOK)[None, :]
    allowed = (cols <= rows) & ((rows // SEQ) == (cols // SEQ))
    mask = np.where(allowed, 0.0, -1e30).astype(np.float32)   # (T, T) additive, f32-safe

    consts = np.zeros((5, NTOK, QK), np.float32)
    consts[0] = expand(cos_head)
    consts[1] = expand(sneg_head)
    consts[2] = expand(spos_head)
    consts[3, :, :NTOK] = mask
    consts[4, 0, :DIM] = np.asarray(p['attn_norm'])
    consts[4, 1, :DIM] = np.asarray(p['ffn_norm'])

    return {
        'consts': jnp.asarray(consts),
        'w_attn': jnp.asarray(w_attn, jnp.bfloat16),
        'w13': jnp.asarray(w13, jnp.bfloat16),
        'w2': jnp.asarray(w2, jnp.bfloat16),
    }


if __name__ == "__main__":
    key = jax.random.PRNGKey(0)
    kx, kp = jax.random.split(key)
    x = jax.random.normal(kx, (BATCH, SEQ, DIM), jnp.float32)

    cos_np, sin_np = make_freqs(SEQ, HEAD_DIM)
    logical = make_logical_params(kp)
    kparams = pack_kernel_params(logical, cos_np, sin_np)

    out = jax.block_until_ready(decoder_layer_pallas(x, kparams))

    ref = jax.block_until_ready(
        ref_decoder_layer(x, jnp.asarray(cos_np), jnp.asarray(sin_np), logical))
    # bf16 matmul operands + approximate reciprocal -> relaxed tolerance
    np.testing.assert_allclose(np.asarray(out), np.asarray(ref), rtol=5e-2, atol=5e-2)

    print("KERNEL_OK")
</pallas_src>

<mosaic_0001>
module attributes {stable_mosaic.version = 11 : i64} {
  func.func @decoder_layer_kernel(%arg0: memref<16x64xf32, #tpu.memory_space<vmem>>, %arg1: memref<5x16x128xf32, #tpu.memory_space<vmem>>, %arg2: memref<64x256xbf16, #tpu.memory_space<vmem>>, %arg3: memref<64x512xbf16, #tpu.memory_space<vmem>>, %arg4: memref<256x64xbf16, #tpu.memory_space<vmem>>, %arg5: memref<16x64xf32, #tpu.memory_space<vmem>>) attributes {dimension_semantics = [], scalar_prefetch = 0 : i64, scratch_operands = 0 : i64, tpu.core_type = #tpu.core_type<tc>} {
    %c0 = arith.constant 0 : index
    %c0_0 = arith.constant 0 : index
    %0 = vector.load %arg0[%c0, %c0_0] : memref<16x64xf32, #tpu.memory_space<vmem>>, vector<16x64xf32>
    %c0_1 = arith.constant 0 : index
    %c0_2 = arith.constant 0 : index
    %c0_3 = arith.constant 0 : index
    %1 = vector.load %arg1[%c0_1, %c0_2, %c0_3] : memref<5x16x128xf32, #tpu.memory_space<vmem>>, vector<1x16x128xf32>
    %2 = vector.shape_cast %1 : vector<1x16x128xf32> to vector<16x128xf32>
    %c1 = arith.constant 1 : index
    %c0_4 = arith.constant 0 : index
    %c0_5 = arith.constant 0 : index
    %3 = vector.load %arg1[%c1, %c0_4, %c0_5] : memref<5x16x128xf32, #tpu.memory_space<vmem>>, vector<1x16x128xf32>
    %4 = vector.shape_cast %3 : vector<1x16x128xf32> to vector<16x128xf32>
    %c2 = arith.constant 2 : index
    %c0_6 = arith.constant 0 : index
    %c0_7 = arith.constant 0 : index
    %5 = vector.load %arg1[%c2, %c0_6, %c0_7] : memref<5x16x128xf32, #tpu.memory_space<vmem>>, vector<1x16x128xf32>
    %6 = vector.shape_cast %5 : vector<1x16x128xf32> to vector<16x128xf32>
    %c3 = arith.constant 3 : index
    %c0_8 = arith.constant 0 : index
    %c0_9 = arith.constant 0 : index
    %7 = vector.load %arg1[%c3, %c0_8, %c0_9] : memref<5x16x128xf32, #tpu.memory_space<vmem>>, vector<1x16x128xf32>
    %8 = vector.shape_cast %7 : vector<1x16x128xf32> to vector<16x128xf32>
    %9 = vector.extract_strided_slice %8 {offsets = [0, 0], sizes = [16, 16], strides = [1, 1]} : vector<16x128xf32> to vector<16x16xf32>
    %c4 = arith.constant 4 : index
    %c0_10 = arith.constant 0 : index
    %c0_11 = arith.constant 0 : index
    %10 = vector.load %arg1[%c4, %c0_10, %c0_11] : memref<5x16x128xf32, #tpu.memory_space<vmem>>, vector<1x16x128xf32>
    %11 = vector.shape_cast %10 : vector<1x16x128xf32> to vector<16x128xf32>
    %12 = vector.extract_strided_slice %11 {offsets = [0, 0], sizes = [1, 64], strides = [1, 1]} : vector<16x128xf32> to vector<1x64xf32>
    %c4_12 = arith.constant 4 : index
    %c0_13 = arith.constant 0 : index
    %c0_14 = arith.constant 0 : index
    %13 = vector.load %arg1[%c4_12, %c0_13, %c0_14] : memref<5x16x128xf32, #tpu.memory_space<vmem>>, vector<1x16x128xf32>
    %14 = vector.shape_cast %13 : vector<1x16x128xf32> to vector<16x128xf32>
    %15 = vector.extract_strided_slice %14 {offsets = [1, 0], sizes = [1, 64], strides = [1, 1]} : vector<16x128xf32> to vector<1x64xf32>
    %16 = arith.mulf %0, %0 : vector<16x64xf32>
    %cst = arith.constant dense<0.000000e+00> : vector<16xf32>
    %17 = vector.multi_reduction <add>, %16, %cst [1] : vector<16x64xf32> to vector<16xf32>
    %18 = vector.shape_cast %17 : vector<16xf32> to vector<16x1xf32>
    %cst_15 = arith.constant 6.400000e+01 : f32
    %19 = vector.broadcast %cst_15 : f32 to vector<16x1xf32>
    %20 = arith.divf %18, %19 : vector<16x1xf32>
    %cst_16 = arith.constant 9.99999974E-6 : f32
    %21 = vector.broadcast %cst_16 : f32 to vector<16x1xf32>
    %22 = arith.addf %20, %21 : vector<16x1xf32>
    %23 = math.rsqrt %22 : vector<16x1xf32>
    %24 = vector.broadcast %23 : vector<16x1xf32> to vector<16x64xf32>
    %25 = arith.mulf %0, %24 : vector<16x64xf32>
    %26 = vector.broadcast %12 : vector<1x64xf32> to vector<16x64xf32>
    %27 = arith.mulf %25, %26 : vector<16x64xf32>
    %28 = arith.truncf %27 : vector<16x64xf32> to vector<16x64xbf16>
    %c0_17 = arith.constant 0 : index
    %c0_18 = arith.constant 0 : index
    %29 = vector.load %arg2[%c0_17, %c0_18] : memref<64x256xbf16, #tpu.memory_space<vmem>>, vector<64x192xbf16>
    %cst_19 = arith.constant dense<0.000000e+00> : vector<16x192xf32>
    %30 = tpu.matmul %28, %29, %cst_19 {dimension_numbers = #tpu.dot_dimension_numbers<[1], [0], [0], [1], [0, 0, 1, 1], [], []>} : vector<16x64xbf16>, vector<64x192xbf16>, vector<16x192xf32> -> vector<16x192xf32>
    %31 = vector.extract_strided_slice %30 {offsets = [0, 0], sizes = [16, 128], strides = [1, 1]} : vector<16x192xf32> to vector<16x128xf32>
    %32 = arith.mulf %31, %2 : vector<16x128xf32>
    %c120_i32 = arith.constant 120 : i32
    %33 = tpu.dynamic_rotate %31 by %c120_i32 dim 1 : vector<16x128xf32>, i32 -> vector<16x128xf32>
    %34 = arith.mulf %33, %4 : vector<16x128xf32>
    %35 = arith.addf %32, %34 : vector<16x128xf32>
    %c8_i32 = arith.constant 8 : i32
    %36 = tpu.dynamic_rotate %31 by %c8_i32 dim 1 : vector<16x128xf32>, i32 -> vector<16x128xf32>
    %37 = arith.mulf %36, %6 : vector<16x128xf32>
    %38 = arith.addf %35, %37 : vector<16x128xf32>
    %39 = vector.extract_strided_slice %38 {offsets = [0, 0], sizes = [16, 64], strides = [1, 1]} : vector<16x128xf32> to vector<16x64xf32>
    %40 = vector.shape_cast %39 : vector<16x64xf32> to vector<16x4x16xf32>
    %41 = arith.truncf %40 : vector<16x4x16xf32> to vector<16x4x16xbf16>
    %42 = vector.extract_strided_slice %38 {offsets = [0, 64], sizes = [16, 64], strides = [1, 1]} : vector<16x128xf32> to vector<16x64xf32>
    %43 = vector.shape_cast %42 : vector<16x64xf32> to vector<16x4x16xf32>
    %44 = arith.truncf %43 : vector<16x4x16xf32> to vector<16x4x16xbf16>
    %45 = vector.extract_strided_slice %30 {offsets = [0, 128], sizes = [16, 64], strides = [1, 1]} : vector<16x192xf32> to vector<16x64xf32>
    %46 = vector.shape_cast %45 : vector<16x64xf32> to vector<16x4x16xf32>
    %47 = arith.truncf %46 : vector<16x4x16xf32> to vector<16x4x16xbf16>
    "tpu.trace_start"() <{level = 10 : i32, message = "ihd,jhd->hij"}> : () -> ()
    %cst_20 = arith.constant dense<0.000000e+00> : vector<4x16x16xf32>
    %48 = tpu.matmul %41, %44, %cst_20 {dimension_numbers = #tpu.dot_dimension_numbers<[2], [2], [0], [0], [0, 1, 0, 0, 1, 0], [1], [1]>} : vector<16x4x16xbf16>, vector<16x4x16xbf16>, vector<4x16x16xf32> -> vector<4x16x16xf32>
    "tpu.trace_stop"() : () -> ()
    %49 = vector.shape_cast %9 : vector<16x16xf32> to vector<1x16x16xf32>
    %50 = vector.broadcast %49 : vector<1x16x16xf32> to vector<4x16x16xf32>
    %51 = arith.addf %48, %50 : vector<4x16x16xf32>
    %cst_21 = arith.constant dense<0xFF800000> : vector<4x16xf32>
    %52 = vector.multi_reduction <maximumf>, %51, %cst_21 [2] : vector<4x16x16xf32> to vector<4x16xf32>
    %53 = vector.shape_cast %52 : vector<4x16xf32> to vector<4x16x1xf32>
    %54 = vector.broadcast %53 : vector<4x16x1xf32> to vector<4x16x16xf32>
    %55 = arith.subf %51, %54 : vector<4x16x16xf32>
    %56 = math.exp %55 : vector<4x16x16xf32>
    %cst_22 = arith.constant dense<0.000000e+00> : vector<4x16xf32>
    %57 = vector.multi_reduction <add>, %56, %cst_22 [2] : vector<4x16x16xf32> to vector<4x16xf32>
    %58 = vector.shape_cast %57 : vector<4x16xf32> to vector<4x16x1xf32>
    %59 = tpu.reciprocal %58 {approx = true} : vector<4x16x1xf32> -> vector<4x16x1xf32>
    %60 = vector.broadcast %59 : vector<4x16x1xf32> to vector<4x16x16xf32>
    %61 = arith.mulf %56, %60 : vector<4x16x16xf32>
    %62 = arith.truncf %61 : vector<4x16x16xf32> to vector<4x16x16xbf16>
    "tpu.trace_start"() <{level = 10 : i32, message = "hij,jhd->ihd"}> : () -> ()
    %cst_23 = arith.constant dense<0.000000e+00> : vector<4x16x16xf32>
    %63 = tpu.matmul %47, %62, %cst_23 {dimension_numbers = #tpu.dot_dimension_numbers<[0], [2], [2], [1], [0, 1, 0, 2, 1, 1], [1], [0]>} : vector<16x4x16xbf16>, vector<4x16x16xbf16>, vector<4x16x16xf32> -> vector<4x16x16xf32>
    %64 = tpu.transpose %63, [2, 0, 1] : vector<4x16x16xf32> -> vector<16x4x16xf32>
    "tpu.trace_stop"() : () -> ()
    %65 = vector.shape_cast %64 : vector<16x4x16xf32> to vector<16x64xf32>
    %66 = arith.truncf %65 : vector<16x64xf32> to vector<16x64xbf16>
    %c0_24 = arith.constant 0 : index
    %c192 = arith.constant 192 : index
    %67 = vector.load %arg2[%c0_24, %c192] : memref<64x256xbf16, #tpu.memory_space<vmem>>, vector<64x64xbf16>
    %cst_25 = arith.constant dense<0.000000e+00> : vector<16x64xf32>
    %68 = tpu.matmul %66, %67, %cst_25 {dimension_numbers = #tpu.dot_dimension_numbers<[1], [0], [0], [1], [0, 0, 1, 1], [], []>} : vector<16x64xbf16>, vector<64x64xbf16>, vector<16x64xf32> -> vector<16x64xf32>
    %69 = arith.addf %0, %68 : vector<16x64xf32>
    %70 = arith.mulf %69, %69 : vector<16x64xf32>
    %cst_26 = arith.constant dense<0.000000e+00> : vector<16xf32>
    %71 = vector.multi_reduction <add>, %70, %cst_26 [1] : vector<16x64xf32> to vector<16xf32>
    %72 = vector.shape_cast %71 : vector<16xf32> to vector<16x1xf32>
    %cst_27 = arith.constant 6.400000e+01 : f32
    %73 = vector.broadcast %cst_27 : f32 to vector<16x1xf32>
    %74 = arith.divf %72, %73 : vector<16x1xf32>
    %cst_28 = arith.constant 9.99999974E-6 : f32
    %75 = vector.broadcast %cst_28 : f32 to vector<16x1xf32>
    %76 = arith.addf %74, %75 : vector<16x1xf32>
    %77 = math.rsqrt %76 : vector<16x1xf32>
    %78 = vector.broadcast %77 : vector<16x1xf32> to vector<16x64xf32>
    %79 = arith.mulf %69, %78 : vector<16x64xf32>
    %80 = vector.broadcast %15 : vector<1x64xf32> to vector<16x64xf32>
    %81 = arith.mulf %79, %80 : vector<16x64xf32>
    %82 = arith.truncf %81 : vector<16x64xf32> to vector<16x64xbf16>
    %c0_29 = arith.constant 0 : index
    %c0_30 = arith.constant 0 : index
    %83 = vector.load %arg3[%c0_29, %c0_30] : memref<64x512xbf16, #tpu.memory_space<vmem>>, vector<64x512xbf16>
    %cst_31 = arith.constant dense<0.000000e+00> : vector<16x512xf32>
    %84 = tpu.matmul %82, %83, %cst_31 {dimension_numbers = #tpu.dot_dimension_numbers<[1], [0], [0], [1], [0, 0, 1, 1], [], []>} : vector<16x64xbf16>, vector<64x512xbf16>, vector<16x512xf32> -> vector<16x512xf32>
    %85 = vector.extract_strided_slice %84 {offsets = [0, 0], sizes = [16, 256], strides = [1, 1]} : vector<16x512xf32> to vector<16x256xf32>
    %86 = arith.negf %85 : vector<16x256xf32>
    %87 = math.exp %86 : vector<16x256xf32>
    %cst_32 = arith.constant 1.000000e+00 : f32
    %88 = vector.broadcast %cst_32 : f32 to vector<16x256xf32>
    %89 = arith.addf %88, %87 : vector<16x256xf32>
    %90 = arith.divf %88, %89 : vector<16x256xf32>
    %91 = arith.mulf %85, %90 : vector<16x256xf32>
    %92 = vector.extract_strided_slice %84 {offsets = [0, 256], sizes = [16, 256], strides = [1, 1]} : vector<16x512xf32> to vector<16x256xf32>
    %93 = arith.mulf %91, %92 : vector<16x256xf32>
    %94 = arith.truncf %93 : vector<16x256xf32> to vector<16x256xbf16>
    %c0_33 = arith.constant 0 : index
    %c0_34 = arith.constant 0 : index
    %95 = vector.load %arg4[%c0_33, %c0_34] : memref<256x64xbf16, #tpu.memory_space<vmem>>, vector<256x64xbf16>
    %cst_35 = arith.constant dense<0.000000e+00> : vector<16x64xf32>
    %96 = tpu.matmul %94, %95, %cst_35 {dimension_numbers = #tpu.dot_dimension_numbers<[1], [0], [0], [1], [0, 0, 1, 1], [], []>} : vector<16x256xbf16>, vector<256x64xbf16>, vector<16x64xf32> -> vector<16x64xf32>
    %97 = arith.addf %69, %96 : vector<16x64xf32>
    %c0_36 = arith.constant 0 : index
    %c0_37 = arith.constant 0 : index
    %98 = vector.load %arg5[%c0_36, %c0_37] : memref<16x64xf32, #tpu.memory_space<vmem>>, vector<16x64xf32>
    tpu.vector_store %arg5[%c0_36, %c0_37], %97 {strides = array<i32>} : memref<16x64xf32, #tpu.memory_space<vmem>>, vector<16x64xf32>,
    return
  }
}

</mosaic_0001>

<llo_original>
// kernel: tpu_custom_call.1
$region0: #{tpu_custom_call.1}
  #allocation0 [shape = 'u32[]', space=smem, size = 0x4, offset = 0x4, fixed_abs, tag = 'smem constant byte address 0x4 - core index']
  #allocation1 [shape = 'u32[144,128]{1,0:T(1,128)}', space=vmem, size = 0x12000, scoped, tag = 'internal scratch']
  %s0 = inlined_call_operand.hbm [shape: f32[16,64], index: 0, kind: input, shape index: {}]
  %s1 = inlined_call_operand.hbm [shape: f32[5,16,128], index: 1, kind: input, shape index: {}]
  %s2 = inlined_call_operand.vmem [shape: bf16[64,256], index: 2, kind: input, shape index: {}]
  %s3 = inlined_call_operand.vmem [shape: bf16[64,512], index: 3, kind: input, shape index: {}]
  %s4 = inlined_call_operand.vmem [shape: bf16[256,64], index: 4, kind: input, shape index: {}]
  %s5 = inlined_call_operand.hbm [shape: f32[16,64], index: 5, kind: output, shape index: {}]
  %s6 = sld [smem:[#allocation0]]
  $region38: #{tpu_custom_call.1} parent=0
    _
  %s8 = ssub.s32 1, %s6
  %s9 = scalar_select 0, %s8, %s6
  $region1: #{tpu_custom_call.1} parent=0
    #allocation2 [shape = 'u8[8192]{0}', space=vmem, size = 0x2000, scoped, tag = 'input window, operand 0, single buffered']
    #allocation3 [shape = 's32[1]{0}', space=sflag, size = 0x4, scoped, tag = 'scoped memory for tpu_custom_call.1']
    #allocation4 [shape = 's32[1]{0}', space=sflag, size = 0x4, scoped, tag = 'scoped memory for tpu_custom_call.1']
    #allocation5 [shape = 'u8[40960]{0}', space=vmem, size = 0xa000, scoped, tag = 'input window, operand 1, single buffered']
    #allocation6 [shape = 's32[1]{0}', space=sflag, size = 0x4, scoped, tag = 'scoped memory for tpu_custom_call.1']
    #allocation7 [shape = 'u8[8192]{0}', space=vmem, size = 0x2000, scoped, tag = 'output window, operand 0, single buffered']
    %10 = vsyncpa [#allocation3], 0
    %11 = vsyncpa [#allocation6], 0
    %12 = vsyncpa [#allocation4], 0
    // Predicated region
    $region2: #{tpu_custom_call.1} parent=1 // pred_check
      _
    $region3: #{tpu_custom_call.1} parent=1 // pred_check_branch
      %14 = sbr.rel (0) target = $region5
    $region4: #{tpu_custom_call.1} parent=1 // pred_region
      %s16 = ssub.s32 256, 256
      %17 = vsyncadd [#allocation3], %s16
      %s18 = sshll.u32 [#allocation2], 4
      %s19 = int_to_ptr.vmem [resolvable:$true] %s18
      %24 = dma.hbm_to_vmem [thread:$0]  %s0, 256, %s19, [#allocation3], 128, 128, 8
    $region5: #{tpu_custom_call.1} parent=1 // pred_fallthru
      _
    // Predicated region
    $region6: #{tpu_custom_call.1} parent=1 // pred_check
      _
    $region7: #{tpu_custom_call.1} parent=1 // pred_check_branch
      %26 = sbr.rel (0) target = $region9
    $region8: #{tpu_custom_call.1} parent=1 // pred_region
      %s28 = ssub.s32 1280, 1280
      %29 = vsyncadd [#allocation6], %s28
      %s30 = sshll.u32 [#allocation5], 4
      %s31 = int_to_ptr.vmem [resolvable:$true] %s30
      %36 = dma.hbm_to_vmem [thread:$0]  %s1, 1280, %s31, [#allocation6], 128, 128, 8
    $region9: #{tpu_custom_call.1} parent=1 // pred_fallthru
      _
    // Predicated region
    $region10: #{tpu_custom_call.1} parent=1 // pred_check
      _
    $region11: #{tpu_custom_call.1} parent=1 // pred_check_branch
      %38 = sbr.rel (0) target = $region13
    $region12: #{tpu_custom_call.1} parent=1 // pred_region
      _
    $region13: #{tpu_custom_call.1} parent=1 // pred_fallthru
      _
    // Predicated region
    $region14: #{tpu_custom_call.1} parent=1 // pred_check
      _
    $region15: #{tpu_custom_call.1} parent=1 // pred_check_branch
      %40 = sbr.rel (0) target = $region17
    $region16: #{tpu_custom_call.1} parent=1 // pred_region
      _
    $region17: #{tpu_custom_call.1} parent=1 // pred_fallthru
      _
    // Predicated region
    $region18: #{tpu_custom_call.1} parent=1 // pred_check
      _
    $region19: #{tpu_custom_call.1} parent=1 // pred_check_branch
      %42 = sbr.rel (0) target = $region21
    $region20: #{tpu_custom_call.1} parent=1 // pred_region
      _
    $region21: #{tpu_custom_call.1} parent=1 // pred_fallthru
      _
    // Predicated region
    $region22: #{tpu_custom_call.1} parent=1 // pred_check
      _
    $region23: #{tpu_custom_call.1} parent=1 // pred_check_branch
      %44 = sbr.rel (0) target = $region25
    $region24: #{tpu_custom_call.1} parent=1 // pred_region
      %45 = dma.done [#allocation3], 256
    $region25: #{tpu_custom_call.1} parent=1 // pred_fallthru
      _
    // Predicated region
    $region26: #{tpu_custom_call.1} parent=1 // pred_check
      _
    $region27: #{tpu_custom_call.1} parent=1 // pred_check_branch
      %47 = sbr.rel (0) target = $region29
    $region28: #{tpu_custom_call.1} parent=1 // pred_region
      %48 = dma.done [#allocation6], 1280
    $region29: #{tpu_custom_call.1} parent=1 // pred_fallthru
      _
    %v50 = vld [vmem:[#allocation2] sm:$0xff]
    %v51 = vld [vmem:[#allocation2 + $0x8] sm:$0xff]
    %v52 = vld [vmem:[#allocation5] sm:$0xff]
    %v53 = vld [vmem:[#allocation5 + $0x8] sm:$0xff]
    %s54 = scalar_lea.vmem [#allocation5], 16
    %v55 = vld [vmem:[%s54] sm:$0xff]
    %v56 = vld [vmem:[%s54 + $0x8] sm:$0xff]
    %s57 = scalar_lea.vmem [#allocation5], 32
    %v58 = vld [vmem:[%s57] sm:$0xff]
    %v59 = vld [vmem:[%s57 + $0x8] sm:$0xff]
    %s60 = scalar_lea.vmem [#allocation5], 48
    %v61 = vld [vmem:[%s60] sm:$0xff]
    %v62 = vld [vmem:[%s60 + $0x8] sm:$0xff]
    %s63 = scalar_lea.vmem [#allocation5], 64
    %v64 = vld [vmem:[%s63] sm:$0xff]
    %v65 = vmul.f32 %v50, %v50
    %v66 = vmul.f32 %v51, %v51
    %vm67 = vcmask 523264
    %v68 = vsel %vm67, %v65, 0.0
    %69 = vadd.xlane.f32.xlu0 %v68
    %v70 = vpop.xlane.xlu0 %69
    %v71 = vsel %vm67, %v66, 0.0
    %72 = vadd.xlane.f32.xlu0 %v71
    %v73 = vpop.xlane.xlu0 %72
    %v74 = vrcp.pop 64.0
    %v75 = vmul.f32 %v70, %v74
    %v76 = vmul.f32 %v73, %v74
    %v77 = vadd.f32 %v75, 1e-05
    %v78 = vadd.f32 %v76, 1e-05
    %v79 = vrsqrt.pop %v77
    %v80 = vrsqrt.pop %v78
    %v81 = vmul.f32 %v50, %v79
    %v82 = vmul.f32 %v51, %v80
    %v83 = vlaneseq
    %v84 = vshrl.u32 %v83, 7
    %v85 = vsub.s32 0, %v84
    %v86 = vrot.slane %v64, %v85
    %v87 = vmul.f32 %v81, %v86
    %v88 = vmul.f32 %v82, %v86
    %v89 = vpack.c.bf16 %v88, %v87
    %v90 = vld [vmem:[%s2] sm:$0xff]
    %v91 = vld [vmem:[%s2 + $0x8] sm:$0xff]
    %v92 = vld [vmem:[%s2 + $0x10] sm:$0xff]
    %v93 = vld [vmem:[%s2 + $0x18] sm:$0xff]
    %v94 = vld [vmem:[%s2 + $0x20] sm:$0xff]
    %v95 = vld [vmem:[%s2 + $0x28] sm:$0xff]
    %v96 = vld [vmem:[%s2 + $0x30] sm:$0xff]
    %v97 = vld [vmem:[%s2 + $0x38] sm:$0xff]
    %v106 = vunpack.c.l.b16 %v90
    %v107 = vunpack.c.h.b16 %v90
    %v108 = vunpack.c.l.b16 %v91
    %v109 = vunpack.c.h.b16 %v91
    %v110 = vunpack.c.l.b16 %v92
    %v111 = vunpack.c.h.b16 %v92
    %v112 = vunpack.c.l.b16 %v93
    %v113 = vunpack.c.h.b16 %v93
    %v114 = vunpack.c.l.b16 %v94
    %v115 = vunpack.c.h.b16 %v94
    %v116 = vunpack.c.l.b16 %v95
    %v117 = vunpack.c.h.b16 %v95
    %v118 = vunpack.c.l.b16 %v96
    %v119 = vunpack.c.h.b16 %v96
    %v120 = vunpack.c.l.b16 %v97
    %v121 = vunpack.c.h.b16 %v97
    %v122 = vpack.c.b16 %v108, %v106
    %v123 = vpack.c.b16 %v109, %v107
    %v124 = vpack.c.b16 %v112, %v110
    %v125 = vpack.c.b16 %v113, %v111
    %v126 = vpack.c.b16 %v116, %v114
    %v127 = vpack.c.b16 %v117, %v115
    %v128 = vpack.c.b16 %v120, %v118
    %v129 = vpack.c.b16 %v121, %v119
    %v139 = vsel %vm67, %v89, 0
    %141 = vmatprep.subr.bf16.mxu0 %v123
    %142 = vmatpush1.bf16.msra.mxu0 %v122
    %143 = vmatprep.subr.bf16.mxu0 %v125
    %144 = vmatpush1.bf16.msra.mxu0 %v124
    %145 = vmatprep.subr.bf16.mxu0 %v127
    %146 = vmatpush1.bf16.msra.mxu0 %v126
    %147 = vmatprep.subr.bf16.mxu0 %v129
    %148 = vmatpush1.bf16.msra.mxu0 %v128
    %149 = vmatprep.subr.bf16.mxu0 0
    %150 = vmatpush1.bf16.msra.mxu0 0
    %151 = vmatprep.subr.bf16.mxu0 0
    %152 = vmatpush1.bf16.msra.mxu0 0
    %153 = vmatprep.subr.bf16.mxu0 0
    %154 = vmatpush1.bf16.msra.mxu0 0
    %155 = vmatprep.subr.bf16.mxu0 0
    %156 = vmatpush1.bf16.msra.mxu0 0
    %157 = vmatprep.subr.bf16.mxu0 0
    %158 = vmatpush1.bf16.msra.mxu0 0
    %159 = vmatprep.subr.bf16.mxu0 0
    %160 = vmatpush1.bf16.msra.mxu0 0
    %161 = vmatprep.subr.bf16.mxu0 0
    %162 = vmatpush1.bf16.msra.mxu0 0
    %163 = vmatprep.subr.bf16.mxu0 0
    %164 = vmatpush1.bf16.msra.mxu0 0
    %165 = vmatprep.subr.bf16.mxu0 0
    %166 = vmatpush1.bf16.msra.mxu0 0
    %167 = vmatprep.subr.bf16.mxu0 0
    %168 = vmatpush1.bf16.msra.mxu0 0
    %169 = vmatprep.subr.bf16.mxu0 0
    %170 = vmatpush1.bf16.msra.mxu0 0
    %171 = vmatprep.subr.bf16.mxu0 0
    %172 = vmatpush1.bf16.msra.mxu0 0
    %173 = vmatprep.mubr.bf16.mxu0 0
    %174 = vmatmul.mubr.bf16.gmra.mrb[0].mxu0 %v139
    %v175 = vpop.f32.mrb[0].mxu0
    %v176 = vadd.f32 0.0, %v175
    %v177 = vpop.f32.mrb[0].mxu0
    %v178 = vadd.f32 0.0, %v177
    %v179 = vpop.f32.mrb[0].mxu0
    %v180 = vadd.f32 0.0, %v179
    %v181 = vpop.f32.mrb[0].mxu0
    %v182 = vadd.f32 0.0, %v181
    %183 = vdwg.mxu0
    %v184 = vmul.f32 %v176, %v52
    %v185 = vmul.f32 %v180, %v53
    %186 = vrot.lane.b32.xlu0 %v176, 120
    %v187 = vpop.permute.xlu0 %186
    %188 = vrot.lane.b32.xlu0 %v180, 120
    %v189 = vpop.permute.xlu0 %188
    %v190 = vmul.f32 %v187, %v55
    %v191 = vmul.f32 %v189, %v56
    %v192 = vadd.f32 %v184, %v190
    %v193 = vadd.f32 %v185, %v191
    %194 = vrot.lane.b32.xlu0 %v176, 8
    %v195 = vpop.permute.xlu0 %194
    %196 = vrot.lane.b32.xlu0 %v180, 8
    %v197 = vpop.permute.xlu0 %196
    %v198 = vmul.f32 %v195, %v58
    %v199 = vmul.f32 %v197, %v59
    %v200 = vadd.f32 %v192, %v198
    %v201 = vadd.f32 %v193, %v199
    %204 = vrot.lane.b32.xlu0 %v200, 112
    %v205 = vpop.permute.xlu0 %204
    %206 = vrot.lane.b32.xlu0 %v201, 112
    %v207 = vpop.permute.xlu0 %206
    %210 = vrot.lane.b32.xlu0 %v200, 96
    %v211 = vpop.permute.xlu0 %210
    %212 = vrot.lane.b32.xlu0 %v201, 96
    %v213 = vpop.permute.xlu0 %212
    %216 = vrot.lane.b32.xlu0 %v200, 80
    %v217 = vpop.permute.xlu0 %216
    %218 = vrot.lane.b32.xlu0 %v201, 80
    %v219 = vpop.permute.xlu0 %218
    %v222 = vcombine.low %v200, %v211
    %v223 = vcombine.high %v200, %v211
    %v225 = vunpack.c.l.s4 1983009808
    %v226 = vunpack.c.0.s8 %v225
    %v227 = vlaneseq
    %v228 = vshrl.u32 %v227, 7
    %v229 = vsub.s32 %v226, %v228
    %v230 = vrot.slane %v222, %v229
    %v232 = vunpack.c.l.s4 1983009808
    %v233 = vunpack.c.0.s8 %v232
    %v234 = vlaneseq
    %v235 = vshrl.u32 %v234, 7
    %v236 = vsub.s32 %v233, %v235
    %v237 = vrot.slane %v223, %v236
    %v238 = vcombine.low %v205, %v217
    %v239 = vcombine.high %v205, %v217
    %v241 = vunpack.c.l.s4 1983009808
    %v242 = vunpack.c.0.s8 %v241
    %v243 = vlaneseq
    %v244 = vshrl.u32 %v243, 7
    %v245 = vsub.s32 %v242, %v244
    %v246 = vrot.slane %v238, %v245
    %v248 = vunpack.c.l.s4 1983009808
    %v249 = vunpack.c.0.s8 %v248
    %v250 = vlaneseq
    %v251 = vshrl.u32 %v250, 7
    %v252 = vsub.s32 %v249, %v251
    %v253 = vrot.slane %v239, %v252
    %v254 = vcombine.low %v230, %v246
    %v255 = vcombine.high %v230, %v246
    %v257 = vunpack.c.l.s4 1934713408
    %v258 = vunpack.c.0.s8 %v257
    %v259 = vlaneseq
    %v260 = vshrl.u32 %v259, 7
    %v261 = vsub.s32 %v258, %v260
    %v262 = vrot.slane %v254, %v261
    %v264 = vunpack.c.l.s4 1934713408
    %v265 = vunpack.c.0.s8 %v264
    %v266 = vlaneseq
    %v267 = vshrl.u32 %v266, 7
    %v268 = vsub.s32 %v265, %v267
    %v269 = vrot.slane %v255, %v268
    %v270 = vcombine.low %v237, %v253
    %v271 = vcombine.high %v237, %v253
    %v273 = vunpack.c.l.s4 1934713408
    %v274 = vunpack.c.0.s8 %v273
    %v275 = vlaneseq
    %v276 = vshrl.u32 %v275, 7
    %v277 = vsub.s32 %v274, %v276
    %v278 = vrot.slane %v270, %v277
    %v280 = vunpack.c.l.s4 1934713408
    %v281 = vunpack.c.0.s8 %v280
    %v282 = vlaneseq
    %v283 = vshrl.u32 %v282, 7
    %v284 = vsub.s32 %v281, %v283
    %v285 = vrot.slane %v271, %v284
    %v286 = vcombine.high %v262, 0.0
    %v287 = vcombine.high %v269, 0.0
    %v288 = vcombine.high %v278, 0.0
    %v289 = vcombine.high %v285, 0.0
    %v290 = vcombine.low %v201, %v213
    %v291 = vcombine.high %v201, %v213
    %v293 = vunpack.c.l.s4 1983009808
    %v294 = vunpack.c.0.s8 %v293
    %v295 = vlaneseq
    %v296 = vshrl.u32 %v295, 7
    %v297 = vsub.s32 %v294, %v296
    %v298 = vrot.slane %v290, %v297
    %v300 = vunpack.c.l.s4 1983009808
    %v301 = vunpack.c.0.s8 %v300
    %v302 = vlaneseq
    %v303 = vshrl.u32 %v302, 7
    %v304 = vsub.s32 %v301, %v303
    %v305 = vrot.slane %v291, %v304
    %v306 = vcombine.low %v207, %v219
    %v307 = vcombine.high %v207, %v219
    %v309 = vunpack.c.l.s4 1983009808
    %v310 = vunpack.c.0.s8 %v309
    %v311 = vlaneseq
    %v312 = vshrl.u32 %v311, 7
    %v313 = vsub.s32 %v310, %v312
    %v314 = vrot.slane %v306, %v313
    %v316 = vunpack.c.l.s4 1983009808
    %v317 = vunpack.c.0.s8 %v316
    %v318 = vlaneseq
    %v319 = vshrl.u32 %v318, 7
    %v320 = vsub.s32 %v317, %v319
    %v321 = vrot.slane %v307, %v320
    %v322 = vcombine.low %v298, %v314
    %v323 = vcombine.high %v298, %v314
    %v325 = vunpack.c.l.s4 1934713408
    %v326 = vunpack.c.0.s8 %v325
    %v327 = vlaneseq
    %v328 = vshrl.u32 %v327, 7
    %v329 = vsub.s32 %v326, %v328
    %v330 = vrot.slane %v322, %v329
    %v332 = vunpack.c.l.s4 1934713408
    %v333 = vunpack.c.0.s8 %v332
    %v334 = vlaneseq
    %v335 = vshrl.u32 %v334, 7
    %v336 = vsub.s32 %v333, %v335
    %v337 = vrot.slane %v323, %v336
    %v338 = vcombine.low %v305, %v321
    %v339 = vcombine.high %v305, %v321
    %v341 = vunpack.c.l.s4 1934713408
    %v342 = vunpack.c.0.s8 %v341
    %v343 = vlaneseq
    %v344 = vshrl.u32 %v343, 7
    %v345 = vsub.s32 %v342, %v344
    %v346 = vrot.slane %v338, %v345
    %v348 = vunpack.c.l.s4 1934713408
    %v349 = vunpack.c.0.s8 %v348
    %v350 = vlaneseq
    %v351 = vshrl.u32 %v350, 7
    %v352 = vsub.s32 %v349, %v351
    %v353 = vrot.slane %v339, %v352
    %v354 = vcombine.high %v330, 0.0
    %v355 = vcombine.high %v337, 0.0
    %v356 = vcombine.high %v346, 0.0
    %v357 = vcombine.high %v353, 0.0
    %v358 = vpack.c.bf16 %v262, %v262
    %v359 = vpack.c.bf16 %v286, %v286
    %v360 = vpack.c.bf16 %v269, %v269
    %v361 = vpack.c.bf16 %v287, %v287
    %v362 = vpack.c.bf16 %v278, %v278
    %v363 = vpack.c.bf16 %v288, %v288
    %v364 = vpack.c.bf16 %v285, %v285
    %v365 = vpack.c.bf16 %v289, %v289
    %v366 = vpack.c.bf16 %v330, %v330
    %v367 = vpack.c.bf16 %v354, %v354
    %v368 = vpack.c.bf16 %v337, %v337
    %v369 = vpack.c.bf16 %v355, %v355
    %v370 = vpack.c.bf16 %v346, %v346
    %v371 = vpack.c.bf16 %v356, %v356
    %v372 = vpack.c.bf16 %v353, %v353
    %v373 = vpack.c.bf16 %v357, %v357
    %374 = vrot.lane.b32.xlu0 %v200, 64
    %v375 = vpop.permute.xlu0 %374
    %376 = vrot.lane.b32.xlu0 %v201, 64
    %v377 = vpop.permute.xlu0 %376
    %378 = vrot.lane.b32.xlu0 %v205, 64
    %v379 = vpop.permute.xlu0 %378
    %380 = vrot.lane.b32.xlu0 %v207, 64
    %v381 = vpop.permute.xlu0 %380
    %382 = vrot.lane.b32.xlu0 %v211, 64
    %v383 = vpop.permute.xlu0 %382
    %384 = vrot.lane.b32.xlu0 %v213, 64
    %v385 = vpop.permute.xlu0 %384
    %386 = vrot.lane.b32.xlu0 %v217, 64
    %v387 = vpop.permute.xlu0 %386
    %388 = vrot.lane.b32.xlu0 %v219, 64
    %v389 = vpop.permute.xlu0 %388
    %v398 = vcombine.low %v375, %v383
    %v399 = vcombine.high %v375, %v383
    %v401 = vunpack.c.l.s4 1983009808
    %v402 = vunpack.c.0.s8 %v401
    %v403 = vlaneseq
    %v404 = vshrl.u32 %v403, 7
    %v405 = vsub.s32 %v402, %v404
    %v406 = vrot.slane %v398, %v405
    %v408 = vunpack.c.l.s4 1983009808
    %v409 = vunpack.c.0.s8 %v408
    %v410 = vlaneseq
    %v411 = vshrl.u32 %v410, 7
    %v412 = vsub.s32 %v409, %v411
    %v413 = vrot.slane %v399, %v412
    %v414 = vcombine.low %v379, %v387
    %v415 = vcombine.high %v379, %v387
    %v417 = vunpack.c.l.s4 1983009808
    %v418 = vunpack.c.0.s8 %v417
    %v419 = vlaneseq
    %v420 = vshrl.u32 %v419, 7
    %v421 = vsub.s32 %v418, %v420
    %v422 = vrot.slane %v414, %v421
    %v424 = vunpack.c.l.s4 1983009808
    %v425 = vunpack.c.0.s8 %v424
    %v426 = vlaneseq
    %v427 = vshrl.u32 %v426, 7
    %v428 = vsub.s32 %v425, %v427
    %v429 = vrot.slane %v415, %v428
    %v430 = vcombine.low %v406, %v422
    %v431 = vcombine.high %v406, %v422
    %v433 = vunpack.c.l.s4 1934713408
    %v434 = vunpack.c.0.s8 %v433
    %v435 = vlaneseq
    %v436 = vshrl.u32 %v435, 7
    %v437 = vsub.s32 %v434, %v436
    %v438 = vrot.slane %v430, %v437
    %v440 = vunpack.c.l.s4 1934713408
    %v441 = vunpack.c.0.s8 %v440
    %v442 = vlaneseq
    %v443 = vshrl.u32 %v442, 7
    %v444 = vsub.s32 %v441, %v443
    %v445 = vrot.slane %v431, %v444
    %v446 = vcombine.low %v413, %v429
    %v447 = vcombine.high %v413, %v429
    %v449 = vunpack.c.l.s4 1934713408
    %v450 = vunpack.c.0.s8 %v449
    %v451 = vlaneseq
    %v452 = vshrl.u32 %v451, 7
    %v453 = vsub.s32 %v450, %v452
    %v454 = vrot.slane %v446, %v453
    %v456 = vunpack.c.l.s4 1934713408
    %v457 = vunpack.c.0.s8 %v456
    %v458 = vlaneseq
    %v459 = vshrl.u32 %v458, 7
    %v460 = vsub.s32 %v457, %v459
    %v461 = vrot.slane %v447, %v460
    %v462 = vcombine.high %v438, 0.0
    %v463 = vcombine.high %v445, 0.0
    %v464 = vcombine.high %v454, 0.0
    %v465 = vcombine.high %v461, 0.0
    %v466 = vcombine.low %v377, %v385
    %v467 = vcombine.high %v377, %v385
    %v469 = vunpack.c.l.s4 1983009808
    %v470 = vunpack.c.0.s8 %v469
    %v471 = vlaneseq
    %v472 = vshrl.u32 %v471, 7
    %v473 = vsub.s32 %v470, %v472
    %v474 = vrot.slane %v466, %v473
    %v476 = vunpack.c.l.s4 1983009808
    %v477 = vunpack.c.0.s8 %v476
    %v478 = vlaneseq
    %v479 = vshrl.u32 %v478, 7
    %v480 = vsub.s32 %v477, %v479
    %v481 = vrot.slane %v467, %v480
    %v482 = vcombine.low %v381, %v389
    %v483 = vcombine.high %v381, %v389
    %v485 = vunpack.c.l.s4 1983009808
    %v486 = vunpack.c.0.s8 %v485
    %v487 = vlaneseq
    %v488 = vshrl.u32 %v487, 7
    %v489 = vsub.s32 %v486, %v488
    %v490 = vrot.slane %v482, %v489
    %v492 = vunpack.c.l.s4 1983009808
    %v493 = vunpack.c.0.s8 %v492
    %v494 = vlaneseq
    %v495 = vshrl.u32 %v494, 7
    %v496 = vsub.s32 %v493, %v495
    %v497 = vrot.slane %v483, %v496
    %v498 = vcombine.low %v474, %v490
    %v499 = vcombine.high %v474, %v490
    %v501 = vunpack.c.l.s4 1934713408
    %v502 = vunpack.c.0.s8 %v501
    %v503 = vlaneseq
    %v504 = vshrl.u32 %v503, 7
    %v505 = vsub.s32 %v502, %v504
    %v506 = vrot.slane %v498, %v505
    %v508 = vunpack.c.l.s4 1934713408
    %v509 = vunpack.c.0.s8 %v508
    %v510 = vlaneseq
    %v511 = vshrl.u32 %v510, 7
    %v512 = vsub.s32 %v509, %v511
    %v513 = vrot.slane %v499, %v512
    %v514 = vcombine.low %v481, %v497
    %v515 = vcombine.high %v481, %v497
    %v517 = vunpack.c.l.s4 1934713408
    %v518 = vunpack.c.0.s8 %v517
    %v519 = vlaneseq
    %v520 = vshrl.u32 %v519, 7
    %v521 = vsub.s32 %v518, %v520
    %v522 = vrot.slane %v514, %v521
    %v524 = vunpack.c.l.s4 1934713408
    %v525 = vunpack.c.0.s8 %v524
    %v526 = vlaneseq
    %v527 = vshrl.u32 %v526, 7
    %v528 = vsub.s32 %v525, %v527
    %v529 = vrot.slane %v515, %v528
    %v530 = vcombine.high %v506, 0.0
    %v531 = vcombine.high %v513, 0.0
    %v532 = vcombine.high %v522, 0.0
    %v533 = vcombine.high %v529, 0.0
    %v534 = vpack.c.bf16 %v438, %v438
    %v535 = vpack.c.bf16 %v462, %v462
    %v536 = vpack.c.bf16 %v445, %v445
    %v537 = vpack.c.bf16 %v463, %v463
    %v538 = vpack.c.bf16 %v454, %v454
    %v539 = vpack.c.bf16 %v464, %v464
    %v540 = vpack.c.bf16 %v461, %v461
    %v541 = vpack.c.bf16 %v465, %v465
    %v542 = vpack.c.bf16 %v506, %v506
    %v543 = vpack.c.bf16 %v530, %v530
    %v544 = vpack.c.bf16 %v513, %v513
    %v545 = vpack.c.bf16 %v531, %v531
    %v546 = vpack.c.bf16 %v522, %v522
    %v547 = vpack.c.bf16 %v532, %v532
    %v548 = vpack.c.bf16 %v529, %v529
    %v549 = vpack.c.bf16 %v533, %v533
    %552 = vrot.lane.b32.xlu0 %v178, 112
    %v553 = vpop.permute.xlu0 %552
    %554 = vrot.lane.b32.xlu0 %v182, 112
    %v555 = vpop.permute.xlu0 %554
    %558 = vrot.lane.b32.xlu0 %v178, 96
    %v559 = vpop.permute.xlu0 %558
    %560 = vrot.lane.b32.xlu0 %v182, 96
    %v561 = vpop.permute.xlu0 %560
    %564 = vrot.lane.b32.xlu0 %v178, 80
    %v565 = vpop.permute.xlu0 %564
    %566 = vrot.lane.b32.xlu0 %v182, 80
    %v567 = vpop.permute.xlu0 %566
    %v570 = vcombine.low %v178, %v559
    %v571 = vcombine.high %v178, %v559
    %v573 = vunpack.c.l.s4 1983009808
    %v574 = vunpack.c.0.s8 %v573
    %v575 = vlaneseq
    %v576 = vshrl.u32 %v575, 7
    %v577 = vsub.s32 %v574, %v576
    %v578 = vrot.slane %v570, %v577
    %v580 = vunpack.c.l.s4 1983009808
    %v581 = vunpack.c.0.s8 %v580
    %v582 = vlaneseq
    %v583 = vshrl.u32 %v582, 7
    %v584 = vsub.s32 %v581, %v583
    %v585 = vrot.slane %v571, %v584
    %v586 = vcombine.low %v553, %v565
    %v587 = vcombine.high %v553, %v565
    %v589 = vunpack.c.l.s4 1983009808
    %v590 = vunpack.c.0.s8 %v589
    %v591 = vlaneseq
    %v592 = vshrl.u32 %v591, 7
    %v593 = vsub.s32 %v590, %v592
    %v594 = vrot.slane %v586, %v593
    %v596 = vunpack.c.l.s4 1983009808
    %v597 = vunpack.c.0.s8 %v596
    %v598 = vlaneseq
    %v599 = vshrl.u32 %v598, 7
    %v600 = vsub.s32 %v597, %v599
    %v601 = vrot.slane %v587, %v600
    %v602 = vcombine.low %v578, %v594
    %v603 = vcombine.high %v578, %v594
    %v605 = vunpack.c.l.s4 1934713408
    %v606 = vunpack.c.0.s8 %v605
    %v607 = vlaneseq
    %v608 = vshrl.u32 %v607, 7
    %v609 = vsub.s32 %v606, %v608
    %v610 = vrot.slane %v602, %v609
    %v612 = vunpack.c.l.s4 1934713408
    %v613 = vunpack.c.0.s8 %v612
    %v614 = vlaneseq
    %v615 = vshrl.u32 %v614, 7
    %v616 = vsub.s32 %v613, %v615
    %v617 = vrot.slane %v603, %v616
    %v618 = vcombine.low %v585, %v601
    %v619 = vcombine.high %v585, %v601
    %v621 = vunpack.c.l.s4 1934713408
    %v622 = vunpack.c.0.s8 %v621
    %v623 = vlaneseq
    %v624 = vshrl.u32 %v623, 7
    %v625 = vsub.s32 %v622, %v624
    %v626 = vrot.slane %v618, %v625
    %v628 = vunpack.c.l.s4 1934713408
    %v629 = vunpack.c.0.s8 %v628
    %v630 = vlaneseq
    %v631 = vshrl.u32 %v630, 7
    %v632 = vsub.s32 %v629, %v631
    %v633 = vrot.slane %v619, %v632
    %v634 = vcombine.high %v610, 0.0
    %v635 = vcombine.high %v617, 0.0
    %v636 = vcombine.high %v626, 0.0
    %v637 = vcombine.high %v633, 0.0
    %v638 = vcombine.low %v182, %v561
    %v639 = vcombine.high %v182, %v561
    %v641 = vunpack.c.l.s4 1983009808
    %v642 = vunpack.c.0.s8 %v641
    %v643 = vlaneseq
    %v644 = vshrl.u32 %v643, 7
    %v645 = vsub.s32 %v642, %v644
    %v646 = vrot.slane %v638, %v645
    %v648 = vunpack.c.l.s4 1983009808
    %v649 = vunpack.c.0.s8 %v648
    %v650 = vlaneseq
    %v651 = vshrl.u32 %v650, 7
    %v652 = vsub.s32 %v649, %v651
    %v653 = vrot.slane %v639, %v652
    %v654 = vcombine.low %v555, %v567
    %v655 = vcombine.high %v555, %v567
    %v657 = vunpack.c.l.s4 1983009808
    %v658 = vunpack.c.0.s8 %v657
    %v659 = vlaneseq
    %v660 = vshrl.u32 %v659, 7
    %v661 = vsub.s32 %v658, %v660
    %v662 = vrot.slane %v654, %v661
    %v664 = vunpack.c.l.s4 1983009808
    %v665 = vunpack.c.0.s8 %v664
    %v666 = vlaneseq
    %v667 = vshrl.u32 %v666, 7
    %v668 = vsub.s32 %v665, %v667
    %v669 = vrot.slane %v655, %v668
    %v670 = vcombine.low %v646, %v662
    %v671 = vcombine.high %v646, %v662
    %v673 = vunpack.c.l.s4 1934713408
    %v674 = vunpack.c.0.s8 %v673
    %v675 = vlaneseq
    %v676 = vshrl.u32 %v675, 7
    %v677 = vsub.s32 %v674, %v676
    %v678 = vrot.slane %v670, %v677
    %v680 = vunpack.c.l.s4 1934713408
    %v681 = vunpack.c.0.s8 %v680
    %v682 = vlaneseq
    %v683 = vshrl.u32 %v682, 7
    %v684 = vsub.s32 %v681, %v683
    %v685 = vrot.slane %v671, %v684
    %v686 = vcombine.low %v653, %v669
    %v687 = vcombine.high %v653, %v669
    %v689 = vunpack.c.l.s4 1934713408
    %v690 = vunpack.c.0.s8 %v689
    %v691 = vlaneseq
    %v692 = vshrl.u32 %v691, 7
    %v693 = vsub.s32 %v690, %v692
    %v694 = vrot.slane %v686, %v693
    %v696 = vunpack.c.l.s4 1934713408
    %v697 = vunpack.c.0.s8 %v696
    %v698 = vlaneseq
    %v699 = vshrl.u32 %v698, 7
    %v700 = vsub.s32 %v697, %v699
    %v701 = vrot.slane %v687, %v700
    %v702 = vcombine.high %v678, 0.0
    %v703 = vcombine.high %v685, 0.0
    %v704 = vcombine.high %v694, 0.0
    %v705 = vcombine.high %v701, 0.0
    %v706 = vpack.c.bf16 %v610, %v610
    %v707 = vpack.c.bf16 %v634, %v634
    %v708 = vpack.c.bf16 %v617, %v617
    %v709 = vpack.c.bf16 %v635, %v635
    %v710 = vpack.c.bf16 %v626, %v626
    %v711 = vpack.c.bf16 %v636, %v636
    %v712 = vpack.c.bf16 %v633, %v633
    %v713 = vpack.c.bf16 %v637, %v637
    %v714 = vpack.c.bf16 %v678, %v678
    %v715 = vpack.c.bf16 %v702, %v702
    %v716 = vpack.c.bf16 %v685, %v685
    %v717 = vpack.c.bf16 %v703, %v703
    %v718 = vpack.c.bf16 %v694, %v694
    %v719 = vpack.c.bf16 %v704, %v704
    %v720 = vpack.c.bf16 %v701, %v701
    %v721 = vpack.c.bf16 %v705, %v705
    %v722 = vcombine.low %v358, %v362
    %v724 = vunpack.c.l.s4 1983009808
    %v725 = vunpack.c.0.s8 %v724
    %v726 = vlaneseq
    %v727 = vshrl.u32 %v726, 7
    %v728 = vsub.s32 %v725, %v727
    %v729 = vrot.slane %v722, %v728
    %v730 = vcombine.low %v360, %v364
    %v732 = vunpack.c.l.s4 1983009808
    %v733 = vunpack.c.0.s8 %v732
    %v734 = vlaneseq
    %v735 = vshrl.u32 %v734, 7
    %v736 = vsub.s32 %v733, %v735
    %v737 = vrot.slane %v730, %v736
    %v738 = vcombine.low %v366, %v370
    %v740 = vunpack.c.l.s4 1983009808
    %v741 = vunpack.c.0.s8 %v740
    %v742 = vlaneseq
    %v743 = vshrl.u32 %v742, 7
    %v744 = vsub.s32 %v741, %v743
    %v745 = vrot.slane %v738, %v744
    %v746 = vcombine.low %v368, %v372
    %v748 = vunpack.c.l.s4 1983009808
    %v749 = vunpack.c.0.s8 %v748
    %v750 = vlaneseq
    %v751 = vshrl.u32 %v750, 7
    %v752 = vsub.s32 %v749, %v751
    %v753 = vrot.slane %v746, %v752
    %v754 = vcombine.low %v729, %v737
    %v756 = vunpack.c.l.s4 1934713408
    %v757 = vunpack.c.0.s8 %v756
    %v758 = vlaneseq
    %v759 = vshrl.u32 %v758, 7
    %v760 = vsub.s32 %v757, %v759
    %v761 = vrot.slane %v754, %v760
    %v762 = vcombine.low %v745, %v753
    %v764 = vunpack.c.l.s4 1934713408
    %v765 = vunpack.c.0.s8 %v764
    %v766 = vlaneseq
    %v767 = vshrl.u32 %v766, 7
    %v768 = vsub.s32 %v765, %v767
    %v769 = vrot.slane %v762, %v768
    %v770 = vcombine.low %v761, %v769
    %v771 = vcombine.high %v761, %v769
    %v772 = vcombine.low %v359, %v363
    %v774 = vunpack.c.l.s4 1983009808
    %v775 = vunpack.c.0.s8 %v774
    %v776 = vlaneseq
    %v777 = vshrl.u32 %v776, 7
    %v778 = vsub.s32 %v775, %v777
    %v779 = vrot.slane %v772, %v778
    %v780 = vcombine.low %v361, %v365
    %v782 = vunpack.c.l.s4 1983009808
    %v783 = vunpack.c.0.s8 %v782
    %v784 = vlaneseq
    %v785 = vshrl.u32 %v784, 7
    %v786 = vsub.s32 %v783, %v785
    %v787 = vrot.slane %v780, %v786
    %v788 = vcombine.low %v367, %v371
    %v790 = vunpack.c.l.s4 1983009808
    %v791 = vunpack.c.0.s8 %v790
    %v792 = vlaneseq
    %v793 = vshrl.u32 %v792, 7
    %v794 = vsub.s32 %v791, %v793
    %v795 = vrot.slane %v788, %v794
    %v796 = vcombine.low %v369, %v373
    %v798 = vunpack.c.l.s4 1983009808
    %v799 = vunpack.c.0.s8 %v798
    %v800 = vlaneseq
    %v801 = vshrl.u32 %v800, 7
    %v802 = vsub.s32 %v799, %v801
    %v803 = vrot.slane %v796, %v802
    %v804 = vcombine.low %v779, %v787
    %v806 = vunpack.c.l.s4 1934713408
    %v807 = vunpack.c.0.s8 %v806
    %v808 = vlaneseq
    %v809 = vshrl.u32 %v808, 7
    %v810 = vsub.s32 %v807, %v809
    %v811 = vrot.slane %v804, %v810
    %v812 = vcombine.low %v795, %v803
    %v814 = vunpack.c.l.s4 1934713408
    %v815 = vunpack.c.0.s8 %v814
    %v816 = vlaneseq
    %v817 = vshrl.u32 %v816, 7
    %v818 = vsub.s32 %v815, %v817
    %v819 = vrot.slane %v812, %v818
    %v820 = vcombine.low %v811, %v819
    %v821 = vcombine.high %v811, %v819
    %v824 = vpack.i.b16 %v820, %v770
    %v825 = vshrl.u32 %v770, 16
    %v826 = vshrl.u32 %v820, 16
    %v827 = vpack.i.b16 %v826, %v825
    %v830 = vpack.i.b16 %v821, %v771
    %v831 = vshrl.u32 %v771, 16
    %v832 = vshrl.u32 %v821, 16
    %v833 = vpack.i.b16 %v832, %v831
    %834 = vxpose.xlu0.c.b16.start [1/8] %v534, 128
    %835 = vxpose.xlu0.c.b16.cont [2/8] 0, 128
    %836 = vxpose.xlu0.c.b16.cont [3/8] 0, 128
    %837 = vxpose.xlu0.c.b16.cont [4/8] 0, 128
    %838 = vxpose.xlu0.c.b16.cont [5/8] 0, 128
    %839 = vxpose.xlu0.c.b16.cont [6/8] 0, 128
    %840 = vxpose.xlu0.c.b16.cont [7/8] 0, 128
    %841 = vxpose.xlu0.c.b16.end [8/8] 0, 128
    %v842 = vpop.trf.xlu0
    %v843 = vpop.trf.xlu0
    %v844 = vpop.trf.xlu0
    %v845 = vpop.trf.xlu0
    %v846 = vpop.trf.xlu0
    %v847 = vpop.trf.xlu0
    %v848 = vpop.trf.xlu0
    %v849 = vpop.trf.xlu0
    %850 = vxpose.xlu0.c.b16.start [1/8] %v535, 128
    %851 = vxpose.xlu0.c.b16.cont [2/8] 0, 128
    %852 = vxpose.xlu0.c.b16.cont [3/8] 0, 128
    %853 = vxpose.xlu0.c.b16.cont [4/8] 0, 128
    %854 = vxpose.xlu0.c.b16.cont [5/8] 0, 128
    %855 = vxpose.xlu0.c.b16.cont [6/8] 0, 128
    %856 = vxpose.xlu0.c.b16.cont [7/8] 0, 128
    %857 = vxpose.xlu0.c.b16.end [8/8] 0, 128
    %v858 = vpop.trf.xlu0
    %v859 = vpop.trf.xlu0
    %v860 = vpop.trf.xlu0
    %v861 = vpop.trf.xlu0
    %v862 = vpop.trf.xlu0
    %v863 = vpop.trf.xlu0
    %v864 = vpop.trf.xlu0
    %v865 = vpop.trf.xlu0
    %866 = vxpose.xlu0.c.b16.start [1/8] %v536, 128
    %867 = vxpose.xlu0.c.b16.cont [2/8] 0, 128
    %868 = vxpose.xlu0.c.b16.cont [3/8] 0, 128
    %869 = vxpose.xlu0.c.b16.cont [4/8] 0, 128
    %870 = vxpose.xlu0.c.b16.cont [5/8] 0, 128
    %871 = vxpose.xlu0.c.b16.cont [6/8] 0, 128
    %872 = vxpose.xlu0.c.b16.cont [7/8] 0, 128
    %873 = vxpose.xlu0.c.b16.end [8/8] 0, 128
    %v874 = vpop.trf.xlu0
    %v875 = vpop.trf.xlu0
    %v876 = vpop.trf.xlu0
    %v877 = vpop.trf.xlu0
    %v878 = vpop.trf.xlu0
    %v879 = vpop.trf.xlu0
    %v880 = vpop.trf.xlu0
    %v881 = vpop.trf.xlu0
    %882 = vxpose.xlu0.c.b16.start [1/8] %v537, 128
    %883 = vxpose.xlu0.c.b16.cont [2/8] 0, 128
    %884 = vxpose.xlu0.c.b16.cont [3/8] 0, 128
    %885 = vxpose.xlu0.c.b16.cont [4/8] 0, 128
    %886 = vxpose.xlu0.c.b16.cont [5/8] 0, 128
    %887 = vxpose.xlu0.c.b16.cont [6/8] 0, 128
    %888 = vxpose.xlu0.c.b16.cont [7/8] 0, 128
    %889 = vxpose.xlu0.c.b16.end [8/8] 0, 128
    %v890 = vpop.trf.xlu0
    %v891 = vpop.trf.xlu0
    %v892 = vpop.trf.xlu0
    %v893 = vpop.trf.xlu0
    %v894 = vpop.trf.xlu0
    %v895 = vpop.trf.xlu0
    %v896 = vpop.trf.xlu0
    %v897 = vpop.trf.xlu0
    %898 = vxpose.xlu0.c.b16.start [1/8] %v538, 128
    %899 = vxpose.xlu0.c.b16.cont [2/8] 0, 128
    %900 = vxpose.xlu0.c.b16.cont [3/8] 0, 128
    %901 = vxpose.xlu0.c.b16.cont [4/8] 0, 128
    %902 = vxpose.xlu0.c.b16.cont [5/8] 0, 128
    %903 = vxpose.xlu0.c.b16.cont [6/8] 0, 128
    %904 = vxpose.xlu0.c.b16.cont [7/8] 0, 128
    %905 = vxpose.xlu0.c.b16.end [8/8] 0, 128
    %v906 = vpop.trf.xlu0
    %v907 = vpop.trf.xlu0
    %v908 = vpop.trf.xlu0
    %v909 = vpop.trf.xlu0
    %v910 = vpop.trf.xlu0
    %v911 = vpop.trf.xlu0
    %v912 = vpop.trf.xlu0
    %v913 = vpop.trf.xlu0
    %914 = vxpose.xlu0.c.b16.start [1/8] %v539, 128
    %915 = vxpose.xlu0.c.b16.cont [2/8] 0, 128
    %916 = vxpose.xlu0.c.b16.cont [3/8] 0, 128
    %917 = vxpose.xlu0.c.b16.cont [4/8] 0, 128
    %918 = vxpose.xlu0.c.b16.cont [5/8] 0, 128
    %919 = vxpose.xlu0.c.b16.cont [6/8] 0, 128
    %920 = vxpose.xlu0.c.b16.cont [7/8] 0, 128
    %921 = vxpose.xlu0.c.b16.end [8/8] 0, 128
    %v922 = vpop.trf.xlu0
    %v923 = vpop.trf.xlu0
    %v924 = vpop.trf.xlu0
    %v925 = vpop.trf.xlu0
    %v926 = vpop.trf.xlu0
    %v927 = vpop.trf.xlu0
    %v928 = vpop.trf.xlu0
    %v929 = vpop.trf.xlu0
    %930 = vxpose.xlu0.c.b16.start [1/8] %v540, 128
    %931 = vxpose.xlu0.c.b16.cont [2/8] 0, 128
    %932 = vxpose.xlu0.c.b16.cont [3/8] 0, 128
    %933 = vxpose.xlu0.c.b16.cont [4/8] 0, 128
    %934 = vxpose.xlu0.c.b16.cont [5/8] 0, 128
    %935 = vxpose.xlu0.c.b16.cont [6/8] 0, 128
    %936 = vxpose.xlu0.c.b16.cont [7/8] 0, 128
    %937 = vxpose.xlu0.c.b16.end [8/8] 0, 128
    %v938 = vpop.trf.xlu0
    %v939 = vpop.trf.xlu0
    %v940 = vpop.trf.xlu0
    %v941 = vpop.trf.xlu0
    %v942 = vpop.trf.xlu0
    %v943 = vpop.trf.xlu0
    %v944 = vpop.trf.xlu0
    %v945 = vpop.trf.xlu0
    %946 = vxpose.xlu0.c.b16.start [1/8] %v541, 128
    %947 = vxpose.xlu0.c.b16.cont [2/8] 0, 128
    %948 = vxpose.xlu0.c.b16.cont [3/8] 0, 128
    %949 = vxpose.xlu0.c.b16.cont [4/8] 0, 128
    %950 = vxpose.xlu0.c.b16.cont [5/8] 0, 128
    %951 = vxpose.xlu0.c.b16.cont [6/8] 0, 128
    %952 = vxpose.xlu0.c.b16.cont [7/8] 0, 128
    %953 = vxpose.xlu0.c.b16.end [8/8] 0, 128
    %v954 = vpop.trf.xlu0
    %v955 = vpop.trf.xlu0
    %v956 = vpop.trf.xlu0
    %v957 = vpop.trf.xlu0
    %v958 = vpop.trf.xlu0
    %v959 = vpop.trf.xlu0
    %v960 = vpop.trf.xlu0
    %v961 = vpop.trf.xlu0
    %962 = vxpose.xlu0.c.b16.start [1/8] %v542, 128
    %963 = vxpose.xlu0.c.b16.cont [2/8] 0, 128
    %964 = vxpose.xlu0.c.b16.cont [3/8] 0, 128
    %965 = vxpose.xlu0.c.b16.cont [4/8] 0, 128
    %966 = vxpose.xlu0.c.b16.cont [5/8] 0, 128
    %967 = vxpose.xlu0.c.b16.cont [6/8] 0, 128
    %968 = vxpose.xlu0.c.b16.cont [7/8] 0, 128
    %969 = vxpose.xlu0.c.b16.end [8/8] 0, 128
    %v970 = vpop.trf.xlu0
    %v971 = vpop.trf.xlu0
    %v972 = vpop.trf.xlu0
    %v973 = vpop.trf.xlu0
    %v974 = vpop.trf.xlu0
    %v975 = vpop.trf.xlu0
    %v976 = vpop.trf.xlu0
    %v977 = vpop.trf.xlu0
    %978 = vxpose.xlu0.c.b16.start [1/8] %v543, 128
    %979 = vxpose.xlu0.c.b16.cont [2/8] 0, 128
    %980 = vxpose.xlu0.c.b16.cont [3/8] 0, 128
    %981 = vxpose.xlu0.c.b16.cont [4/8] 0, 128
    %982 = vxpose.xlu0.c.b16.cont [5/8] 0, 128
    %983 = vxpose.xlu0.c.b16.cont [6/8] 0, 128
    %984 = vxpose.xlu0.c.b16.cont [7/8] 0, 128
    %985 = vxpose.xlu0.c.b16.end [8/8] 0, 128
    %v986 = vpop.trf.xlu0
    %v987 = vpop.trf.xlu0
    %v988 = vpop.trf.xlu0
    %v989 = vpop.trf.xlu0
    %v990 = vpop.trf.xlu0
    %v991 = vpop.trf.xlu0
    %v992 = vpop.trf.xlu0
    %v993 = vpop.trf.xlu0
    %994 = vxpose.xlu0.c.b16.start [1/8] %v544, 128
    %995 = vxpose.xlu0.c.b16.cont [2/8] 0, 128
    %996 = vxpose.xlu0.c.b16.cont [3/8] 0, 128
    %997 = vxpose.xlu0.c.b16.cont [4/8] 0, 128
    %998 = vxpose.xlu0.c.b16.cont [5/8] 0, 128
    %999 = vxpose.xlu0.c.b16.cont [6/8] 0, 128
    %1000 = vxpose.xlu0.c.b16.cont [7/8] 0, 128
    %1001 = vxpose.xlu0.c.b16.end [8/8] 0, 128
    %v1002 = vpop.trf.xlu0
    %v1003 = vpop.trf.xlu0
    %v1004 = vpop.trf.xlu0
    %v1005 = vpop.trf.xlu0
    %v1006 = vpop.trf.xlu0
    %v1007 = vpop.trf.xlu0
    %v1008 = vpop.trf.xlu0
    %v1009 = vpop.trf.xlu0
    %1010 = vxpose.xlu0.c.b16.start [1/8] %v545, 128
    %1011 = vxpose.xlu0.c.b16.cont [2/8] 0, 128
    %1012 = vxpose.xlu0.c.b16.cont [3/8] 0, 128
    %1013 = vxpose.xlu0.c.b16.cont [4/8] 0, 128
    %1014 = vxpose.xlu0.c.b16.cont [5/8] 0, 128
    %1015 = vxpose.xlu0.c.b16.cont [6/8] 0, 128
    %1016 = vxpose.xlu0.c.b16.cont [7/8] 0, 128
    %1017 = vxpose.xlu0.c.b16.end [8/8] 0, 128
    %v1018 = vpop.trf.xlu0
    %v1019 = vpop.trf.xlu0
    %v1020 = vpop.trf.xlu0
    %v1021 = vpop.trf.xlu0
    %v1022 = vpop.trf.xlu0
    %v1023 = vpop.trf.xlu0
    %v1024 = vpop.trf.xlu0
    %v1025 = vpop.trf.xlu0
    %1026 = vxpose.xlu0.c.b16.start [1/8] %v546, 128
    %1027 = vxpose.xlu0.c.b16.cont [2/8] 0, 128
    %1028 = vxpose.xlu0.c.b16.cont [3/8] 0, 128
    %1029 = vxpose.xlu0.c.b16.cont [4/8] 0, 128
    %1030 = vxpose.xlu0.c.b16.cont [5/8] 0, 128
    %1031 = vxpose.xlu0.c.b16.cont [6/8] 0, 128
    %1032 = vxpose.xlu0.c.b16.cont [7/8] 0, 128
    %1033 = vxpose.xlu0.c.b16.end [8/8] 0, 128
    %v1034 = vpop.trf.xlu0
    %v1035 = vpop.trf.xlu0
    %v1036 = vpop.trf.xlu0
    %v1037 = vpop.trf.xlu0
    %v1038 = vpop.trf.xlu0
    %v1039 = vpop.trf.xlu0
    %v1040 = vpop.trf.xlu0
    %v1041 = vpop.trf.xlu0
    %1042 = vxpose.xlu0.c.b16.start [1/8] %v547, 128
    %1043 = vxpose.xlu0.c.b16.cont [2/8] 0, 128
    %1044 = vxpose.xlu0.c.b16.cont [3/8] 0, 128
    %1045 = vxpose.xlu0.c.b16.cont [4/8] 0, 128
    %1046 = vxpose.xlu0.c.b16.cont [5/8] 0, 128
    %1047 = vxpose.xlu0.c.b16.cont [6/8] 0, 128
    %1048 = vxpose.xlu0.c.b16.cont [7/8] 0, 128
    %1049 = vxpose.xlu0.c.b16.end [8/8] 0, 128
    %v1050 = vpop.trf.xlu0
    %v1051 = vpop.trf.xlu0
    %v1052 = vpop.trf.xlu0
    %v1053 = vpop.trf.xlu0
    %v1054 = vpop.trf.xlu0
    %v1055 = vpop.trf.xlu0
    %v1056 = vpop.trf.xlu0
    %v1057 = vpop.trf.xlu0
    %1058 = vxpose.xlu0.c.b16.start [1/8] %v548, 128
    %1059 = vxpose.xlu0.c.b16.cont [2/8] 0, 128
    %1060 = vxpose.xlu0.c.b16.cont [3/8] 0, 128
    %1061 = vxpose.xlu0.c.b16.cont [4/8] 0, 128
    %1062 = vxpose.xlu0.c.b16.cont [5/8] 0, 128
    %1063 = vxpose.xlu0.c.b16.cont [6/8] 0, 128
    %1064 = vxpose.xlu0.c.b16.cont [7/8] 0, 128
    %1065 = vxpose.xlu0.c.b16.end [8/8] 0, 128
    %v1066 = vpop.trf.xlu0
    %v1067 = vpop.trf.xlu0
    %v1068 = vpop.trf.xlu0
    %v1069 = vpop.trf.xlu0
    %v1070 = vpop.trf.xlu0
    %v1071 = vpop.trf.xlu0
    %v1072 = vpop.trf.xlu0
    %v1073 = vpop.trf.xlu0
    %1074 = vxpose.xlu0.c.b16.start [1/8] %v549, 128
    %1075 = vxpose.xlu0.c.b16.cont [2/8] 0, 128
    %1076 = vxpose.xlu0.c.b16.cont [3/8] 0, 128
    %1077 = vxpose.xlu0.c.b16.cont [4/8] 0, 128
    %1078 = vxpose.xlu0.c.b16.cont [5/8] 0, 128
    %1079 = vxpose.xlu0.c.b16.cont [6/8] 0, 128
    %1080 = vxpose.xlu0.c.b16.cont [7/8] 0, 128
    %1081 = vxpose.xlu0.c.b16.end [8/8] 0, 128
    %v1082 = vpop.trf.xlu0
    %v1083 = vpop.trf.xlu0
    %v1084 = vpop.trf.xlu0
    %v1085 = vpop.trf.xlu0
    %v1086 = vpop.trf.xlu0
    %v1087 = vpop.trf.xlu0
    %v1088 = vpop.trf.xlu0
    %v1089 = vpop.trf.xlu0
    %v1090 = vcombine.low %v842, %v906
    %v1091 = vcombine.high %v842, %v906
    %v1093 = vunpack.c.l.s4 1983009808
    %v1094 = vunpack.c.0.s8 %v1093
    %v1095 = vlaneseq
    %v1096 = vshrl.u32 %v1095, 7
    %v1097 = vsub.s32 %v1094, %v1096
    %v1098 = vrot.slane %v1090, %v1097
    %v1100 = vunpack.c.l.s4 1983009808
    %v1101 = vunpack.c.0.s8 %v1100
    %v1102 = vlaneseq
    %v1103 = vshrl.u32 %v1102, 7
    %v1104 = vsub.s32 %v1101, %v1103
    %v1105 = vrot.slane %v1091, %v1104
    %v1106 = vcombine.low %v874, %v938
    %v1107 = vcombine.high %v874, %v938
    %v1109 = vunpack.c.l.s4 1983009808
    %v1110 = vunpack.c.0.s8 %v1109
    %v1111 = vlaneseq
    %v1112 = vshrl.u32 %v1111, 7
    %v1113 = vsub.s32 %v1110, %v1112
    %v1114 = vrot.slane %v1106, %v1113
    %v1116 = vunpack.c.l.s4 1983009808
    %v1117 = vunpack.c.0.s8 %v1116
    %v1118 = vlaneseq
    %v1119 = vshrl.u32 %v1118, 7
    %v1120 = vsub.s32 %v1117, %v1119
    %v1121 = vrot.slane %v1107, %v1120
    %v1122 = vcombine.low %v970, %v1034
    %v1123 = vcombine.high %v970, %v1034
    %v1125 = vunpack.c.l.s4 1983009808
    %v1126 = vunpack.c.0.s8 %v1125
    %v1127 = vlaneseq
    %v1128 = vshrl.u32 %v1127, 7
    %v1129 = vsub.s32 %v1126, %v1128
    %v1130 = vrot.slane %v1122, %v1129
    %v1132 = vunpack.c.l.s4 1983009808
    %v1133 = vunpack.c.0.s8 %v1132
    %v1134 = vlaneseq
    %v1135 = vshrl.u32 %v1134, 7
    %v1136 = vsub.s32 %v1133, %v1135
    %v1137 = vrot.slane %v1123, %v1136
    %v1138 = vcombine.low %v1002, %v1066
    %v1139 = vcombine.high %v1002, %v1066
    %v1141 = vunpack.c.l.s4 1983009808
    %v1142 = vunpack.c.0.s8 %v1141
    %v1143 = vlaneseq
    %v1144 = vshrl.u32 %v1143, 7
    %v1145 = vsub.s32 %v1142, %v1144
    %v1146 = vrot.slane %v1138, %v1145
    %v1148 = vunpack.c.l.s4 1983009808
    %v1149 = vunpack.c.0.s8 %v1148
    %v1150 = vlaneseq
    %v1151 = vshrl.u32 %v1150, 7
    %v1152 = vsub.s32 %v1149, %v1151
    %v1153 = vrot.slane %v1139, %v1152
    %v1154 = vcombine.low %v1098, %v1114
    %v1155 = vcombine.high %v1098, %v1114
    %v1157 = vunpack.c.l.s4 1934713408
    %v1158 = vunpack.c.0.s8 %v1157
    %v1159 = vlaneseq
    %v1160 = vshrl.u32 %v1159, 7
    %v1161 = vsub.s32 %v1158, %v1160
    %v1162 = vrot.slane %v1154, %v1161
    %v1164 = vunpack.c.l.s4 1934713408
    %v1165 = vunpack.c.0.s8 %v1164
    %v1166 = vlaneseq
    %v1167 = vshrl.u32 %v1166, 7
    %v1168 = vsub.s32 %v1165, %v1167
    %v1169 = vrot.slane %v1155, %v1168
    %v1170 = vcombine.low %v1105, %v1121
    %v1171 = vcombine.high %v1105, %v1121
    %v1173 = vunpack.c.l.s4 1934713408
    %v1174 = vunpack.c.0.s8 %v1173
    %v1175 = vlaneseq
    %v1176 = vshrl.u32 %v1175, 7
    %v1177 = vsub.s32 %v1174, %v1176
    %v1178 = vrot.slane %v1170, %v1177
    %v1180 = vunpack.c.l.s4 1934713408
    %v1181 = vunpack.c.0.s8 %v1180
    %v1182 = vlaneseq
    %v1183 = vshrl.u32 %v1182, 7
    %v1184 = vsub.s32 %v1181, %v1183
    %v1185 = vrot.slane %v1171, %v1184
    %v1186 = vcombine.low %v1130, %v1146
    %v1187 = vcombine.high %v1130, %v1146
    %v1189 = vunpack.c.l.s4 1934713408
    %v1190 = vunpack.c.0.s8 %v1189
    %v1191 = vlaneseq
    %v1192 = vshrl.u32 %v1191, 7
    %v1193 = vsub.s32 %v1190, %v1192
    %v1194 = vrot.slane %v1186, %v1193
    %v1196 = vunpack.c.l.s4 1934713408
    %v1197 = vunpack.c.0.s8 %v1196
    %v1198 = vlaneseq
    %v1199 = vshrl.u32 %v1198, 7
    %v1200 = vsub.s32 %v1197, %v1199
    %v1201 = vrot.slane %v1187, %v1200
    %v1202 = vcombine.low %v1137, %v1153
    %v1203 = vcombine.high %v1137, %v1153
    %v1205 = vunpack.c.l.s4 1934713408
    %v1206 = vunpack.c.0.s8 %v1205
    %v1207 = vlaneseq
    %v1208 = vshrl.u32 %v1207, 7
    %v1209 = vsub.s32 %v1206, %v1208
    %v1210 = vrot.slane %v1202, %v1209
    %v1212 = vunpack.c.l.s4 1934713408
    %v1213 = vunpack.c.0.s8 %v1212
    %v1214 = vlaneseq
    %v1215 = vshrl.u32 %v1214, 7
    %v1216 = vsub.s32 %v1213, %v1215
    %v1217 = vrot.slane %v1203, %v1216
    %v1218 = vcombine.low %v1162, %v1194
    %v1219 = vcombine.high %v1162, %v1194
    %v1220 = vcombine.low %v1169, %v1201
    %v1221 = vcombine.high %v1169, %v1201
    %v1222 = vcombine.low %v1178, %v1210
    %v1223 = vcombine.high %v1178, %v1210
    %v1224 = vcombine.low %v1185, %v1217
    %v1225 = vcombine.high %v1185, %v1217
    %v1226 = vcombine.low %v858, %v922
    %v1227 = vcombine.high %v858, %v922
    %v1229 = vunpack.c.l.s4 1983009808
    %v1230 = vunpack.c.0.s8 %v1229
    %v1231 = vlaneseq
    %v1232 = vshrl.u32 %v1231, 7
    %v1233 = vsub.s32 %v1230, %v1232
    %v1234 = vrot.slane %v1226, %v1233
    %v1236 = vunpack.c.l.s4 1983009808
    %v1237 = vunpack.c.0.s8 %v1236
    %v1238 = vlaneseq
    %v1239 = vshrl.u32 %v1238, 7
    %v1240 = vsub.s32 %v1237, %v1239
    %v1241 = vrot.slane %v1227, %v1240
    %v1242 = vcombine.low %v890, %v954
    %v1243 = vcombine.high %v890, %v954
    %v1245 = vunpack.c.l.s4 1983009808
    %v1246 = vunpack.c.0.s8 %v1245
    %v1247 = vlaneseq
    %v1248 = vshrl.u32 %v1247, 7
    %v1249 = vsub.s32 %v1246, %v1248
    %v1250 = vrot.slane %v1242, %v1249
    %v1252 = vunpack.c.l.s4 1983009808
    %v1253 = vunpack.c.0.s8 %v1252
    %v1254 = vlaneseq
    %v1255 = vshrl.u32 %v1254, 7
    %v1256 = vsub.s32 %v1253, %v1255
    %v1257 = vrot.slane %v1243, %v1256
    %v1258 = vcombine.low %v986, %v1050
    %v1259 = vcombine.high %v986, %v1050
    %v1261 = vunpack.c.l.s4 1983009808
    %v1262 = vunpack.c.0.s8 %v1261
    %v1263 = vlaneseq
    %v1264 = vshrl.u32 %v1263, 7
    %v1265 = vsub.s32 %v1262, %v1264
    %v1266 = vrot.slane %v1258, %v1265
    %v1268 = vunpack.c.l.s4 1983009808
    %v1269 = vunpack.c.0.s8 %v1268
    %v1270 = vlaneseq
    %v1271 = vshrl.u32 %v1270, 7
    %v1272 = vsub.s32 %v1269, %v1271
    %v1273 = vrot.slane %v1259, %v1272
    %v1274 = vcombine.low %v1018, %v1082
    %v1275 = vcombine.high %v1018, %v1082
    %v1277 = vunpack.c.l.s4 1983009808
    %v1278 = vunpack.c.0.s8 %v1277
    %v1279 = vlaneseq
    %v1280 = vshrl.u32 %v1279, 7
    %v1281 = vsub.s32 %v1278, %v1280
    %v1282 = vrot.slane %v1274, %v1281
    %v1284 = vunpack.c.l.s4 1983009808
    %v1285 = vunpack.c.0.s8 %v1284
    %v1286 = vlaneseq
    %v1287 = vshrl.u32 %v1286, 7
    %v1288 = vsub.s32 %v1285, %v1287
    %v1289 = vrot.slane %v1275, %v1288
    %v1290 = vcombine.low %v1234, %v1250
    %v1291 = vcombine.high %v1234, %v1250
    %v1293 = vunpack.c.l.s4 1934713408
    %v1294 = vunpack.c.0.s8 %v1293
    %v1295 = vlaneseq
    %v1296 = vshrl.u32 %v1295, 7
    %v1297 = vsub.s32 %v1294, %v1296
    %v1298 = vrot.slane %v1290, %v1297
    %v1300 = vunpack.c.l.s4 1934713408
    %v1301 = vunpack.c.0.s8 %v1300
    %v1302 = vlaneseq
    %v1303 = vshrl.u32 %v1302, 7
    %v1304 = vsub.s32 %v1301, %v1303
    %v1305 = vrot.slane %v1291, %v1304
    %v1306 = vcombine.low %v1241, %v1257
    %v1307 = vcombine.high %v1241, %v1257
    %v1309 = vunpack.c.l.s4 1934713408
    %v1310 = vunpack.c.0.s8 %v1309
    %v1311 = vlaneseq
    %v1312 = vshrl.u32 %v1311, 7
    %v1313 = vsub.s32 %v1310, %v1312
    %v1314 = vrot.slane %v1306, %v1313
    %v1316 = vunpack.c.l.s4 1934713408
    %v1317 = vunpack.c.0.s8 %v1316
    %v1318 = vlaneseq
    %v1319 = vshrl.u32 %v1318, 7
    %v1320 = vsub.s32 %v1317, %v1319
    %v1321 = vrot.slane %v1307, %v1320
    %v1322 = vcombine.low %v1266, %v1282
    %v1323 = vcombine.high %v1266, %v1282
    %v1325 = vunpack.c.l.s4 1934713408
    %v1326 = vunpack.c.0.s8 %v1325
    %v1327 = vlaneseq
    %v1328 = vshrl.u32 %v1327, 7
    %v1329 = vsub.s32 %v1326, %v1328
    %v1330 = vrot.slane %v1322, %v1329
    %v1332 = vunpack.c.l.s4 1934713408
    %v1333 = vunpack.c.0.s8 %v1332
    %v1334 = vlaneseq
    %v1335 = vshrl.u32 %v1334, 7
    %v1336 = vsub.s32 %v1333, %v1335
    %v1337 = vrot.slane %v1323, %v1336
    %v1338 = vcombine.low %v1273, %v1289
    %v1339 = vcombine.high %v1273, %v1289
    %v1341 = vunpack.c.l.s4 1934713408
    %v1342 = vunpack.c.0.s8 %v1341
    %v1343 = vlaneseq
    %v1344 = vshrl.u32 %v1343, 7
    %v1345 = vsub.s32 %v1342, %v1344
    %v1346 = vrot.slane %v1338, %v1345
    %v1348 = vunpack.c.l.s4 1934713408
    %v1349 = vunpack.c.0.s8 %v1348
    %v1350 = vlaneseq
    %v1351 = vshrl.u32 %v1350, 7
    %v1352 = vsub.s32 %v1349, %v1351
    %v1353 = vrot.slane %v1339, %v1352
    %v1354 = vcombine.low %v1298, %v1330
    %v1355 = vcombine.high %v1298, %v1330
    %v1356 = vcombine.low %v1305, %v1337
    %v1357 = vcombine.high %v1305, %v1337
    %v1358 = vcombine.low %v1314, %v1346
    %v1359 = vcombine.high %v1314, %v1346
    %v1360 = vcombine.low %v1321, %v1353
    %v1361 = vcombine.high %v1321, %v1353
    %v1364 = vpack.i.b16 %v1354, %v1218
    %v1366 = vshrl.u32 %v1218, 16
    %v1367 = vshrl.u32 %v1354, 16
    %v1368 = vpack.i.b16 %v1367, %v1366
    %v1372 = vpack.i.b16 %v1355, %v1219
    %v1374 = vshrl.u32 %v1219, 16
    %v1375 = vshrl.u32 %v1355, 16
    %v1376 = vpack.i.b16 %v1375, %v1374
    %v1380 = vpack.i.b16 %v1356, %v1220
    %v1382 = vshrl.u32 %v1220, 16
    %v1383 = vshrl.u32 %v1356, 16
    %v1384 = vpack.i.b16 %v1383, %v1382
    %v1388 = vpack.i.b16 %v1357, %v1221
    %v1390 = vshrl.u32 %v1221, 16
    %v1391 = vshrl.u32 %v1357, 16
    %v1392 = vpack.i.b16 %v1391, %v1390
    %v1396 = vpack.i.b16 %v1358, %v1222
    %v1398 = vshrl.u32 %v1222, 16
    %v1399 = vshrl.u32 %v1358, 16
    %v1400 = vpack.i.b16 %v1399, %v1398
    %v1404 = vpack.i.b16 %v1359, %v1223
    %v1406 = vshrl.u32 %v1223, 16
    %v1407 = vshrl.u32 %v1359, 16
    %v1408 = vpack.i.b16 %v1407, %v1406
    %v1412 = vpack.i.b16 %v1360, %v1224
    %v1414 = vshrl.u32 %v1224, 16
    %v1415 = vshrl.u32 %v1360, 16
    %v1416 = vpack.i.b16 %v1415, %v1414
    %v1420 = vpack.i.b16 %v1361, %v1225
    %v1422 = vshrl.u32 %v1225, 16
    %v1423 = vshrl.u32 %v1361, 16
    %v1424 = vpack.i.b16 %v1423, %v1422
    %1426 = vxpose.xlu0.c.b16.start [1/8] %v1364, 128
    %1427 = vxpose.xlu0.c.b16.cont [2/8] 0, 128
    %1428 = vxpose.xlu0.c.b16.cont [3/8] 0, 128
    %1429 = vxpose.xlu0.c.b16.cont [4/8] 0, 128
    %1430 = vxpose.xlu0.c.b16.cont [5/8] 0, 128
    %1431 = vxpose.xlu0.c.b16.cont [6/8] 0, 128
    %1432 = vxpose.xlu0.c.b16.cont [7/8] 0, 128
    %1433 = vxpose.xlu0.c.b16.end [8/8] 0, 128
    %v1434 = vpop.trf.xlu0
    %v1435 = vpop.trf.xlu0
    %v1436 = vpop.trf.xlu0
    %v1437 = vpop.trf.xlu0
    %v1438 = vpop.trf.xlu0
    %v1439 = vpop.trf.xlu0
    %v1440 = vpop.trf.xlu0
    %v1441 = vpop.trf.xlu0
    %1442 = vxpose.xlu0.c.b16.start [1/8] %v1368, 128
    %1443 = vxpose.xlu0.c.b16.cont [2/8] 0, 128
    %1444 = vxpose.xlu0.c.b16.cont [3/8] 0, 128
    %1445 = vxpose.xlu0.c.b16.cont [4/8] 0, 128
    %1446 = vxpose.xlu0.c.b16.cont [5/8] 0, 128
    %1447 = vxpose.xlu0.c.b16.cont [6/8] 0, 128
    %1448 = vxpose.xlu0.c.b16.cont [7/8] 0, 128
    %1449 = vxpose.xlu0.c.b16.end [8/8] 0, 128
    %v1450 = vpop.trf.xlu0
    %v1451 = vpop.trf.xlu0
    %v1452 = vpop.trf.xlu0
    %v1453 = vpop.trf.xlu0
    %v1454 = vpop.trf.xlu0
    %v1455 = vpop.trf.xlu0
    %v1456 = vpop.trf.xlu0
    %v1457 = vpop.trf.xlu0
    %1458 = vxpose.xlu0.c.b16.start [1/8] %v1372, 128
    %1459 = vxpose.xlu0.c.b16.cont [2/8] 0, 128
    %1460 = vxpose.xlu0.c.b16.cont [3/8] 0, 128
    %1461 = vxpose.xlu0.c.b16.cont [4/8] 0, 128
    %1462 = vxpose.xlu0.c.b16.cont [5/8] 0, 128
    %1463 = vxpose.xlu0.c.b16.cont [6/8] 0, 128
    %1464 = vxpose.xlu0.c.b16.cont [7/8] 0, 128
    %1465 = vxpose.xlu0.c.b16.end [8/8] 0, 128
    %v1466 = vpop.trf.xlu0
    %v1467 = vpop.trf.xlu0
    %v1468 = vpop.trf.xlu0
    %v1469 = vpop.trf.xlu0
    %v1470 = vpop.trf.xlu0
    %v1471 = vpop.trf.xlu0
    %v1472 = vpop.trf.xlu0
    %v1473 = vpop.trf.xlu0
    %1474 = vxpose.xlu0.c.b16.start [1/8] %v1376, 128
    %1475 = vxpose.xlu0.c.b16.cont [2/8] 0, 128
    %1476 = vxpose.xlu0.c.b16.cont [3/8] 0, 128
    %1477 = vxpose.xlu0.c.b16.cont [4/8] 0, 128
    %1478 = vxpose.xlu0.c.b16.cont [5/8] 0, 128
    %1479 = vxpose.xlu0.c.b16.cont [6/8] 0, 128
    %1480 = vxpose.xlu0.c.b16.cont [7/8] 0, 128
    %1481 = vxpose.xlu0.c.b16.end [8/8] 0, 128
    %v1482 = vpop.trf.xlu0
    %v1483 = vpop.trf.xlu0
    %v1484 = vpop.trf.xlu0
    %v1485 = vpop.trf.xlu0
    %v1486 = vpop.trf.xlu0
    %v1487 = vpop.trf.xlu0
    %v1488 = vpop.trf.xlu0
    %v1489 = vpop.trf.xlu0
    %1490 = vxpose.xlu0.c.b16.start [1/8] %v1380, 128
    %1491 = vxpose.xlu0.c.b16.cont [2/8] 0, 128
    %1492 = vxpose.xlu0.c.b16.cont [3/8] 0, 128
    %1493 = vxpose.xlu0.c.b16.cont [4/8] 0, 128
    %1494 = vxpose.xlu0.c.b16.cont [5/8] 0, 128
    %1495 = vxpose.xlu0.c.b16.cont [6/8] 0, 128
    %1496 = vxpose.xlu0.c.b16.cont [7/8] 0, 128
    %1497 = vxpose.xlu0.c.b16.end [8/8] 0, 128
    %v1498 = vpop.trf.xlu0
    %v1499 = vpop.trf.xlu0
    %v1500 = vpop.trf.xlu0
    %v1501 = vpop.trf.xlu0
    %v1502 = vpop.trf.xlu0
    %v1503 = vpop.trf.xlu0
    %v1504 = vpop.trf.xlu0
    %v1505 = vpop.trf.xlu0
    %1506 = vxpose.xlu0.c.b16.start [1/8] %v1384, 128
    %1507 = vxpose.xlu0.c.b16.cont [2/8] 0, 128
    %1508 = vxpose.xlu0.c.b16.cont [3/8] 0, 128
    %1509 = vxpose.xlu0.c.b16.cont [4/8] 0, 128
    %1510 = vxpose.xlu0.c.b16.cont [5/8] 0, 128
    %1511 = vxpose.xlu0.c.b16.cont [6/8] 0, 128
    %1512 = vxpose.xlu0.c.b16.cont [7/8] 0, 128
    %1513 = vxpose.xlu0.c.b16.end [8/8] 0, 128
    %v1514 = vpop.trf.xlu0
    %v1515 = vpop.trf.xlu0
    %v1516 = vpop.trf.xlu0
    %v1517 = vpop.trf.xlu0
    %v1518 = vpop.trf.xlu0
    %v1519 = vpop.trf.xlu0
    %v1520 = vpop.trf.xlu0
    %v1521 = vpop.trf.xlu0
    %1522 = vxpose.xlu0.c.b16.start [1/8] %v1388, 128
    %1523 = vxpose.xlu0.c.b16.cont [2/8] 0, 128
    %1524 = vxpose.xlu0.c.b16.cont [3/8] 0, 128
    %1525 = vxpose.xlu0.c.b16.cont [4/8] 0, 128
    %1526 = vxpose.xlu0.c.b16.cont [5/8] 0, 128
    %1527 = vxpose.xlu0.c.b16.cont [6/8] 0, 128
    %1528 = vxpose.xlu0.c.b16.cont [7/8] 0, 128
    %1529 = vxpose.xlu0.c.b16.end [8/8] 0, 128
    %v1530 = vpop.trf.xlu0
    %v1531 = vpop.trf.xlu0
    %v1532 = vpop.trf.xlu0
    %v1533 = vpop.trf.xlu0
    %v1534 = vpop.trf.xlu0
    %v1535 = vpop.trf.xlu0
    %v1536 = vpop.trf.xlu0
    %v1537 = vpop.trf.xlu0
    %1538 = vxpose.xlu0.c.b16.start [1/8] %v1392, 128
    %1539 = vxpose.xlu0.c.b16.cont [2/8] 0, 128
    %1540 = vxpose.xlu0.c.b16.cont [3/8] 0, 128
    %1541 = vxpose.xlu0.c.b16.cont [4/8] 0, 128
    %1542 = vxpose.xlu0.c.b16.cont [5/8] 0, 128
    %1543 = vxpose.xlu0.c.b16.cont [6/8] 0, 128
    %1544 = vxpose.xlu0.c.b16.cont [7/8] 0, 128
    %1545 = vxpose.xlu0.c.b16.end [8/8] 0, 128
    %v1546 = vpop.trf.xlu0
    %v1547 = vpop.trf.xlu0
    %v1548 = vpop.trf.xlu0
    %v1549 = vpop.trf.xlu0
    %v1550 = vpop.trf.xlu0
    %v1551 = vpop.trf.xlu0
    %v1552 = vpop.trf.xlu0
    %v1553 = vpop.trf.xlu0
    %1554 = vxpose.xlu0.c.b16.start [1/8] %v1396, 128
    %1555 = vxpose.xlu0.c.b16.cont [2/8] 0, 128
    %1556 = vxpose.xlu0.c.b16.cont [3/8] 0, 128
    %1557 = vxpose.xlu0.c.b16.cont [4/8] 0, 128
    %1558 = vxpose.xlu0.c.b16.cont [5/8] 0, 128
    %1559 = vxpose.xlu0.c.b16.cont [6/8] 0, 128
    %1560 = vxpose.xlu0.c.b16.cont [7/8] 0, 128
    %1561 = vxpose.xlu0.c.b16.end [8/8] 0, 128
    %v1562 = vpop.trf.xlu0
    %v1563 = vpop.trf.xlu0
    %v1564 = vpop.trf.xlu0
    %v1565 = vpop.trf.xlu0
    %v1566 = vpop.trf.xlu0
    %v1567 = vpop.trf.xlu0
    %v1568 = vpop.trf.xlu0
    %v1569 = vpop.trf.xlu0
    %1570 = vxpose.xlu0.c.b16.start [1/8] %v1400, 128
    %1571 = vxpose.xlu0.c.b16.cont [2/8] 0, 128
    %1572 = vxpose.xlu0.c.b16.cont [3/8] 0, 128
    %1573 = vxpose.xlu0.c.b16.cont [4/8] 0, 128
    %1574 = vxpose.xlu0.c.b16.cont [5/8] 0, 128
    %1575 = vxpose.xlu0.c.b16.cont [6/8] 0, 128
    %1576 = vxpose.xlu0.c.b16.cont [7/8] 0, 128
    %1577 = vxpose.xlu0.c.b16.end [8/8] 0, 128
    %v1578 = vpop.trf.xlu0
    %v1579 = vpop.trf.xlu0
    %v1580 = vpop.trf.xlu0
    %v1581 = vpop.trf.xlu0
    %v1582 = vpop.trf.xlu0
    %v1583 = vpop.trf.xlu0
    %v1584 = vpop.trf.xlu0
    %v1585 = vpop.trf.xlu0
    %1586 = vxpose.xlu0.c.b16.start [1/8] %v1404, 128
    %1587 = vxpose.xlu0.c.b16.cont [2/8] 0, 128
    %1588 = vxpose.xlu0.c.b16.cont [3/8] 0, 128
    %1589 = vxpose.xlu0.c.b16.cont [4/8] 0, 128
    %1590 = vxpose.xlu0.c.b16.cont [5/8] 0, 128
    %1591 = vxpose.xlu0.c.b16.cont [6/8] 0, 128
    %1592 = vxpose.xlu0.c.b16.cont [7/8] 0, 128
    %1593 = vxpose.xlu0.c.b16.end [8/8] 0, 128
    %v1594 = vpop.trf.xlu0
    %v1595 = vpop.trf.xlu0
    %v1596 = vpop.trf.xlu0
    %v1597 = vpop.trf.xlu0
    %v1598 = vpop.trf.xlu0
    %v1599 = vpop.trf.xlu0
    %v1600 = vpop.trf.xlu0
    %v1601 = vpop.trf.xlu0
    %1602 = vxpose.xlu0.c.b16.start [1/8] %v1408, 128
    %1603 = vxpose.xlu0.c.b16.cont [2/8] 0, 128
    %1604 = vxpose.xlu0.c.b16.cont [3/8] 0, 128
    %1605 = vxpose.xlu0.c.b16.cont [4/8] 0, 128
    %1606 = vxpose.xlu0.c.b16.cont [5/8] 0, 128
    %1607 = vxpose.xlu0.c.b16.cont [6/8] 0, 128
    %1608 = vxpose.xlu0.c.b16.cont [7/8] 0, 128
    %1609 = vxpose.xlu0.c.b16.end [8/8] 0, 128
    %v1610 = vpop.trf.xlu0
    %v1611 = vpop.trf.xlu0
    %v1612 = vpop.trf.xlu0
    %v1613 = vpop.trf.xlu0
    %v1614 = vpop.trf.xlu0
    %v1615 = vpop.trf.xlu0
    %v1616 = vpop.trf.xlu0
    %v1617 = vpop.trf.xlu0
    %1618 = vxpose.xlu0.c.b16.start [1/8] %v1412, 128
    %1619 = vxpose.xlu0.c.b16.cont [2/8] 0, 128
    %1620 = vxpose.xlu0.c.b16.cont [3/8] 0, 128
    %1621 = vxpose.xlu0.c.b16.cont [4/8] 0, 128
    %1622 = vxpose.xlu0.c.b16.cont [5/8] 0, 128
    %1623 = vxpose.xlu0.c.b16.cont [6/8] 0, 128
    %1624 = vxpose.xlu0.c.b16.cont [7/8] 0, 128
    %1625 = vxpose.xlu0.c.b16.end [8/8] 0, 128
    %v1626 = vpop.trf.xlu0
    %v1627 = vpop.trf.xlu0
    %v1628 = vpop.trf.xlu0
    %v1629 = vpop.trf.xlu0
    %v1630 = vpop.trf.xlu0
    %v1631 = vpop.trf.xlu0
    %v1632 = vpop.trf.xlu0
    %v1633 = vpop.trf.xlu0
    %1634 = vxpose.xlu0.c.b16.start [1/8] %v1416, 128
    %1635 = vxpose.xlu0.c.b16.cont [2/8] 0, 128
    %1636 = vxpose.xlu0.c.b16.cont [3/8] 0, 128
    %1637 = vxpose.xlu0.c.b16.cont [4/8] 0, 128
    %1638 = vxpose.xlu0.c.b16.cont [5/8] 0, 128
    %1639 = vxpose.xlu0.c.b16.cont [6/8] 0, 128
    %1640 = vxpose.xlu0.c.b16.cont [7/8] 0, 128
    %1641 = vxpose.xlu0.c.b16.end [8/8] 0, 128
    %v1642 = vpop.trf.xlu0
    %v1643 = vpop.trf.xlu0
    %v1644 = vpop.trf.xlu0
    %v1645 = vpop.trf.xlu0
    %v1646 = vpop.trf.xlu0
    %v1647 = vpop.trf.xlu0
    %v1648 = vpop.trf.xlu0
    %v1649 = vpop.trf.xlu0
    %1650 = vxpose.xlu0.c.b16.start [1/8] %v1420, 128
    %1651 = vxpose.xlu0.c.b16.cont [2/8] 0, 128
    %1652 = vxpose.xlu0.c.b16.cont [3/8] 0, 128
    %1653 = vxpose.xlu0.c.b16.cont [4/8] 0, 128
    %1654 = vxpose.xlu0.c.b16.cont [5/8] 0, 128
    %1655 = vxpose.xlu0.c.b16.cont [6/8] 0, 128
    %1656 = vxpose.xlu0.c.b16.cont [7/8] 0, 128
    %1657 = vxpose.xlu0.c.b16.end [8/8] 0, 128
    %v1658 = vpop.trf.xlu0
    %v1659 = vpop.trf.xlu0
    %v1660 = vpop.trf.xlu0
    %v1661 = vpop.trf.xlu0
    %v1662 = vpop.trf.xlu0
    %v1663 = vpop.trf.xlu0
    %v1664 = vpop.trf.xlu0
    %v1665 = vpop.trf.xlu0
    %1666 = vxpose.xlu0.c.b16.start [1/8] %v1424, 128
    %1667 = vxpose.xlu0.c.b16.cont [2/8] 0, 128
    %1668 = vxpose.xlu0.c.b16.cont [3/8] 0, 128
    %1669 = vxpose.xlu0.c.b16.cont [4/8] 0, 128
    %1670 = vxpose.xlu0.c.b16.cont [5/8] 0, 128
    %1671 = vxpose.xlu0.c.b16.cont [6/8] 0, 128
    %1672 = vxpose.xlu0.c.b16.cont [7/8] 0, 128
    %1673 = vxpose.xlu0.c.b16.end [8/8] 0, 128
    %v1674 = vpop.trf.xlu0
    %v1675 = vpop.trf.xlu0
    %v1676 = vpop.trf.xlu0
    %v1677 = vpop.trf.xlu0
    %v1678 = vpop.trf.xlu0
    %v1679 = vpop.trf.xlu0
    %v1680 = vpop.trf.xlu0
    %v1681 = vpop.trf.xlu0
    %v1682 = vcombine.low %v1434, %v1498
    %v1684 = vunpack.c.l.s4 1983009808
    %v1685 = vunpack.c.0.s8 %v1684
    %v1686 = vlaneseq
    %v1687 = vshrl.u32 %v1686, 7
    %v1688 = vsub.s32 %v1685, %v1687
    %v1689 = vrot.slane %v1682, %v1688
    %v1690 = vcombine.low %v1466, %v1530
    %v1692 = vunpack.c.l.s4 1983009808
    %v1693 = vunpack.c.0.s8 %v1692
    %v1694 = vlaneseq
    %v1695 = vshrl.u32 %v1694, 7
    %v1696 = vsub.s32 %v1693, %v1695
    %v1697 = vrot.slane %v1690, %v1696
    %v1698 = vcombine.low %v1562, %v1626
    %v1700 = vunpack.c.l.s4 1983009808
    %v1701 = vunpack.c.0.s8 %v1700
    %v1702 = vlaneseq
    %v1703 = vshrl.u32 %v1702, 7
    %v1704 = vsub.s32 %v1701, %v1703
    %v1705 = vrot.slane %v1698, %v1704
    %v1706 = vcombine.low %v1594, %v1658
    %v1708 = vunpack.c.l.s4 1983009808
    %v1709 = vunpack.c.0.s8 %v1708
    %v1710 = vlaneseq
    %v1711 = vshrl.u32 %v1710, 7
    %v1712 = vsub.s32 %v1709, %v1711
    %v1713 = vrot.slane %v1706, %v1712
    %v1714 = vcombine.low %v1689, %v1697
    %v1716 = vunpack.c.l.s4 1934713408
    %v1717 = vunpack.c.0.s8 %v1716
    %v1718 = vlaneseq
    %v1719 = vshrl.u32 %v1718, 7
    %v1720 = vsub.s32 %v1717, %v1719
    %v1721 = vrot.slane %v1714, %v1720
    %v1722 = vcombine.low %v1705, %v1713
    %v1724 = vunpack.c.l.s4 1934713408
    %v1725 = vunpack.c.0.s8 %v1724
    %v1726 = vlaneseq
    %v1727 = vshrl.u32 %v1726, 7
    %v1728 = vsub.s32 %v1725, %v1727
    %v1729 = vrot.slane %v1722, %v1728
    %v1730 = vcombine.low %v1721, %v1729
    %v1731 = vcombine.high %v1721, %v1729
    %v1732 = vcombine.low %v1450, %v1514
    %v1734 = vunpack.c.l.s4 1983009808
    %v1735 = vunpack.c.0.s8 %v1734
    %v1736 = vlaneseq
    %v1737 = vshrl.u32 %v1736, 7
    %v1738 = vsub.s32 %v1735, %v1737
    %v1739 = vrot.slane %v1732, %v1738
    %v1740 = vcombine.low %v1482, %v1546
    %v1742 = vunpack.c.l.s4 1983009808
    %v1743 = vunpack.c.0.s8 %v1742
    %v1744 = vlaneseq
    %v1745 = vshrl.u32 %v1744, 7
    %v1746 = vsub.s32 %v1743, %v1745
    %v1747 = vrot.slane %v1740, %v1746
    %v1748 = vcombine.low %v1578, %v1642
    %v1750 = vunpack.c.l.s4 1983009808
    %v1751 = vunpack.c.0.s8 %v1750
    %v1752 = vlaneseq
    %v1753 = vshrl.u32 %v1752, 7
    %v1754 = vsub.s32 %v1751, %v1753
    %v1755 = vrot.slane %v1748, %v1754
    %v1756 = vcombine.low %v1610, %v1674
    %v1758 = vunpack.c.l.s4 1983009808
    %v1759 = vunpack.c.0.s8 %v1758
    %v1760 = vlaneseq
    %v1761 = vshrl.u32 %v1760, 7
    %v1762 = vsub.s32 %v1759, %v1761
    %v1763 = vrot.slane %v1756, %v1762
    %v1764 = vcombine.low %v1739, %v1747
    %v1766 = vunpack.c.l.s4 1934713408
    %v1767 = vunpack.c.0.s8 %v1766
    %v1768 = vlaneseq
    %v1769 = vshrl.u32 %v1768, 7
    %v1770 = vsub.s32 %v1767, %v1769
    %v1771 = vrot.slane %v1764, %v1770
    %v1772 = vcombine.low %v1755, %v1763
    %v1774 = vunpack.c.l.s4 1934713408
    %v1775 = vunpack.c.0.s8 %v1774
    %v1776 = vlaneseq
    %v1777 = vshrl.u32 %v1776, 7
    %v1778 = vsub.s32 %v1775, %v1777
    %v1779 = vrot.slane %v1772, %v1778
    %v1780 = vcombine.low %v1771, %v1779
    %v1781 = vcombine.high %v1771, %v1779
    %v1784 = vpack.i.b16 %v1780, %v1730
    %v1786 = vshrl.u32 %v1730, 16
    %v1787 = vshrl.u32 %v1780, 16
    %v1788 = vpack.i.b16 %v1787, %v1786
    %v1792 = vpack.i.b16 %v1781, %v1731
    %v1794 = vshrl.u32 %v1731, 16
    %v1795 = vshrl.u32 %v1781, 16
    %v1796 = vpack.i.b16 %v1795, %v1794
    %vm1798 = vcmask 130048
    %v1800 = vsel %vm1798, %v824, 0
    %1802 = vmatprep.subr.bf16.mxu0 0
    %1803 = vmatpush1.bf16.msra.mxu0 %v1784
    %1804 = vmatprep.subr.bf16.mxu0 0
    %1805 = vmatpush1.bf16.msra.mxu0 0
    %1806 = vmatprep.subr.bf16.mxu0 0
    %1807 = vmatpush1.bf16.msra.mxu0 0
    %1808 = vmatprep.subr.bf16.mxu0 0
    %1809 = vmatpush1.bf16.msra.mxu0 0
    %1810 = vmatprep.subr.bf16.mxu0 0
    %1811 = vmatpush1.bf16.msra.mxu0 0
    %1812 = vmatprep.subr.bf16.mxu0 0
    %1813 = vmatpush1.bf16.msra.mxu0 0
    %1814 = vmatprep.subr.bf16.mxu0 0
    %1815 = vmatpush1.bf16.msra.mxu0 0
    %1816 = vmatprep.subr.bf16.mxu0 0
    %1817 = vmatpush1.bf16.msra.mxu0 0
    %1818 = vmatprep.subr.bf16.mxu0 0
    %1819 = vmatpush1.bf16.msra.mxu0 0
    %1820 = vmatprep.subr.bf16.mxu0 0
    %1821 = vmatpush1.bf16.msra.mxu0 0
    %1822 = vmatprep.subr.bf16.mxu0 0
    %1823 = vmatpush1.bf16.msra.mxu0 0
    %1824 = vmatprep.subr.bf16.mxu0 0
    %1825 = vmatpush1.bf16.msra.mxu0 0
    %1826 = vmatprep.subr.bf16.mxu0 0
    %1827 = vmatpush1.bf16.msra.mxu0 0
    %1828 = vmatprep.subr.bf16.mxu0 0
    %1829 = vmatpush1.bf16.msra.mxu0 0
    %1830 = vmatprep.subr.bf16.mxu0 0
    %1831 = vmatpush1.bf16.msra.mxu0 0
    %1832 = vmatprep.subr.bf16.mxu0 0
    %1833 = vmatpush1.bf16.msra.mxu0 0
    %1834 = vmatprep.mubr.bf16.mxu0 0
    %1835 = vmatmul.mubr.bf16.gmra.mrb[0].mxu0 %v1800
    %v1836 = vpop.f32.mrb[0].mxu0
    %v1837 = vadd.f32 %v61, %v1836
    %v1838 = vpop.f32.mrb[0].mxu0
    %v1839 = vpop.f32.mrb[0].mxu0
    %v1840 = vadd.f32 %v62, %v1839
    %v1841 = vpop.f32.mrb[0].mxu0
    %1842 = vdwg.mxu0
    %v1844 = vsel %vm1798, %v827, 0
    %1846 = vmatprep.subr.bf16.mxu0 0
    %1847 = vmatpush1.bf16.msra.mxu0 %v1788
    %1848 = vmatprep.subr.bf16.mxu0 0
    %1849 = vmatpush1.bf16.msra.mxu0 0
    %1850 = vmatprep.subr.bf16.mxu0 0
    %1851 = vmatpush1.bf16.msra.mxu0 0
    %1852 = vmatprep.subr.bf16.mxu0 0
    %1853 = vmatpush1.bf16.msra.mxu0 0
    %1854 = vmatprep.subr.bf16.mxu0 0
    %1855 = vmatpush1.bf16.msra.mxu0 0
    %1856 = vmatprep.subr.bf16.mxu0 0
    %1857 = vmatpush1.bf16.msra.mxu0 0
    %1858 = vmatprep.subr.bf16.mxu0 0
    %1859 = vmatpush1.bf16.msra.mxu0 0
    %1860 = vmatprep.subr.bf16.mxu0 0
    %1861 = vmatpush1.bf16.msra.mxu0 0
    %1862 = vmatprep.subr.bf16.mxu0 0
    %1863 = vmatpush1.bf16.msra.mxu0 0
    %1864 = vmatprep.subr.bf16.mxu0 0
    %1865 = vmatpush1.bf16.msra.mxu0 0
    %1866 = vmatprep.subr.bf16.mxu0 0
    %1867 = vmatpush1.bf16.msra.mxu0 0
    %1868 = vmatprep.subr.bf16.mxu0 0
    %1869 = vmatpush1.bf16.msra.mxu0 0
    %1870 = vmatprep.subr.bf16.mxu0 0
    %1871 = vmatpush1.bf16.msra.mxu0 0
    %1872 = vmatprep.subr.bf16.mxu0 0
    %1873 = vmatpush1.bf16.msra.mxu0 0
    %1874 = vmatprep.subr.bf16.mxu0 0
    %1875 = vmatpush1.bf16.msra.mxu0 0
    %1876 = vmatprep.subr.bf16.mxu0 0
    %1877 = vmatpush1.bf16.msra.mxu0 0
    %1878 = vmatprep.mubr.bf16.mxu0 0
    %1879 = vmatmul.mubr.bf16.gmra.mrb[0].mxu0 %v1844
    %v1880 = vpop.f32.mrb[0].mxu0
    %v1881 = vadd.f32 %v61, %v1880
    %v1882 = vpop.f32.mrb[0].mxu0
    %v1883 = vpop.f32.mrb[0].mxu0
    %v1884 = vadd.f32 %v62, %v1883
    %v1885 = vpop.f32.mrb[0].mxu0
    %1886 = vdwg.mxu0
    %v1888 = vsel %vm1798, %v830, 0
    %1890 = vmatprep.subr.bf16.mxu0 0
    %1891 = vmatpush1.bf16.msra.mxu0 %v1792
    %1892 = vmatprep.subr.bf16.mxu0 0
    %1893 = vmatpush1.bf16.msra.mxu0 0
    %1894 = vmatprep.subr.bf16.mxu0 0
    %1895 = vmatpush1.bf16.msra.mxu0 0
    %1896 = vmatprep.subr.bf16.mxu0 0
    %1897 = vmatpush1.bf16.msra.mxu0 0
    %1898 = vmatprep.subr.bf16.mxu0 0
    %1899 = vmatpush1.bf16.msra.mxu0 0
    %1900 = vmatprep.subr.bf16.mxu0 0
    %1901 = vmatpush1.bf16.msra.mxu0 0
    %1902 = vmatprep.subr.bf16.mxu0 0
    %1903 = vmatpush1.bf16.msra.mxu0 0
    %1904 = vmatprep.subr.bf16.mxu0 0
    %1905 = vmatpush1.bf16.msra.mxu0 0
    %1906 = vmatprep.subr.bf16.mxu0 0
    %1907 = vmatpush1.bf16.msra.mxu0 0
    %1908 = vmatprep.subr.bf16.mxu0 0
    %1909 = vmatpush1.bf16.msra.mxu0 0
    %1910 = vmatprep.subr.bf16.mxu0 0
    %1911 = vmatpush1.bf16.msra.mxu0 0
    %1912 = vmatprep.subr.bf16.mxu0 0
    %1913 = vmatpush1.bf16.msra.mxu0 0
    %1914 = vmatprep.subr.bf16.mxu0 0
    %1915 = vmatpush1.bf16.msra.mxu0 0
    %1916 = vmatprep.subr.bf16.mxu0 0
    %1917 = vmatpush1.bf16.msra.mxu0 0
    %1918 = vmatprep.subr.bf16.mxu0 0
    %1919 = vmatpush1.bf16.msra.mxu0 0
    %1920 = vmatprep.subr.bf16.mxu0 0
    %1921 = vmatpush1.bf16.msra.mxu0 0
    %1922 = vmatprep.mubr.bf16.mxu0 0
    %1923 = vmatmul.mubr.bf16.gmra.mrb[0].mxu0 %v1888
    %v1924 = vpop.f32.mrb[0].mxu0
    %v1925 = vadd.f32 %v61, %v1924
    %v1926 = vpop.f32.mrb[0].mxu0
    %v1927 = vpop.f32.mrb[0].mxu0
    %v1928 = vadd.f32 %v62, %v1927
    %v1929 = vpop.f32.mrb[0].mxu0
    %1930 = vdwg.mxu0
    %v1932 = vsel %vm1798, %v833, 0
    %1934 = vmatprep.subr.bf16.mxu0 0
    %1935 = vmatpush1.bf16.msra.mxu0 %v1796
    %1936 = vmatprep.subr.bf16.mxu0 0
    %1937 = vmatpush1.bf16.msra.mxu0 0
    %1938 = vmatprep.subr.bf16.mxu0 0
    %1939 = vmatpush1.bf16.msra.mxu0 0
    %1940 = vmatprep.subr.bf16.mxu0 0
    %1941 = vmatpush1.bf16.msra.mxu0 0
    %1942 = vmatprep.subr.bf16.mxu0 0
    %1943 = vmatpush1.bf16.msra.mxu0 0
    %1944 = vmatprep.subr.bf16.mxu0 0
    %1945 = vmatpush1.bf16.msra.mxu0 0
    %1946 = vmatprep.subr.bf16.mxu0 0
    %1947 = vmatpush1.bf16.msra.mxu0 0
    %1948 = vmatprep.subr.bf16.mxu0 0
    %1949 = vmatpush1.bf16.msra.mxu0 0
    %1950 = vmatprep.subr.bf16.mxu0 0
    %1951 = vmatpush1.bf16.msra.mxu0 0
    %1952 = vmatprep.subr.bf16.mxu0 0
    %1953 = vmatpush1.bf16.msra.mxu0 0
    %1954 = vmatprep.subr.bf16.mxu0 0
    %1955 = vmatpush1.bf16.msra.mxu0 0
    %1956 = vmatprep.subr.bf16.mxu0 0
    %1957 = vmatpush1.bf16.msra.mxu0 0
    %1958 = vmatprep.subr.bf16.mxu0 0
    %1959 = vmatpush1.bf16.msra.mxu0 0
    %1960 = vmatprep.subr.bf16.mxu0 0
    %1961 = vmatpush1.bf16.msra.mxu0 0
    %1962 = vmatprep.subr.bf16.mxu0 0
    %1963 = vmatpush1.bf16.msra.mxu0 0
    %1964 = vmatprep.subr.bf16.mxu0 0
    %1965 = vmatpush1.bf16.msra.mxu0 0
    %1966 = vmatprep.mubr.bf16.mxu0 0
    %1967 = vmatmul.mubr.bf16.gmra.mrb[0].mxu0 %v1932
    %v1968 = vpop.f32.mrb[0].mxu0
    %v1969 = vadd.f32 %v61, %v1968
    %v1970 = vpop.f32.mrb[0].mxu0
    %v1971 = vpop.f32.mrb[0].mxu0
    %v1972 = vadd.f32 %v62, %v1971
    %v1973 = vpop.f32.mrb[0].mxu0
    %1974 = vdwg.mxu0
    %v1975 = vsel %vm1798, %v1837, -inf
    %1976 = vmax.xlane.f32.xlu0 %v1975
    %v1977 = vpop.xlane.xlu0 %1976
    %v1978 = vsel %vm1798, %v1840, -inf
    %1979 = vmax.xlane.f32.xlu0 %v1978
    %v1980 = vpop.xlane.xlu0 %1979
    %v1981 = vsel %vm1798, %v1881, -inf
    %1982 = vmax.xlane.f32.xlu0 %v1981
    %v1983 = vpop.xlane.xlu0 %1982
    %v1984 = vsel %vm1798, %v1884, -inf
    %1985 = vmax.xlane.f32.xlu0 %v1984
    %v1986 = vpop.xlane.xlu0 %1985
    %v1987 = vsel %vm1798, %v1925, -inf
    %1988 = vmax.xlane.f32.xlu0 %v1987
    %v1989 = vpop.xlane.xlu0 %1988
    %v1990 = vsel %vm1798, %v1928, -inf
    %1991 = vmax.xlane.f32.xlu0 %v1990
    %v1992 = vpop.xlane.xlu0 %1991
    %v1993 = vsel %vm1798, %v1969, -inf
    %1994 = vmax.xlane.f32.xlu0 %v1993
    %v1995 = vpop.xlane.xlu0 %1994
    %v1996 = vsel %vm1798, %v1972, -inf
    %1997 = vmax.xlane.f32.xlu0 %v1996
    %v1998 = vpop.xlane.xlu0 %1997
    %v1999 = vsub.f32 %v1837, %v1977
    %v2000 = vsub.f32 %v1840, %v1980
    %v2001 = vsub.f32 %v1881, %v1983
    %v2002 = vsub.f32 %v1884, %v1986
    %v2003 = vsub.f32 %v1925, %v1989
    %v2004 = vsub.f32 %v1928, %v1992
    %v2005 = vsub.f32 %v1969, %v1995
    %v2006 = vsub.f32 %v1972, %v1998
    %v2007 = vmul.f32 %v1999, 1.442695
    %v2008 = vpow.pop %v2007
    %v2009 = vmul.f32 %v2000, 1.442695
    %v2010 = vpow.pop %v2009
    %v2011 = vmul.f32 %v2001, 1.442695
    %v2012 = vpow.pop %v2011
    %v2013 = vmul.f32 %v2002, 1.442695
    %v2014 = vpow.pop %v2013
    %v2015 = vmul.f32 %v2003, 1.442695
    %v2016 = vpow.pop %v2015
    %v2017 = vmul.f32 %v2004, 1.442695
    %v2018 = vpow.pop %v2017
    %v2019 = vmul.f32 %v2005, 1.442695
    %v2020 = vpow.pop %v2019
    %v2021 = vmul.f32 %v2006, 1.442695
    %v2022 = vpow.pop %v2021
    %v2023 = vsel %vm1798, %v2008, 0.0
    %2024 = vadd.xlane.f32.xlu0 %v2023
    %v2025 = vpop.xlane.xlu0 %2024
    %v2026 = vsel %vm1798, %v2010, 0.0
    %2027 = vadd.xlane.f32.xlu0 %v2026
    %v2028 = vpop.xlane.xlu0 %2027
    %v2029 = vsel %vm1798, %v2012, 0.0
    %2030 = vadd.xlane.f32.xlu0 %v2029
    %v2031 = vpop.xlane.xlu0 %2030
    %v2032 = vsel %vm1798, %v2014, 0.0
    %2033 = vadd.xlane.f32.xlu0 %v2032
    %v2034 = vpop.xlane.xlu0 %2033
    %v2035 = vsel %vm1798, %v2016, 0.0
    %2036 = vadd.xlane.f32.xlu0 %v2035
    %v2037 = vpop.xlane.xlu0 %2036
    %v2038 = vsel %vm1798, %v2018, 0.0
    %2039 = vadd.xlane.f32.xlu0 %v2038
    %v2040 = vpop.xlane.xlu0 %2039
    %v2041 = vsel %vm1798, %v2020, 0.0
    %2042 = vadd.xlane.f32.xlu0 %v2041
    %v2043 = vpop.xlane.xlu0 %2042
    %v2044 = vsel %vm1798, %v2022, 0.0
    %2045 = vadd.xlane.f32.xlu0 %v2044
    %v2046 = vpop.xlane.xlu0 %2045
    %v2047 = vrcp.pop %v2025
    %v2048 = vrcp.pop %v2028
    %v2049 = vrcp.pop %v2031
    %v2050 = vrcp.pop %v2034
    %v2051 = vrcp.pop %v2037
    %v2052 = vrcp.pop %v2040
    %v2053 = vrcp.pop %v2043
    %v2054 = vrcp.pop %v2046
    %v2055 = vmul.f32 %v2008, %v2047
    %v2056 = vmul.f32 %v2010, %v2048
    %v2057 = vmul.f32 %v2012, %v2049
    %v2058 = vmul.f32 %v2014, %v2050
    %v2059 = vmul.f32 %v2016, %v2051
    %v2060 = vmul.f32 %v2018, %v2052
    %v2061 = vmul.f32 %v2020, %v2053
    %v2062 = vmul.f32 %v2022, %v2054
    %v2063 = vpack.c.bf16 %v2056, %v2055
    %v2064 = vpack.c.bf16 %v2058, %v2057
    %v2065 = vpack.c.bf16 %v2060, %v2059
    %v2066 = vpack.c.bf16 %v2062, %v2061
    %2067 = vxpose.xlu0.c.b16.start [1/8] %v706, 128
    %2068 = vxpose.xlu0.c.b16.cont [2/8] 0, 128
    %2069 = vxpose.xlu0.c.b16.cont [3/8] 0, 128
    %2070 = vxpose.xlu0.c.b16.cont [4/8] 0, 128
    %2071 = vxpose.xlu0.c.b16.cont [5/8] 0, 128
    %2072 = vxpose.xlu0.c.b16.cont [6/8] 0, 128
    %2073 = vxpose.xlu0.c.b16.cont [7/8] 0, 128
    %2074 = vxpose.xlu0.c.b16.end [8/8] 0, 128
    %v2075 = vpop.trf.xlu0
    %v2076 = vpop.trf.xlu0
    %v2077 = vpop.trf.xlu0
    %v2078 = vpop.trf.xlu0
    %v2079 = vpop.trf.xlu0
    %v2080 = vpop.trf.xlu0
    %v2081 = vpop.trf.xlu0
    %v2082 = vpop.trf.xlu0
    %2083 = vxpose.xlu0.c.b16.start [1/8] %v707, 128
    %2084 = vxpose.xlu0.c.b16.cont [2/8] 0, 128
    %2085 = vxpose.xlu0.c.b16.cont [3/8] 0, 128
    %2086 = vxpose.xlu0.c.b16.cont [4/8] 0, 128
    %2087 = vxpose.xlu0.c.b16.cont [5/8] 0, 128
    %2088 = vxpose.xlu0.c.b16.cont [6/8] 0, 128
    %2089 = vxpose.xlu0.c.b16.cont [7/8] 0, 128
    %2090 = vxpose.xlu0.c.b16.end [8/8] 0, 128
    %v2091 = vpop.trf.xlu0
    %v2092 = vpop.trf.xlu0
    %v2093 = vpop.trf.xlu0
    %v2094 = vpop.trf.xlu0
    %v2095 = vpop.trf.xlu0
    %v2096 = vpop.trf.xlu0
    %v2097 = vpop.trf.xlu0
    %v2098 = vpop.trf.xlu0
    %2099 = vxpose.xlu0.c.b16.start [1/8] %v708, 128
    %2100 = vxpose.xlu0.c.b16.cont [2/8] 0, 128
    %2101 = vxpose.xlu0.c.b16.cont [3/8] 0, 128
    %2102 = vxpose.xlu0.c.b16.cont [4/8] 0, 128
    %2103 = vxpose.xlu0.c.b16.cont [5/8] 0, 128
    %2104 = vxpose.xlu0.c.b16.cont [6/8] 0, 128
    %2105 = vxpose.xlu0.c.b16.cont [7/8] 0, 128
    %2106 = vxpose.xlu0.c.b16.end [8/8] 0, 128
    %v2107 = vpop.trf.xlu0
    %v2108 = vpop.trf.xlu0
    %v2109 = vpop.trf.xlu0
    %v2110 = vpop.trf.xlu0
    %v2111 = vpop.trf.xlu0
    %v2112 = vpop.trf.xlu0
    %v2113 = vpop.trf.xlu0
    %v2114 = vpop.trf.xlu0
    %2115 = vxpose.xlu0.c.b16.start [1/8] %v709, 128
    %2116 = vxpose.xlu0.c.b16.cont [2/8] 0, 128
    %2117 = vxpose.xlu0.c.b16.cont [3/8] 0, 128
    %2118 = vxpose.xlu0.c.b16.cont [4/8] 0, 128
    %2119 = vxpose.xlu0.c.b16.cont [5/8] 0, 128
    %2120 = vxpose.xlu0.c.b16.cont [6/8] 0, 128
    %2121 = vxpose.xlu0.c.b16.cont [7/8] 0, 128
    %2122 = vxpose.xlu0.c.b16.end [8/8] 0, 128
    %v2123 = vpop.trf.xlu0
    %v2124 = vpop.trf.xlu0
    %v2125 = vpop.trf.xlu0
    %v2126 = vpop.trf.xlu0
    %v2127 = vpop.trf.xlu0
    %v2128 = vpop.trf.xlu0
    %v2129 = vpop.trf.xlu0
    %v2130 = vpop.trf.xlu0
    %2131 = vxpose.xlu0.c.b16.start [1/8] %v710, 128
    %2132 = vxpose.xlu0.c.b16.cont [2/8] 0, 128
    %2133 = vxpose.xlu0.c.b16.cont [3/8] 0, 128
    %2134 = vxpose.xlu0.c.b16.cont [4/8] 0, 128
    %2135 = vxpose.xlu0.c.b16.cont [5/8] 0, 128
    %2136 = vxpose.xlu0.c.b16.cont [6/8] 0, 128
    %2137 = vxpose.xlu0.c.b16.cont [7/8] 0, 128
    %2138 = vxpose.xlu0.c.b16.end [8/8] 0, 128
    %v2139 = vpop.trf.xlu0
    %v2140 = vpop.trf.xlu0
    %v2141 = vpop.trf.xlu0
    %v2142 = vpop.trf.xlu0
    %v2143 = vpop.trf.xlu0
    %v2144 = vpop.trf.xlu0
    %v2145 = vpop.trf.xlu0
    %v2146 = vpop.trf.xlu0
    %2147 = vxpose.xlu0.c.b16.start [1/8] %v711, 128
    %2148 = vxpose.xlu0.c.b16.cont [2/8] 0, 128
    %2149 = vxpose.xlu0.c.b16.cont [3/8] 0, 128
    %2150 = vxpose.xlu0.c.b16.cont [4/8] 0, 128
    %2151 = vxpose.xlu0.c.b16.cont [5/8] 0, 128
    %2152 = vxpose.xlu0.c.b16.cont [6/8] 0, 128
    %2153 = vxpose.xlu0.c.b16.cont [7/8] 0, 128
    %2154 = vxpose.xlu0.c.b16.end [8/8] 0, 128
    %v2155 = vpop.trf.xlu0
    %v2156 = vpop.trf.xlu0
    %v2157 = vpop.trf.xlu0
    %v2158 = vpop.trf.xlu0
    %v2159 = vpop.trf.xlu0
    %v2160 = vpop.trf.xlu0
    %v2161 = vpop.trf.xlu0
    %v2162 = vpop.trf.xlu0
    %2163 = vxpose.xlu0.c.b16.start [1/8] %v712, 128
    %2164 = vxpose.xlu0.c.b16.cont [2/8] 0, 128
    %2165 = vxpose.xlu0.c.b16.cont [3/8] 0, 128
    %2166 = vxpose.xlu0.c.b16.cont [4/8] 0, 128
    %2167 = vxpose.xlu0.c.b16.cont [5/8] 0, 128
    %2168 = vxpose.xlu0.c.b16.cont [6/8] 0, 128
    %2169 = vxpose.xlu0.c.b16.cont [7/8] 0, 128
    %2170 = vxpose.xlu0.c.b16.end [8/8] 0, 128
    %v2171 = vpop.trf.xlu0
    %v2172 = vpop.trf.xlu0
    %v2173 = vpop.trf.xlu0
    %v2174 = vpop.trf.xlu0
    %v2175 = vpop.trf.xlu0
    %v2176 = vpop.trf.xlu0
    %v2177 = vpop.trf.xlu0
    %v2178 = vpop.trf.xlu0
    %2179 = vxpose.xlu0.c.b16.start [1/8] %v713, 128
    %2180 = vxpose.xlu0.c.b16.cont [2/8] 0, 128
    %2181 = vxpose.xlu0.c.b16.cont [3/8] 0, 128
    %2182 = vxpose.xlu0.c.b16.cont [4/8] 0, 128
    %2183 = vxpose.xlu0.c.b16.cont [5/8] 0, 128
    %2184 = vxpose.xlu0.c.b16.cont [6/8] 0, 128
    %2185 = vxpose.xlu0.c.b16.cont [7/8] 0, 128
    %2186 = vxpose.xlu0.c.b16.end [8/8] 0, 128
    %v2187 = vpop.trf.xlu0
    %v2188 = vpop.trf.xlu0
    %v2189 = vpop.trf.xlu0
    %v2190 = vpop.trf.xlu0
    %v2191 = vpop.trf.xlu0
    %v2192 = vpop.trf.xlu0
    %v2193 = vpop.trf.xlu0
    %v2194 = vpop.trf.xlu0
    %2195 = vxpose.xlu0.c.b16.start [1/8] %v714, 128
    %2196 = vxpose.xlu0.c.b16.cont [2/8] 0, 128
    %2197 = vxpose.xlu0.c.b16.cont [3/8] 0, 128
    %2198 = vxpose.xlu0.c.b16.cont [4/8] 0, 128
    %2199 = vxpose.xlu0.c.b16.cont [5/8] 0, 128
    %2200 = vxpose.xlu0.c.b16.cont [6/8] 0, 128
    %2201 = vxpose.xlu0.c.b16.cont [7/8] 0, 128
    %2202 = vxpose.xlu0.c.b16.end [8/8] 0, 128
    %v2203 = vpop.trf.xlu0
    %v2204 = vpop.trf.xlu0
    %v2205 = vpop.trf.xlu0
    %v2206 = vpop.trf.xlu0
    %v2207 = vpop.trf.xlu0
    %v2208 = vpop.trf.xlu0
    %v2209 = vpop.trf.xlu0
    %v2210 = vpop.trf.xlu0
    %2211 = vxpose.xlu0.c.b16.start [1/8] %v715, 128
    %2212 = vxpose.xlu0.c.b16.cont [2/8] 0, 128
    %2213 = vxpose.xlu0.c.b16.cont [3/8] 0, 128
    %2214 = vxpose.xlu0.c.b16.cont [4/8] 0, 128
    %2215 = vxpose.xlu0.c.b16.cont [5/8] 0, 128
    %2216 = vxpose.xlu0.c.b16.cont [6/8] 0, 128
    %2217 = vxpose.xlu0.c.b16.cont [7/8] 0, 128
    %2218 = vxpose.xlu0.c.b16.end [8/8] 0, 128
    %v2219 = vpop.trf.xlu0
    %v2220 = vpop.trf.xlu0
    %v2221 = vpop.trf.xlu0
    %v2222 = vpop.trf.xlu0
    %v2223 = vpop.trf.xlu0
    %v2224 = vpop.trf.xlu0
    %v2225 = vpop.trf.xlu0
    %v2226 = vpop.trf.xlu0
    %2227 = vxpose.xlu0.c.b16.start [1/8] %v716, 128
    %2228 = vxpose.xlu0.c.b16.cont [2/8] 0, 128
    %2229 = vxpose.xlu0.c.b16.cont [3/8] 0, 128
    %2230 = vxpose.xlu0.c.b16.cont [4/8] 0, 128
    %2231 = vxpose.xlu0.c.b16.cont [5/8] 0, 128
    %2232 = vxpose.xlu0.c.b16.cont [6/8] 0, 128
    %2233 = vxpose.xlu0.c.b16.cont [7/8] 0, 128
    %2234 = vxpose.xlu0.c.b16.end [8/8] 0, 128
    %v2235 = vpop.trf.xlu0
    %v2236 = vpop.trf.xlu0
    %v2237 = vpop.trf.xlu0
    %v2238 = vpop.trf.xlu0
    %v2239 = vpop.trf.xlu0
    %v2240 = vpop.trf.xlu0
    %v2241 = vpop.trf.xlu0
    %v2242 = vpop.trf.xlu0
    %2243 = vxpose.xlu0.c.b16.start [1/8] %v717, 128
    %2244 = vxpose.xlu0.c.b16.cont [2/8] 0, 128
    %2245 = vxpose.xlu0.c.b16.cont [3/8] 0, 128
    %2246 = vxpose.xlu0.c.b16.cont [4/8] 0, 128
    %2247 = vxpose.xlu0.c.b16.cont [5/8] 0, 128
    %2248 = vxpose.xlu0.c.b16.cont [6/8] 0, 128
    %2249 = vxpose.xlu0.c.b16.cont [7/8] 0, 128
    %2250 = vxpose.xlu0.c.b16.end [8/8] 0, 128
    %v2251 = vpop.trf.xlu0
    %v2252 = vpop.trf.xlu0
    %v2253 = vpop.trf.xlu0
    %v2254 = vpop.trf.xlu0
    %v2255 = vpop.trf.xlu0
    %v2256 = vpop.trf.xlu0
    %v2257 = vpop.trf.xlu0
    %v2258 = vpop.trf.xlu0
    %2259 = vxpose.xlu0.c.b16.start [1/8] %v718, 128
    %2260 = vxpose.xlu0.c.b16.cont [2/8] 0, 128
    %2261 = vxpose.xlu0.c.b16.cont [3/8] 0, 128
    %2262 = vxpose.xlu0.c.b16.cont [4/8] 0, 128
    %2263 = vxpose.xlu0.c.b16.cont [5/8] 0, 128
    %2264 = vxpose.xlu0.c.b16.cont [6/8] 0, 128
    %2265 = vxpose.xlu0.c.b16.cont [7/8] 0, 128
    %2266 = vxpose.xlu0.c.b16.end [8/8] 0, 128
    %v2267 = vpop.trf.xlu0
    %v2268 = vpop.trf.xlu0
    %v2269 = vpop.trf.xlu0
    %v2270 = vpop.trf.xlu0
    %v2271 = vpop.trf.xlu0
    %v2272 = vpop.trf.xlu0
    %v2273 = vpop.trf.xlu0
    %v2274 = vpop.trf.xlu0
    %2275 = vxpose.xlu0.c.b16.start [1/8] %v719, 128
    %2276 = vxpose.xlu0.c.b16.cont [2/8] 0, 128
    %2277 = vxpose.xlu0.c.b16.cont [3/8] 0, 128
    %2278 = vxpose.xlu0.c.b16.cont [4/8] 0, 128
    %2279 = vxpose.xlu0.c.b16.cont [5/8] 0, 128
    %2280 = vxpose.xlu0.c.b16.cont [6/8] 0, 128
    %2281 = vxpose.xlu0.c.b16.cont [7/8] 0, 128
    %2282 = vxpose.xlu0.c.b16.end [8/8] 0, 128
    %v2283 = vpop.trf.xlu0
    %v2284 = vpop.trf.xlu0
    %v2285 = vpop.trf.xlu0
    %v2286 = vpop.trf.xlu0
    %v2287 = vpop.trf.xlu0
    %v2288 = vpop.trf.xlu0
    %v2289 = vpop.trf.xlu0
    %v2290 = vpop.trf.xlu0
    %2291 = vxpose.xlu0.c.b16.start [1/8] %v720, 128
    %2292 = vxpose.xlu0.c.b16.cont [2/8] 0, 128
    %2293 = vxpose.xlu0.c.b16.cont [3/8] 0, 128
    %2294 = vxpose.xlu0.c.b16.cont [4/8] 0, 128
    %2295 = vxpose.xlu0.c.b16.cont [5/8] 0, 128
    %2296 = vxpose.xlu0.c.b16.cont [6/8] 0, 128
    %2297 = vxpose.xlu0.c.b16.cont [7/8] 0, 128
    %2298 = vxpose.xlu0.c.b16.end [8/8] 0, 128
    %v2299 = vpop.trf.xlu0
    %v2300 = vpop.trf.xlu0
    %v2301 = vpop.trf.xlu0
    %v2302 = vpop.trf.xlu0
    %v2303 = vpop.trf.xlu0
    %v2304 = vpop.trf.xlu0
    %v2305 = vpop.trf.xlu0
    %v2306 = vpop.trf.xlu0
    %2307 = vxpose.xlu0.c.b16.start [1/8] %v721, 128
    %2308 = vxpose.xlu0.c.b16.cont [2/8] 0, 128
    %2309 = vxpose.xlu0.c.b16.cont [3/8] 0, 128
    %2310 = vxpose.xlu0.c.b16.cont [4/8] 0, 128
    %2311 = vxpose.xlu0.c.b16.cont [5/8] 0, 128
    %2312 = vxpose.xlu0.c.b16.cont [6/8] 0, 128
    %2313 = vxpose.xlu0.c.b16.cont [7/8] 0, 128
    %2314 = vxpose.xlu0.c.b16.end [8/8] 0, 128
    %v2315 = vpop.trf.xlu0
    %v2316 = vpop.trf.xlu0
    %v2317 = vpop.trf.xlu0
    %v2318 = vpop.trf.xlu0
    %v2319 = vpop.trf.xlu0
    %v2320 = vpop.trf.xlu0
    %v2321 = vpop.trf.xlu0
    %v2322 = vpop.trf.xlu0
    %v2323 = vcombine.low %v2075, %v2139
    %v2324 = vcombine.high %v2075, %v2139
    %v2326 = vunpack.c.l.s4 1983009808
    %v2327 = vunpack.c.0.s8 %v2326
    %v2328 = vlaneseq
    %v2329 = vshrl.u32 %v2328, 7
    %v2330 = vsub.s32 %v2327, %v2329
    %v2331 = vrot.slane %v2323, %v2330
    %v2333 = vunpack.c.l.s4 1983009808
    %v2334 = vunpack.c.0.s8 %v2333
    %v2335 = vlaneseq
    %v2336 = vshrl.u32 %v2335, 7
    %v2337 = vsub.s32 %v2334, %v2336
    %v2338 = vrot.slane %v2324, %v2337
    %v2339 = vcombine.low %v2107, %v2171
    %v2340 = vcombine.high %v2107, %v2171
    %v2342 = vunpack.c.l.s4 1983009808
    %v2343 = vunpack.c.0.s8 %v2342
    %v2344 = vlaneseq
    %v2345 = vshrl.u32 %v2344, 7
    %v2346 = vsub.s32 %v2343, %v2345
    %v2347 = vrot.slane %v2339, %v2346
    %v2349 = vunpack.c.l.s4 1983009808
    %v2350 = vunpack.c.0.s8 %v2349
    %v2351 = vlaneseq
    %v2352 = vshrl.u32 %v2351, 7
    %v2353 = vsub.s32 %v2350, %v2352
    %v2354 = vrot.slane %v2340, %v2353
    %v2355 = vcombine.low %v2203, %v2267
    %v2356 = vcombine.high %v2203, %v2267
    %v2358 = vunpack.c.l.s4 1983009808
    %v2359 = vunpack.c.0.s8 %v2358
    %v2360 = vlaneseq
    %v2361 = vshrl.u32 %v2360, 7
    %v2362 = vsub.s32 %v2359, %v2361
    %v2363 = vrot.slane %v2355, %v2362
    %v2365 = vunpack.c.l.s4 1983009808
    %v2366 = vunpack.c.0.s8 %v2365
    %v2367 = vlaneseq
    %v2368 = vshrl.u32 %v2367, 7
    %v2369 = vsub.s32 %v2366, %v2368
    %v2370 = vrot.slane %v2356, %v2369
    %v2371 = vcombine.low %v2235, %v2299
    %v2372 = vcombine.high %v2235, %v2299
    %v2374 = vunpack.c.l.s4 1983009808
    %v2375 = vunpack.c.0.s8 %v2374
    %v2376 = vlaneseq
    %v2377 = vshrl.u32 %v2376, 7
    %v2378 = vsub.s32 %v2375, %v2377
    %v2379 = vrot.slane %v2371, %v2378
    %v2381 = vunpack.c.l.s4 1983009808
    %v2382 = vunpack.c.0.s8 %v2381
    %v2383 = vlaneseq
    %v2384 = vshrl.u32 %v2383, 7
    %v2385 = vsub.s32 %v2382, %v2384
    %v2386 = vrot.slane %v2372, %v2385
    %v2387 = vcombine.low %v2331, %v2347
    %v2388 = vcombine.high %v2331, %v2347
    %v2390 = vunpack.c.l.s4 1934713408
    %v2391 = vunpack.c.0.s8 %v2390
    %v2392 = vlaneseq
    %v2393 = vshrl.u32 %v2392, 7
    %v2394 = vsub.s32 %v2391, %v2393
    %v2395 = vrot.slane %v2387, %v2394
    %v2397 = vunpack.c.l.s4 1934713408
    %v2398 = vunpack.c.0.s8 %v2397
    %v2399 = vlaneseq
    %v2400 = vshrl.u32 %v2399, 7
    %v2401 = vsub.s32 %v2398, %v2400
    %v2402 = vrot.slane %v2388, %v2401
    %v2403 = vcombine.low %v2338, %v2354
    %v2404 = vcombine.high %v2338, %v2354
    %v2406 = vunpack.c.l.s4 1934713408
    %v2407 = vunpack.c.0.s8 %v2406
    %v2408 = vlaneseq
    %v2409 = vshrl.u32 %v2408, 7
    %v2410 = vsub.s32 %v2407, %v2409
    %v2411 = vrot.slane %v2403, %v2410
    %v2413 = vunpack.c.l.s4 1934713408
    %v2414 = vunpack.c.0.s8 %v2413
    %v2415 = vlaneseq
    %v2416 = vshrl.u32 %v2415, 7
    %v2417 = vsub.s32 %v2414, %v2416
    %v2418 = vrot.slane %v2404, %v2417
    %v2419 = vcombine.low %v2363, %v2379
    %v2420 = vcombine.high %v2363, %v2379
    %v2422 = vunpack.c.l.s4 1934713408
    %v2423 = vunpack.c.0.s8 %v2422
    %v2424 = vlaneseq
    %v2425 = vshrl.u32 %v2424, 7
    %v2426 = vsub.s32 %v2423, %v2425
    %v2427 = vrot.slane %v2419, %v2426
    %v2429 = vunpack.c.l.s4 1934713408
    %v2430 = vunpack.c.0.s8 %v2429
    %v2431 = vlaneseq
    %v2432 = vshrl.u32 %v2431, 7
    %v2433 = vsub.s32 %v2430, %v2432
    %v2434 = vrot.slane %v2420, %v2433
    %v2435 = vcombine.low %v2370, %v2386
    %v2436 = vcombine.high %v2370, %v2386
    %v2438 = vunpack.c.l.s4 1934713408
    %v2439 = vunpack.c.0.s8 %v2438
    %v2440 = vlaneseq
    %v2441 = vshrl.u32 %v2440, 7
    %v2442 = vsub.s32 %v2439, %v2441
    %v2443 = vrot.slane %v2435, %v2442
    %v2445 = vunpack.c.l.s4 1934713408
    %v2446 = vunpack.c.0.s8 %v2445
    %v2447 = vlaneseq
    %v2448 = vshrl.u32 %v2447, 7
    %v2449 = vsub.s32 %v2446, %v2448
    %v2450 = vrot.slane %v2436, %v2449
    %v2451 = vcombine.low %v2395, %v2427
    %v2452 = vcombine.high %v2395, %v2427
    %v2453 = vcombine.low %v2402, %v2434
    %v2454 = vcombine.high %v2402, %v2434
    %v2455 = vcombine.low %v2411, %v2443
    %v2456 = vcombine.high %v2411, %v2443
    %v2457 = vcombine.low %v2418, %v2450
    %v2458 = vcombine.high %v2418, %v2450
    %v2459 = vcombine.low %v2091, %v2155
    %v2460 = vcombine.high %v2091, %v2155
    %v2462 = vunpack.c.l.s4 1983009808
    %v2463 = vunpack.c.0.s8 %v2462
    %v2464 = vlaneseq
    %v2465 = vshrl.u32 %v2464, 7
    %v2466 = vsub.s32 %v2463, %v2465
    %v2467 = vrot.slane %v2459, %v2466
    %v2469 = vunpack.c.l.s4 1983009808
    %v2470 = vunpack.c.0.s8 %v2469
    %v2471 = vlaneseq
    %v2472 = vshrl.u32 %v2471, 7
    %v2473 = vsub.s32 %v2470, %v2472
    %v2474 = vrot.slane %v2460, %v2473
    %v2475 = vcombine.low %v2123, %v2187
    %v2476 = vcombine.high %v2123, %v2187
    %v2478 = vunpack.c.l.s4 1983009808
    %v2479 = vunpack.c.0.s8 %v2478
    %v2480 = vlaneseq
    %v2481 = vshrl.u32 %v2480, 7
    %v2482 = vsub.s32 %v2479, %v2481
    %v2483 = vrot.slane %v2475, %v2482
    %v2485 = vunpack.c.l.s4 1983009808
    %v2486 = vunpack.c.0.s8 %v2485
    %v2487 = vlaneseq
    %v2488 = vshrl.u32 %v2487, 7
    %v2489 = vsub.s32 %v2486, %v2488
    %v2490 = vrot.slane %v2476, %v2489
    %v2491 = vcombine.low %v2219, %v2283
    %v2492 = vcombine.high %v2219, %v2283
    %v2494 = vunpack.c.l.s4 1983009808
    %v2495 = vunpack.c.0.s8 %v2494
    %v2496 = vlaneseq
    %v2497 = vshrl.u32 %v2496, 7
    %v2498 = vsub.s32 %v2495, %v2497
    %v2499 = vrot.slane %v2491, %v2498
    %v2501 = vunpack.c.l.s4 1983009808
    %v2502 = vunpack.c.0.s8 %v2501
    %v2503 = vlaneseq
    %v2504 = vshrl.u32 %v2503, 7
    %v2505 = vsub.s32 %v2502, %v2504
    %v2506 = vrot.slane %v2492, %v2505
    %v2507 = vcombine.low %v2251, %v2315
    %v2508 = vcombine.high %v2251, %v2315
    %v2510 = vunpack.c.l.s4 1983009808
    %v2511 = vunpack.c.0.s8 %v2510
    %v2512 = vlaneseq
    %v2513 = vshrl.u32 %v2512, 7
    %v2514 = vsub.s32 %v2511, %v2513
    %v2515 = vrot.slane %v2507, %v2514
    %v2517 = vunpack.c.l.s4 1983009808
    %v2518 = vunpack.c.0.s8 %v2517
    %v2519 = vlaneseq
    %v2520 = vshrl.u32 %v2519, 7
    %v2521 = vsub.s32 %v2518, %v2520
    %v2522 = vrot.slane %v2508, %v2521
    %v2523 = vcombine.low %v2467, %v2483
    %v2524 = vcombine.high %v2467, %v2483
    %v2526 = vunpack.c.l.s4 1934713408
    %v2527 = vunpack.c.0.s8 %v2526
    %v2528 = vlaneseq
    %v2529 = vshrl.u32 %v2528, 7
    %v2530 = vsub.s32 %v2527, %v2529
    %v2531 = vrot.slane %v2523, %v2530
    %v2533 = vunpack.c.l.s4 1934713408
    %v2534 = vunpack.c.0.s8 %v2533
    %v2535 = vlaneseq
    %v2536 = vshrl.u32 %v2535, 7
    %v2537 = vsub.s32 %v2534, %v2536
    %v2538 = vrot.slane %v2524, %v2537
    %v2539 = vcombine.low %v2474, %v2490
    %v2540 = vcombine.high %v2474, %v2490
    %v2542 = vunpack.c.l.s4 1934713408
    %v2543 = vunpack.c.0.s8 %v2542
    %v2544 = vlaneseq
    %v2545 = vshrl.u32 %v2544, 7
    %v2546 = vsub.s32 %v2543, %v2545
    %v2547 = vrot.slane %v2539, %v2546
    %v2549 = vunpack.c.l.s4 1934713408
    %v2550 = vunpack.c.0.s8 %v2549
    %v2551 = vlaneseq
    %v2552 = vshrl.u32 %v2551, 7
    %v2553 = vsub.s32 %v2550, %v2552
    %v2554 = vrot.slane %v2540, %v2553
    %v2555 = vcombine.low %v2499, %v2515
    %v2556 = vcombine.high %v2499, %v2515
    %v2558 = vunpack.c.l.s4 1934713408
    %v2559 = vunpack.c.0.s8 %v2558
    %v2560 = vlaneseq
    %v2561 = vshrl.u32 %v2560, 7
    %v2562 = vsub.s32 %v2559, %v2561
    %v2563 = vrot.slane %v2555, %v2562
    %v2565 = vunpack.c.l.s4 1934713408
    %v2566 = vunpack.c.0.s8 %v2565
    %v2567 = vlaneseq
    %v2568 = vshrl.u32 %v2567, 7
    %v2569 = vsub.s32 %v2566, %v2568
    %v2570 = vrot.slane %v2556, %v2569
    %v2571 = vcombine.low %v2506, %v2522
    %v2572 = vcombine.high %v2506, %v2522
    %v2574 = vunpack.c.l.s4 1934713408
    %v2575 = vunpack.c.0.s8 %v2574
    %v2576 = vlaneseq
    %v2577 = vshrl.u32 %v2576, 7
    %v2578 = vsub.s32 %v2575, %v2577
    %v2579 = vrot.slane %v2571, %v2578
    %v2581 = vunpack.c.l.s4 1934713408
    %v2582 = vunpack.c.0.s8 %v2581
    %v2583 = vlaneseq
    %v2584 = vshrl.u32 %v2583, 7
    %v2585 = vsub.s32 %v2582, %v2584
    %v2586 = vrot.slane %v2572, %v2585
    %v2587 = vcombine.low %v2531, %v2563
    %v2588 = vcombine.high %v2531, %v2563
    %v2589 = vcombine.low %v2538, %v2570
    %v2590 = vcombine.high %v2538, %v2570
    %v2591 = vcombine.low %v2547, %v2579
    %v2592 = vcombine.high %v2547, %v2579
    %v2593 = vcombine.low %v2554, %v2586
    %v2594 = vcombine.high %v2554, %v2586
    %v2597 = vpack.i.b16 %v2587, %v2451
    %v2599 = vshrl.u32 %v2451, 16
    %v2600 = vshrl.u32 %v2587, 16
    %v2601 = vpack.i.b16 %v2600, %v2599
    %v2605 = vpack.i.b16 %v2588, %v2452
    %v2607 = vshrl.u32 %v2452, 16
    %v2608 = vshrl.u32 %v2588, 16
    %v2609 = vpack.i.b16 %v2608, %v2607
    %v2613 = vpack.i.b16 %v2589, %v2453
    %v2615 = vshrl.u32 %v2453, 16
    %v2616 = vshrl.u32 %v2589, 16
    %v2617 = vpack.i.b16 %v2616, %v2615
    %v2621 = vpack.i.b16 %v2590, %v2454
    %v2623 = vshrl.u32 %v2454, 16
    %v2624 = vshrl.u32 %v2590, 16
    %v2625 = vpack.i.b16 %v2624, %v2623
    %v2629 = vpack.i.b16 %v2591, %v2455
    %v2631 = vshrl.u32 %v2455, 16
    %v2632 = vshrl.u32 %v2591, 16
    %v2633 = vpack.i.b16 %v2632, %v2631
    %v2637 = vpack.i.b16 %v2592, %v2456
    %v2639 = vshrl.u32 %v2456, 16
    %v2640 = vshrl.u32 %v2592, 16
    %v2641 = vpack.i.b16 %v2640, %v2639
    %v2645 = vpack.i.b16 %v2593, %v2457
    %v2647 = vshrl.u32 %v2457, 16
    %v2648 = vshrl.u32 %v2593, 16
    %v2649 = vpack.i.b16 %v2648, %v2647
    %v2653 = vpack.i.b16 %v2594, %v2458
    %v2655 = vshrl.u32 %v2458, 16
    %v2656 = vshrl.u32 %v2594, 16
    %v2657 = vpack.i.b16 %v2656, %v2655
    %2659 = vxpose.xlu0.c.b16.start [1/8] %v2597, 128
    %2660 = vxpose.xlu0.c.b16.cont [2/8] 0, 128
    %2661 = vxpose.xlu0.c.b16.cont [3/8] 0, 128
    %2662 = vxpose.xlu0.c.b16.cont [4/8] 0, 128
    %2663 = vxpose.xlu0.c.b16.cont [5/8] 0, 128
    %2664 = vxpose.xlu0.c.b16.cont [6/8] 0, 128
    %2665 = vxpose.xlu0.c.b16.cont [7/8] 0, 128
    %2666 = vxpose.xlu0.c.b16.end [8/8] 0, 128
    %v2667 = vpop.trf.xlu0
    %v2668 = vpop.trf.xlu0
    %v2669 = vpop.trf.xlu0
    %v2670 = vpop.trf.xlu0
    %v2671 = vpop.trf.xlu0
    %v2672 = vpop.trf.xlu0
    %v2673 = vpop.trf.xlu0
    %v2674 = vpop.trf.xlu0
    %2675 = vxpose.xlu0.c.b16.start [1/8] %v2601, 128
    %2676 = vxpose.xlu0.c.b16.cont [2/8] 0, 128
    %2677 = vxpose.xlu0.c.b16.cont [3/8] 0, 128
    %2678 = vxpose.xlu0.c.b16.cont [4/8] 0, 128
    %2679 = vxpose.xlu0.c.b16.cont [5/8] 0, 128
    %2680 = vxpose.xlu0.c.b16.cont [6/8] 0, 128
    %2681 = vxpose.xlu0.c.b16.cont [7/8] 0, 128
    %2682 = vxpose.xlu0.c.b16.end [8/8] 0, 128
    %v2683 = vpop.trf.xlu0
    %v2684 = vpop.trf.xlu0
    %v2685 = vpop.trf.xlu0
    %v2686 = vpop.trf.xlu0
    %v2687 = vpop.trf.xlu0
    %v2688 = vpop.trf.xlu0
    %v2689 = vpop.trf.xlu0
    %v2690 = vpop.trf.xlu0
    %2691 = vxpose.xlu0.c.b16.start [1/8] %v2605, 128
    %2692 = vxpose.xlu0.c.b16.cont [2/8] 0, 128
    %2693 = vxpose.xlu0.c.b16.cont [3/8] 0, 128
    %2694 = vxpose.xlu0.c.b16.cont [4/8] 0, 128
    %2695 = vxpose.xlu0.c.b16.cont [5/8] 0, 128
    %2696 = vxpose.xlu0.c.b16.cont [6/8] 0, 128
    %2697 = vxpose.xlu0.c.b16.cont [7/8] 0, 128
    %2698 = vxpose.xlu0.c.b16.end [8/8] 0, 128
    %v2699 = vpop.trf.xlu0
    %v2700 = vpop.trf.xlu0
    %v2701 = vpop.trf.xlu0
    %v2702 = vpop.trf.xlu0
    %v2703 = vpop.trf.xlu0
    %v2704 = vpop.trf.xlu0
    %v2705 = vpop.trf.xlu0
    %v2706 = vpop.trf.xlu0
    %2707 = vxpose.xlu0.c.b16.start [1/8] %v2609, 128
    %2708 = vxpose.xlu0.c.b16.cont [2/8] 0, 128
    %2709 = vxpose.xlu0.c.b16.cont [3/8] 0, 128
    %2710 = vxpose.xlu0.c.b16.cont [4/8] 0, 128
    %2711 = vxpose.xlu0.c.b16.cont [5/8] 0, 128
    %2712 = vxpose.xlu0.c.b16.cont [6/8] 0, 128
    %2713 = vxpose.xlu0.c.b16.cont [7/8] 0, 128
    %2714 = vxpose.xlu0.c.b16.end [8/8] 0, 128
    %v2715 = vpop.trf.xlu0
    %v2716 = vpop.trf.xlu0
    %v2717 = vpop.trf.xlu0
    %v2718 = vpop.trf.xlu0
    %v2719 = vpop.trf.xlu0
    %v2720 = vpop.trf.xlu0
    %v2721 = vpop.trf.xlu0
    %v2722 = vpop.trf.xlu0
    %2723 = vxpose.xlu0.c.b16.start [1/8] %v2613, 128
    %2724 = vxpose.xlu0.c.b16.cont [2/8] 0, 128
    %2725 = vxpose.xlu0.c.b16.cont [3/8] 0, 128
    %2726 = vxpose.xlu0.c.b16.cont [4/8] 0, 128
    %2727 = vxpose.xlu0.c.b16.cont [5/8] 0, 128
    %2728 = vxpose.xlu0.c.b16.cont [6/8] 0, 128
    %2729 = vxpose.xlu0.c.b16.cont [7/8] 0, 128
    %2730 = vxpose.xlu0.c.b16.end [8/8] 0, 128
    %v2731 = vpop.trf.xlu0
    %v2732 = vpop.trf.xlu0
    %v2733 = vpop.trf.xlu0
    %v2734 = vpop.trf.xlu0
    %v2735 = vpop.trf.xlu0
    %v2736 = vpop.trf.xlu0
    %v2737 = vpop.trf.xlu0
    %v2738 = vpop.trf.xlu0
    %2739 = vxpose.xlu0.c.b16.start [1/8] %v2617, 128
    %2740 = vxpose.xlu0.c.b16.cont [2/8] 0, 128
    %2741 = vxpose.xlu0.c.b16.cont [3/8] 0, 128
    %2742 = vxpose.xlu0.c.b16.cont [4/8] 0, 128
    %2743 = vxpose.xlu0.c.b16.cont [5/8] 0, 128
    %2744 = vxpose.xlu0.c.b16.cont [6/8] 0, 128
    %2745 = vxpose.xlu0.c.b16.cont [7/8] 0, 128
    %2746 = vxpose.xlu0.c.b16.end [8/8] 0, 128
    %v2747 = vpop.trf.xlu0
    %v2748 = vpop.trf.xlu0
    %v2749 = vpop.trf.xlu0
    %v2750 = vpop.trf.xlu0
    %v2751 = vpop.trf.xlu0
    %v2752 = vpop.trf.xlu0
    %v2753 = vpop.trf.xlu0
    %v2754 = vpop.trf.xlu0
    %2755 = vxpose.xlu0.c.b16.start [1/8] %v2621, 128
    %2756 = vxpose.xlu0.c.b16.cont [2/8] 0, 128
    %2757 = vxpose.xlu0.c.b16.cont [3/8] 0, 128
    %2758 = vxpose.xlu0.c.b16.cont [4/8] 0, 128
    %2759 = vxpose.xlu0.c.b16.cont [5/8] 0, 128
    %2760 = vxpose.xlu0.c.b16.cont [6/8] 0, 128
    %2761 = vxpose.xlu0.c.b16.cont [7/8] 0, 128
    %2762 = vxpose.xlu0.c.b16.end [8/8] 0, 128
    %v2763 = vpop.trf.xlu0
    %v2764 = vpop.trf.xlu0
    %v2765 = vpop.trf.xlu0
    %v2766 = vpop.trf.xlu0
    %v2767 = vpop.trf.xlu0
    %v2768 = vpop.trf.xlu0
    %v2769 = vpop.trf.xlu0
    %v2770 = vpop.trf.xlu0
    %2771 = vxpose.xlu0.c.b16.start [1/8] %v2625, 128
    %2772 = vxpose.xlu0.c.b16.cont [2/8] 0, 128
    %2773 = vxpose.xlu0.c.b16.cont [3/8] 0, 128
    %2774 = vxpose.xlu0.c.b16.cont [4/8] 0, 128
    %2775 = vxpose.xlu0.c.b16.cont [5/8] 0, 128
    %2776 = vxpose.xlu0.c.b16.cont [6/8] 0, 128
    %2777 = vxpose.xlu0.c.b16.cont [7/8] 0, 128
    %2778 = vxpose.xlu0.c.b16.end [8/8] 0, 128
    %v2779 = vpop.trf.xlu0
    %v2780 = vpop.trf.xlu0
    %v2781 = vpop.trf.xlu0
    %v2782 = vpop.trf.xlu0
    %v2783 = vpop.trf.xlu0
    %v2784 = vpop.trf.xlu0
    %v2785 = vpop.trf.xlu0
    %v2786 = vpop.trf.xlu0
    %2787 = vxpose.xlu0.c.b16.start [1/8] %v2629, 128
    %2788 = vxpose.xlu0.c.b16.cont [2/8] 0, 128
    %2789 = vxpose.xlu0.c.b16.cont [3/8] 0, 128
    %2790 = vxpose.xlu0.c.b16.cont [4/8] 0, 128
    %2791 = vxpose.xlu0.c.b16.cont [5/8] 0, 128
    %2792 = vxpose.xlu0.c.b16.cont [6/8] 0, 128
    %2793 = vxpose.xlu0.c.b16.cont [7/8] 0, 128
    %2794 = vxpose.xlu0.c.b16.end [8/8] 0, 128
    %v2795 = vpop.trf.xlu0
    %v2796 = vpop.trf.xlu0
    %v2797 = vpop.trf.xlu0
    %v2798 = vpop.trf.xlu0
    %v2799 = vpop.trf.xlu0
    %v2800 = vpop.trf.xlu0
    %v2801 = vpop.trf.xlu0
    %v2802 = vpop.trf.xlu0
    %2803 = vxpose.xlu0.c.b16.start [1/8] %v2633, 128
    %2804 = vxpose.xlu0.c.b16.cont [2/8] 0, 128
    %2805 = vxpose.xlu0.c.b16.cont [3/8] 0, 128
    %2806 = vxpose.xlu0.c.b16.cont [4/8] 0, 128
    %2807 = vxpose.xlu0.c.b16.cont [5/8] 0, 128
    %2808 = vxpose.xlu0.c.b16.cont [6/8] 0, 128
    %2809 = vxpose.xlu0.c.b16.cont [7/8] 0, 128
    %2810 = vxpose.xlu0.c.b16.end [8/8] 0, 128
    %v2811 = vpop.trf.xlu0
    %v2812 = vpop.trf.xlu0
    %v2813 = vpop.trf.xlu0
    %v2814 = vpop.trf.xlu0
    %v2815 = vpop.trf.xlu0
    %v2816 = vpop.trf.xlu0
    %v2817 = vpop.trf.xlu0
    %v2818 = vpop.trf.xlu0
    %2819 = vxpose.xlu0.c.b16.start [1/8] %v2637, 128
    %2820 = vxpose.xlu0.c.b16.cont [2/8] 0, 128
    %2821 = vxpose.xlu0.c.b16.cont [3/8] 0, 128
    %2822 = vxpose.xlu0.c.b16.cont [4/8] 0, 128
    %2823 = vxpose.xlu0.c.b16.cont [5/8] 0, 128
    %2824 = vxpose.xlu0.c.b16.cont [6/8] 0, 128
    %2825 = vxpose.xlu0.c.b16.cont [7/8] 0, 128
    %2826 = vxpose.xlu0.c.b16.end [8/8] 0, 128
    %v2827 = vpop.trf.xlu0
    %v2828 = vpop.trf.xlu0
    %v2829 = vpop.trf.xlu0
    %v2830 = vpop.trf.xlu0
    %v2831 = vpop.trf.xlu0
    %v2832 = vpop.trf.xlu0
    %v2833 = vpop.trf.xlu0
    %v2834 = vpop.trf.xlu0
    %2835 = vxpose.xlu0.c.b16.start [1/8] %v2641, 128
    %2836 = vxpose.xlu0.c.b16.cont [2/8] 0, 128
    %2837 = vxpose.xlu0.c.b16.cont [3/8] 0, 128
    %2838 = vxpose.xlu0.c.b16.cont [4/8] 0, 128
    %2839 = vxpose.xlu0.c.b16.cont [5/8] 0, 128
    %2840 = vxpose.xlu0.c.b16.cont [6/8] 0, 128
    %2841 = vxpose.xlu0.c.b16.cont [7/8] 0, 128
    %2842 = vxpose.xlu0.c.b16.end [8/8] 0, 128
    %v2843 = vpop.trf.xlu0
    %v2844 = vpop.trf.xlu0
    %v2845 = vpop.trf.xlu0
    %v2846 = vpop.trf.xlu0
    %v2847 = vpop.trf.xlu0
    %v2848 = vpop.trf.xlu0
    %v2849 = vpop.trf.xlu0
    %v2850 = vpop.trf.xlu0
    %2851 = vxpose.xlu0.c.b16.start [1/8] %v2645, 128
    %2852 = vxpose.xlu0.c.b16.cont [2/8] 0, 128
    %2853 = vxpose.xlu0.c.b16.cont [3/8] 0, 128
    %2854 = vxpose.xlu0.c.b16.cont [4/8] 0, 128
    %2855 = vxpose.xlu0.c.b16.cont [5/8] 0, 128
    %2856 = vxpose.xlu0.c.b16.cont [6/8] 0, 128
    %2857 = vxpose.xlu0.c.b16.cont [7/8] 0, 128
    %2858 = vxpose.xlu0.c.b16.end [8/8] 0, 128
    %v2859 = vpop.trf.xlu0
    %v2860 = vpop.trf.xlu0
    %v2861 = vpop.trf.xlu0
    %v2862 = vpop.trf.xlu0
    %v2863 = vpop.trf.xlu0
    %v2864 = vpop.trf.xlu0
    %v2865 = vpop.trf.xlu0
    %v2866 = vpop.trf.xlu0
    %2867 = vxpose.xlu0.c.b16.start [1/8] %v2649, 128
    %2868 = vxpose.xlu0.c.b16.cont [2/8] 0, 128
    %2869 = vxpose.xlu0.c.b16.cont [3/8] 0, 128
    %2870 = vxpose.xlu0.c.b16.cont [4/8] 0, 128
    %2871 = vxpose.xlu0.c.b16.cont [5/8] 0, 128
    %2872 = vxpose.xlu0.c.b16.cont [6/8] 0, 128
    %2873 = vxpose.xlu0.c.b16.cont [7/8] 0, 128
    %2874 = vxpose.xlu0.c.b16.end [8/8] 0, 128
    %v2875 = vpop.trf.xlu0
    %v2876 = vpop.trf.xlu0
    %v2877 = vpop.trf.xlu0
    %v2878 = vpop.trf.xlu0
    %v2879 = vpop.trf.xlu0
    %v2880 = vpop.trf.xlu0
    %v2881 = vpop.trf.xlu0
    %v2882 = vpop.trf.xlu0
    %2883 = vxpose.xlu0.c.b16.start [1/8] %v2653, 128
    %2884 = vxpose.xlu0.c.b16.cont [2/8] 0, 128
    %2885 = vxpose.xlu0.c.b16.cont [3/8] 0, 128
    %2886 = vxpose.xlu0.c.b16.cont [4/8] 0, 128
    %2887 = vxpose.xlu0.c.b16.cont [5/8] 0, 128
    %2888 = vxpose.xlu0.c.b16.cont [6/8] 0, 128
    %2889 = vxpose.xlu0.c.b16.cont [7/8] 0, 128
    %2890 = vxpose.xlu0.c.b16.end [8/8] 0, 128
    %v2891 = vpop.trf.xlu0
    %v2892 = vpop.trf.xlu0
    %v2893 = vpop.trf.xlu0
    %v2894 = vpop.trf.xlu0
    %v2895 = vpop.trf.xlu0
    %v2896 = vpop.trf.xlu0
    %v2897 = vpop.trf.xlu0
    %v2898 = vpop.trf.xlu0
    %2899 = vxpose.xlu0.c.b16.start [1/8] %v2657, 128
    %2900 = vxpose.xlu0.c.b16.cont [2/8] 0, 128
    %2901 = vxpose.xlu0.c.b16.cont [3/8] 0, 128
    %2902 = vxpose.xlu0.c.b16.cont [4/8] 0, 128
    %2903 = vxpose.xlu0.c.b16.cont [5/8] 0, 128
    %2904 = vxpose.xlu0.c.b16.cont [6/8] 0, 128
    %2905 = vxpose.xlu0.c.b16.cont [7/8] 0, 128
    %2906 = vxpose.xlu0.c.b16.end [8/8] 0, 128
    %v2907 = vpop.trf.xlu0
    %v2908 = vpop.trf.xlu0
    %v2909 = vpop.trf.xlu0
    %v2910 = vpop.trf.xlu0
    %v2911 = vpop.trf.xlu0
    %v2912 = vpop.trf.xlu0
    %v2913 = vpop.trf.xlu0
    %v2914 = vpop.trf.xlu0
    %v2915 = vcombine.low %v2667, %v2731
    %v2917 = vunpack.c.l.s4 1983009808
    %v2918 = vunpack.c.0.s8 %v2917
    %v2919 = vlaneseq
    %v2920 = vshrl.u32 %v2919, 7
    %v2921 = vsub.s32 %v2918, %v2920
    %v2922 = vrot.slane %v2915, %v2921
    %v2923 = vcombine.low %v2699, %v2763
    %v2925 = vunpack.c.l.s4 1983009808
    %v2926 = vunpack.c.0.s8 %v2925
    %v2927 = vlaneseq
    %v2928 = vshrl.u32 %v2927, 7
    %v2929 = vsub.s32 %v2926, %v2928
    %v2930 = vrot.slane %v2923, %v2929
    %v2931 = vcombine.low %v2795, %v2859
    %v2933 = vunpack.c.l.s4 1983009808
    %v2934 = vunpack.c.0.s8 %v2933
    %v2935 = vlaneseq
    %v2936 = vshrl.u32 %v2935, 7
    %v2937 = vsub.s32 %v2934, %v2936
    %v2938 = vrot.slane %v2931, %v2937
    %v2939 = vcombine.low %v2827, %v2891
    %v2941 = vunpack.c.l.s4 1983009808
    %v2942 = vunpack.c.0.s8 %v2941
    %v2943 = vlaneseq
    %v2944 = vshrl.u32 %v2943, 7
    %v2945 = vsub.s32 %v2942, %v2944
    %v2946 = vrot.slane %v2939, %v2945
    %v2947 = vcombine.low %v2922, %v2930
    %v2949 = vunpack.c.l.s4 1934713408
    %v2950 = vunpack.c.0.s8 %v2949
    %v2951 = vlaneseq
    %v2952 = vshrl.u32 %v2951, 7
    %v2953 = vsub.s32 %v2950, %v2952
    %v2954 = vrot.slane %v2947, %v2953
    %v2955 = vcombine.low %v2938, %v2946
    %v2957 = vunpack.c.l.s4 1934713408
    %v2958 = vunpack.c.0.s8 %v2957
    %v2959 = vlaneseq
    %v2960 = vshrl.u32 %v2959, 7
    %v2961 = vsub.s32 %v2958, %v2960
    %v2962 = vrot.slane %v2955, %v2961
    %v2963 = vcombine.low %v2954, %v2962
    %v2964 = vcombine.high %v2954, %v2962
    %v2965 = vcombine.low %v2683, %v2747
    %v2967 = vunpack.c.l.s4 1983009808
    %v2968 = vunpack.c.0.s8 %v2967
    %v2969 = vlaneseq
    %v2970 = vshrl.u32 %v2969, 7
    %v2971 = vsub.s32 %v2968, %v2970
    %v2972 = vrot.slane %v2965, %v2971
    %v2973 = vcombine.low %v2715, %v2779
    %v2975 = vunpack.c.l.s4 1983009808
    %v2976 = vunpack.c.0.s8 %v2975
    %v2977 = vlaneseq
    %v2978 = vshrl.u32 %v2977, 7
    %v2979 = vsub.s32 %v2976, %v2978
    %v2980 = vrot.slane %v2973, %v2979
    %v2981 = vcombine.low %v2811, %v2875
    %v2983 = vunpack.c.l.s4 1983009808
    %v2984 = vunpack.c.0.s8 %v2983
    %v2985 = vlaneseq
    %v2986 = vshrl.u32 %v2985, 7
    %v2987 = vsub.s32 %v2984, %v2986
    %v2988 = vrot.slane %v2981, %v2987
    %v2989 = vcombine.low %v2843, %v2907
    %v2991 = vunpack.c.l.s4 1983009808
    %v2992 = vunpack.c.0.s8 %v2991
    %v2993 = vlaneseq
    %v2994 = vshrl.u32 %v2993, 7
    %v2995 = vsub.s32 %v2992, %v2994
    %v2996 = vrot.slane %v2989, %v2995
    %v2997 = vcombine.low %v2972, %v2980
    %v2999 = vunpack.c.l.s4 1934713408
    %v3000 = vunpack.c.0.s8 %v2999
    %v3001 = vlaneseq
    %v3002 = vshrl.u32 %v3001, 7
    %v3003 = vsub.s32 %v3000, %v3002
    %v3004 = vrot.slane %v2997, %v3003
    %v3005 = vcombine.low %v2988, %v2996
    %v3007 = vunpack.c.l.s4 1934713408
    %v3008 = vunpack.c.0.s8 %v3007
    %v3009 = vlaneseq
    %v3010 = vshrl.u32 %v3009, 7
    %v3011 = vsub.s32 %v3008, %v3010
    %v3012 = vrot.slane %v3005, %v3011
    %v3013 = vcombine.low %v3004, %v3012
    %v3014 = vcombine.high %v3004, %v3012
    %v3017 = vpack.i.b16 %v3013, %v2963
    %v3018 = vshrl.u32 %v2963, 16
    %v3019 = vshrl.u32 %v3013, 16
    %v3020 = vpack.i.b16 %v3019, %v3018
    %v3023 = vpack.i.b16 %v3014, %v2964
    %v3024 = vshrl.u32 %v2964, 16
    %v3025 = vshrl.u32 %v3014, 16
    %v3026 = vpack.i.b16 %v3025, %v3024
    %v3028 = vsel %vm1798, %v3017, 0
    %v3031 = vsel %vm1798, %v2063, 0
    %3033 = vmatprep.subr.bf16.mxu0 0
    %3034 = vmatpush1.bf16.xpose.msra.mxu0 %v3031
    %3035 = vmatprep.subr.bf16.mxu0 0
    %3036 = vmatpush1.bf16.xpose.msra.mxu0 0
    %3037 = vmatprep.subr.bf16.mxu0 0
    %3038 = vmatpush1.bf16.xpose.msra.mxu0 0
    %3039 = vmatprep.subr.bf16.mxu0 0
    %3040 = vmatpush1.bf16.xpose.msra.mxu0 0
    %3041 = vmatprep.subr.bf16.mxu0 0
    %3042 = vmatpush1.bf16.xpose.msra.mxu0 0
    %3043 = vmatprep.subr.bf16.mxu0 0
    %3044 = vmatpush1.bf16.xpose.msra.mxu0 0
    %3045 = vmatprep.subr.bf16.mxu0 0
    %3046 = vmatpush1.bf16.xpose.msra.mxu0 0
    %3047 = vmatprep.subr.bf16.mxu0 0
    %3048 = vmatpush1.bf16.xpose.msra.mxu0 0
    %3049 = vmatprep.subr.bf16.mxu0 0
    %3050 = vmatpush1.bf16.xpose.msra.mxu0 0
    %3051 = vmatprep.subr.bf16.mxu0 0
    %3052 = vmatpush1.bf16.xpose.msra.mxu0 0
    %3053 = vmatprep.subr.bf16.mxu0 0
    %3054 = vmatpush1.bf16.xpose.msra.mxu0 0
    %3055 = vmatprep.subr.bf16.mxu0 0
    %3056 = vmatpush1.bf16.xpose.msra.mxu0 0
    %3057 = vmatprep.subr.bf16.mxu0 0
    %3058 = vmatpush1.bf16.xpose.msra.mxu0 0
    %3059 = vmatprep.subr.bf16.mxu0 0
    %3060 = vmatpush1.bf16.xpose.msra.mxu0 0
    %3061 = vmatprep.subr.bf16.mxu0 0
    %3062 = vmatpush1.bf16.xpose.msra.mxu0 0
    %3063 = vmatprep.subr.bf16.mxu0 0
    %3064 = vmatpush1.bf16.xpose.msra.mxu0 0
    %3065 = vmatprep.mubr.bf16.mxu0 0
    %3066 = vmatmul.mubr.bf16.gmra.mrb[0].mxu0 %v3028
    %v3067 = vpop.f32.mrb[0].mxu0
    %v3068 = vadd.f32 0.0, %v3067
    %v3069 = vpop.f32.mrb[0].mxu0
    %v3070 = vpop.f32.mrb[0].mxu0
    %v3071 = vadd.f32 0.0, %v3070
    %v3072 = vpop.f32.mrb[0].mxu0
    %3073 = vdwg.mxu0
    %v3075 = vsel %vm1798, %v3020, 0
    %v3078 = vsel %vm1798, %v2064, 0
    %3080 = vmatprep.subr.bf16.mxu0 0
    %3081 = vmatpush1.bf16.xpose.msra.mxu0 %v3078
    %3082 = vmatprep.subr.bf16.mxu0 0
    %3083 = vmatpush1.bf16.xpose.msra.mxu0 0
    %3084 = vmatprep.subr.bf16.mxu0 0
    %3085 = vmatpush1.bf16.xpose.msra.mxu0 0
    %3086 = vmatprep.subr.bf16.mxu0 0
    %3087 = vmatpush1.bf16.xpose.msra.mxu0 0
    %3088 = vmatprep.subr.bf16.mxu0 0
    %3089 = vmatpush1.bf16.xpose.msra.mxu0 0
    %3090 = vmatprep.subr.bf16.mxu0 0
    %3091 = vmatpush1.bf16.xpose.msra.mxu0 0
    %3092 = vmatprep.subr.bf16.mxu0 0
    %3093 = vmatpush1.bf16.xpose.msra.mxu0 0
    %3094 = vmatprep.subr.bf16.mxu0 0
    %3095 = vmatpush1.bf16.xpose.msra.mxu0 0
    %3096 = vmatprep.subr.bf16.mxu0 0
    %3097 = vmatpush1.bf16.xpose.msra.mxu0 0
    %3098 = vmatprep.subr.bf16.mxu0 0
    %3099 = vmatpush1.bf16.xpose.msra.mxu0 0
    %3100 = vmatprep.subr.bf16.mxu0 0
    %3101 = vmatpush1.bf16.xpose.msra.mxu0 0
    %3102 = vmatprep.subr.bf16.mxu0 0
    %3103 = vmatpush1.bf16.xpose.msra.mxu0 0
    %3104 = vmatprep.subr.bf16.mxu0 0
    %3105 = vmatpush1.bf16.xpose.msra.mxu0 0
    %3106 = vmatprep.subr.bf16.mxu0 0
    %3107 = vmatpush1.bf16.xpose.msra.mxu0 0
    %3108 = vmatprep.subr.bf16.mxu0 0
    %3109 = vmatpush1.bf16.xpose.msra.mxu0 0
    %3110 = vmatprep.subr.bf16.mxu0 0
    %3111 = vmatpush1.bf16.xpose.msra.mxu0 0
    %3112 = vmatprep.mubr.bf16.mxu0 0
    %3113 = vmatmul.mubr.bf16.gmra.mrb[0].mxu0 %v3075
    %v3114 = vpop.f32.mrb[0].mxu0
    %v3115 = vadd.f32 0.0, %v3114
    %v3116 = vpop.f32.mrb[0].mxu0
    %v3117 = vpop.f32.mrb[0].mxu0
    %v3118 = vadd.f32 0.0, %v3117
    %v3119 = vpop.f32.mrb[0].mxu0
    %3120 = vdwg.mxu0
    %v3122 = vsel %vm1798, %v3023, 0
    %v3125 = vsel %vm1798, %v2065, 0
    %3127 = vmatprep.subr.bf16.mxu0 0
    %3128 = vmatpush1.bf16.xpose.msra.mxu0 %v3125
    %3129 = vmatprep.subr.bf16.mxu0 0
    %3130 = vmatpush1.bf16.xpose.msra.mxu0 0
    %3131 = vmatprep.subr.bf16.mxu0 0
    %3132 = vmatpush1.bf16.xpose.msra.mxu0 0
    %3133 = vmatprep.subr.bf16.mxu0 0
    %3134 = vmatpush1.bf16.xpose.msra.mxu0 0
    %3135 = vmatprep.subr.bf16.mxu0 0
    %3136 = vmatpush1.bf16.xpose.msra.mxu0 0
    %3137 = vmatprep.subr.bf16.mxu0 0
    %3138 = vmatpush1.bf16.xpose.msra.mxu0 0
    %3139 = vmatprep.subr.bf16.mxu0 0
    %3140 = vmatpush1.bf16.xpose.msra.mxu0 0
    %3141 = vmatprep.subr.bf16.mxu0 0
    %3142 = vmatpush1.bf16.xpose.msra.mxu0 0
    %3143 = vmatprep.subr.bf16.mxu0 0
    %3144 = vmatpush1.bf16.xpose.msra.mxu0 0
    %3145 = vmatprep.subr.bf16.mxu0 0
    %3146 = vmatpush1.bf16.xpose.msra.mxu0 0
    %3147 = vmatprep.subr.bf16.mxu0 0
    %3148 = vmatpush1.bf16.xpose.msra.mxu0 0
    %3149 = vmatprep.subr.bf16.mxu0 0
    %3150 = vmatpush1.bf16.xpose.msra.mxu0 0
    %3151 = vmatprep.subr.bf16.mxu0 0
    %3152 = vmatpush1.bf16.xpose.msra.mxu0 0
    %3153 = vmatprep.subr.bf16.mxu0 0
    %3154 = vmatpush1.bf16.xpose.msra.mxu0 0
    %3155 = vmatprep.subr.bf16.mxu0 0
    %3156 = vmatpush1.bf16.xpose.msra.mxu0 0
    %3157 = vmatprep.subr.bf16.mxu0 0
    %3158 = vmatpush1.bf16.xpose.msra.mxu0 0
    %3159 = vmatprep.mubr.bf16.mxu0 0
    %3160 = vmatmul.mubr.bf16.gmra.mrb[0].mxu0 %v3122
    %v3161 = vpop.f32.mrb[0].mxu0
    %v3162 = vadd.f32 0.0, %v3161
    %v3163 = vpop.f32.mrb[0].mxu0
    %v3164 = vpop.f32.mrb[0].mxu0
    %v3165 = vadd.f32 0.0, %v3164
    %v3166 = vpop.f32.mrb[0].mxu0
    %3167 = vdwg.mxu0
    %v3169 = vsel %vm1798, %v3026, 0
    %v3172 = vsel %vm1798, %v2066, 0
    %3174 = vmatprep.subr.bf16.mxu0 0
    %3175 = vmatpush1.bf16.xpose.msra.mxu0 %v3172
    %3176 = vmatprep.subr.bf16.mxu0 0
    %3177 = vmatpush1.bf16.xpose.msra.mxu0 0
    %3178 = vmatprep.subr.bf16.mxu0 0
    %3179 = vmatpush1.bf16.xpose.msra.mxu0 0
    %3180 = vmatprep.subr.bf16.mxu0 0
    %3181 = vmatpush1.bf16.xpose.msra.mxu0 0
    %3182 = vmatprep.subr.bf16.mxu0 0
    %3183 = vmatpush1.bf16.xpose.msra.mxu0 0
    %3184 = vmatprep.subr.bf16.mxu0 0
    %3185 = vmatpush1.bf16.xpose.msra.mxu0 0
    %3186 = vmatprep.subr.bf16.mxu0 0
    %3187 = vmatpush1.bf16.xpose.msra.mxu0 0
    %3188 = vmatprep.subr.bf16.mxu0 0
    %3189 = vmatpush1.bf16.xpose.msra.mxu0 0
    %3190 = vmatprep.subr.bf16.mxu0 0
    %3191 = vmatpush1.bf16.xpose.msra.mxu0 0
    %3192 = vmatprep.subr.bf16.mxu0 0
    %3193 = vmatpush1.bf16.xpose.msra.mxu0 0
    %3194 = vmatprep.subr.bf16.mxu0 0
    %3195 = vmatpush1.bf16.xpose.msra.mxu0 0
    %3196 = vmatprep.subr.bf16.mxu0 0
    %3197 = vmatpush1.bf16.xpose.msra.mxu0 0
    %3198 = vmatprep.subr.bf16.mxu0 0
    %3199 = vmatpush1.bf16.xpose.msra.mxu0 0
    %3200 = vmatprep.subr.bf16.mxu0 0
    %3201 = vmatpush1.bf16.xpose.msra.mxu0 0
    %3202 = vmatprep.subr.bf16.mxu0 0
    %3203 = vmatpush1.bf16.xpose.msra.mxu0 0
    %3204 = vmatprep.subr.bf16.mxu0 0
    %3205 = vmatpush1.bf16.xpose.msra.mxu0 0
    %3206 = vmatprep.mubr.bf16.mxu0 0
    %3207 = vmatmul.mubr.bf16.gmra.mrb[0].mxu0 %v3169
    %v3208 = vpop.f32.mrb[0].mxu0
    %v3209 = vadd.f32 0.0, %v3208
    %v3210 = vpop.f32.mrb[0].mxu0
    %v3211 = vpop.f32.mrb[0].mxu0
    %v3212 = vadd.f32 0.0, %v3211
    %v3213 = vpop.f32.mrb[0].mxu0
    %3214 = vdwg.mxu0
    %3215 = vxpose.xlu0.b32.start [1/16] %v3068, 128
    %3216 = vxpose.xlu0.b32.cont [2/16] %v3071, 128
    %3217 = vxpose.xlu0.b32.cont [3/16] 0.0, 128
    %3218 = vxpose.xlu0.b32.cont [4/16] 0.0, 128
    %3219 = vxpose.xlu0.b32.cont [5/16] 0.0, 128
    %3220 = vxpose.xlu0.b32.cont [6/16] 0.0, 128
    %3221 = vxpose.xlu0.b32.cont [7/16] 0.0, 128
    %3222 = vxpose.xlu0.b32.cont [8/16] 0.0, 128
    %3223 = vxpose.xlu0.b32.cont [9/16] 0.0, 128
    %3224 = vxpose.xlu0.b32.cont [10/16] 0.0, 128
    %3225 = vxpose.xlu0.b32.cont [11/16] 0.0, 128
    %3226 = vxpose.xlu0.b32.cont [12/16] 0.0, 128
    %3227 = vxpose.xlu0.b32.cont [13/16] 0.0, 128
    %3228 = vxpose.xlu0.b32.cont [14/16] 0.0, 128
    %3229 = vxpose.xlu0.b32.cont [15/16] 0.0, 128
    %3230 = vxpose.xlu0.b32.end [16/16] 0.0, 128
    %v3231 = vpop.trf.xlu0
    %v3232 = vpop.trf.xlu0
    %v3233 = vpop.trf.xlu0
    %v3234 = vpop.trf.xlu0
    %v3235 = vpop.trf.xlu0
    %v3236 = vpop.trf.xlu0
    %v3237 = vpop.trf.xlu0
    %v3238 = vpop.trf.xlu0
    %v3239 = vpop.trf.xlu0
    %v3240 = vpop.trf.xlu0
    %v3241 = vpop.trf.xlu0
    %v3242 = vpop.trf.xlu0
    %v3243 = vpop.trf.xlu0
    %v3244 = vpop.trf.xlu0
    %v3245 = vpop.trf.xlu0
    %v3246 = vpop.trf.xlu0
    %3247 = vxpose.xlu0.b32.start [1/16] %v3115, 128
    %3248 = vxpose.xlu0.b32.cont [2/16] %v3118, 128
    %3249 = vxpose.xlu0.b32.cont [3/16] 0.0, 128
    %3250 = vxpose.xlu0.b32.cont [4/16] 0.0, 128
    %3251 = vxpose.xlu0.b32.cont [5/16] 0.0, 128
    %3252 = vxpose.xlu0.b32.cont [6/16] 0.0, 128
    %3253 = vxpose.xlu0.b32.cont [7/16] 0.0, 128
    %3254 = vxpose.xlu0.b32.cont [8/16] 0.0, 128
    %3255 = vxpose.xlu0.b32.cont [9/16] 0.0, 128
    %3256 = vxpose.xlu0.b32.cont [10/16] 0.0, 128
    %3257 = vxpose.xlu0.b32.cont [11/16] 0.0, 128
    %3258 = vxpose.xlu0.b32.cont [12/16] 0.0, 128
    %3259 = vxpose.xlu0.b32.cont [13/16] 0.0, 128
    %3260 = vxpose.xlu0.b32.cont [14/16] 0.0, 128
    %3261 = vxpose.xlu0.b32.cont [15/16] 0.0, 128
    %3262 = vxpose.xlu0.b32.end [16/16] 0.0, 128
    %v3263 = vpop.trf.xlu0
    %v3264 = vpop.trf.xlu0
    %v3265 = vpop.trf.xlu0
    %v3266 = vpop.trf.xlu0
    %v3267 = vpop.trf.xlu0
    %v3268 = vpop.trf.xlu0
    %v3269 = vpop.trf.xlu0
    %v3270 = vpop.trf.xlu0
    %v3271 = vpop.trf.xlu0
    %v3272 = vpop.trf.xlu0
    %v3273 = vpop.trf.xlu0
    %v3274 = vpop.trf.xlu0
    %v3275 = vpop.trf.xlu0
    %v3276 = vpop.trf.xlu0
    %v3277 = vpop.trf.xlu0
    %v3278 = vpop.trf.xlu0
    %3279 = vxpose.xlu0.b32.start [1/16] %v3162, 128
    %3280 = vxpose.xlu0.b32.cont [2/16] %v3165, 128
    %3281 = vxpose.xlu0.b32.cont [3/16] 0.0, 128
    %3282 = vxpose.xlu0.b32.cont [4/16] 0.0, 128
    %3283 = vxpose.xlu0.b32.cont [5/16] 0.0, 128
    %3284 = vxpose.xlu0.b32.cont [6/16] 0.0, 128
    %3285 = vxpose.xlu0.b32.cont [7/16] 0.0, 128
    %3286 = vxpose.xlu0.b32.cont [8/16] 0.0, 128
    %3287 = vxpose.xlu0.b32.cont [9/16] 0.0, 128
    %3288 = vxpose.xlu0.b32.cont [10/16] 0.0, 128
    %3289 = vxpose.xlu0.b32.cont [11/16] 0.0, 128
    %3290 = vxpose.xlu0.b32.cont [12/16] 0.0, 128
    %3291 = vxpose.xlu0.b32.cont [13/16] 0.0, 128
    %3292 = vxpose.xlu0.b32.cont [14/16] 0.0, 128
    %3293 = vxpose.xlu0.b32.cont [15/16] 0.0, 128
    %3294 = vxpose.xlu0.b32.end [16/16] 0.0, 128
    %v3295 = vpop.trf.xlu0
    %v3296 = vpop.trf.xlu0
    %v3297 = vpop.trf.xlu0
    %v3298 = vpop.trf.xlu0
    %v3299 = vpop.trf.xlu0
    %v3300 = vpop.trf.xlu0
    %v3301 = vpop.trf.xlu0
    %v3302 = vpop.trf.xlu0
    %v3303 = vpop.trf.xlu0
    %v3304 = vpop.trf.xlu0
    %v3305 = vpop.trf.xlu0
    %v3306 = vpop.trf.xlu0
    %v3307 = vpop.trf.xlu0
    %v3308 = vpop.trf.xlu0
    %v3309 = vpop.trf.xlu0
    %v3310 = vpop.trf.xlu0
    %3311 = vxpose.xlu0.b32.start [1/16] %v3209, 128
    %3312 = vxpose.xlu0.b32.cont [2/16] %v3212, 128
    %3313 = vxpose.xlu0.b32.cont [3/16] 0.0, 128
    %3314 = vxpose.xlu0.b32.cont [4/16] 0.0, 128
    %3315 = vxpose.xlu0.b32.cont [5/16] 0.0, 128
    %3316 = vxpose.xlu0.b32.cont [6/16] 0.0, 128
    %3317 = vxpose.xlu0.b32.cont [7/16] 0.0, 128
    %3318 = vxpose.xlu0.b32.cont [8/16] 0.0, 128
    %3319 = vxpose.xlu0.b32.cont [9/16] 0.0, 128
    %3320 = vxpose.xlu0.b32.cont [10/16] 0.0, 128
    %3321 = vxpose.xlu0.b32.cont [11/16] 0.0, 128
    %3322 = vxpose.xlu0.b32.cont [12/16] 0.0, 128
    %3323 = vxpose.xlu0.b32.cont [13/16] 0.0, 128
    %3324 = vxpose.xlu0.b32.cont [14/16] 0.0, 128
    %3325 = vxpose.xlu0.b32.cont [15/16] 0.0, 128
    %3326 = vxpose.xlu0.b32.end [16/16] 0.0, 128
    %v3327 = vpop.trf.xlu0
    %v3328 = vpop.trf.xlu0
    %v3329 = vpop.trf.xlu0
    %v3330 = vpop.trf.xlu0
    %v3331 = vpop.trf.xlu0
    %v3332 = vpop.trf.xlu0
    %v3333 = vpop.trf.xlu0
    %v3334 = vpop.trf.xlu0
    %v3335 = vpop.trf.xlu0
    %v3336 = vpop.trf.xlu0
    %v3337 = vpop.trf.xlu0
    %v3338 = vpop.trf.xlu0
    %v3339 = vpop.trf.xlu0
    %v3340 = vpop.trf.xlu0
    %v3341 = vpop.trf.xlu0
    %v3342 = vpop.trf.xlu0
    %v3343 = vcombine.low %v3231, %v3295
    %v3344 = vcombine.high %v3231, %v3295
    %v3346 = vunpack.c.l.s4 1983009808
    %v3347 = vunpack.c.0.s8 %v3346
    %v3348 = vlaneseq
    %v3349 = vshrl.u32 %v3348, 7
    %v3350 = vsub.s32 %v3347, %v3349
    %v3351 = vrot.slane %v3343, %v3350
    %v3353 = vunpack.c.l.s4 1983009808
    %v3354 = vunpack.c.0.s8 %v3353
    %v3355 = vlaneseq
    %v3356 = vshrl.u32 %v3355, 7
    %v3357 = vsub.s32 %v3354, %v3356
    %v3358 = vrot.slane %v3344, %v3357
    %v3359 = vcombine.low %v3263, %v3327
    %v3360 = vcombine.high %v3263, %v3327
    %v3362 = vunpack.c.l.s4 1983009808
    %v3363 = vunpack.c.0.s8 %v3362
    %v3364 = vlaneseq
    %v3365 = vshrl.u32 %v3364, 7
    %v3366 = vsub.s32 %v3363, %v3365
    %v3367 = vrot.slane %v3359, %v3366
    %v3369 = vunpack.c.l.s4 1983009808
    %v3370 = vunpack.c.0.s8 %v3369
    %v3371 = vlaneseq
    %v3372 = vshrl.u32 %v3371, 7
    %v3373 = vsub.s32 %v3370, %v3372
    %v3374 = vrot.slane %v3360, %v3373
    %v3375 = vcombine.low %v3351, %v3367
    %v3376 = vcombine.high %v3351, %v3367
    %v3378 = vunpack.c.l.s4 1934713408
    %v3379 = vunpack.c.0.s8 %v3378
    %v3380 = vlaneseq
    %v3381 = vshrl.u32 %v3380, 7
    %v3382 = vsub.s32 %v3379, %v3381
    %v3383 = vrot.slane %v3375, %v3382
    %v3385 = vunpack.c.l.s4 1934713408
    %v3386 = vunpack.c.0.s8 %v3385
    %v3387 = vlaneseq
    %v3388 = vshrl.u32 %v3387, 7
    %v3389 = vsub.s32 %v3386, %v3388
    %v3390 = vrot.slane %v3376, %v3389
    %v3391 = vcombine.low %v3358, %v3374
    %v3392 = vcombine.high %v3358, %v3374
    %v3394 = vunpack.c.l.s4 1934713408
    %v3395 = vunpack.c.0.s8 %v3394
    %v3396 = vlaneseq
    %v3397 = vshrl.u32 %v3396, 7
    %v3398 = vsub.s32 %v3395, %v3397
    %v3399 = vrot.slane %v3391, %v3398
    %v3401 = vunpack.c.l.s4 1934713408
    %v3402 = vunpack.c.0.s8 %v3401
    %v3403 = vlaneseq
    %v3404 = vshrl.u32 %v3403, 7
    %v3405 = vsub.s32 %v3402, %v3404
    %v3406 = vrot.slane %v3392, %v3405
    %v3407 = vcombine.high %v3383, 0.0
    %v3408 = vcombine.high %v3390, 0.0
    %v3409 = vcombine.high %v3399, 0.0
    %v3410 = vcombine.high %v3406, 0.0
    %v3411 = vcombine.low %v3232, %v3296
    %v3412 = vcombine.high %v3232, %v3296
    %v3414 = vunpack.c.l.s4 1983009808
    %v3415 = vunpack.c.0.s8 %v3414
    %v3416 = vlaneseq
    %v3417 = vshrl.u32 %v3416, 7
    %v3418 = vsub.s32 %v3415, %v3417
    %v3419 = vrot.slane %v3411, %v3418
    %v3421 = vunpack.c.l.s4 1983009808
    %v3422 = vunpack.c.0.s8 %v3421
    %v3423 = vlaneseq
    %v3424 = vshrl.u32 %v3423, 7
    %v3425 = vsub.s32 %v3422, %v3424
    %v3426 = vrot.slane %v3412, %v3425
    %v3427 = vcombine.low %v3264, %v3328
    %v3428 = vcombine.high %v3264, %v3328
    %v3430 = vunpack.c.l.s4 1983009808
    %v3431 = vunpack.c.0.s8 %v3430
    %v3432 = vlaneseq
    %v3433 = vshrl.u32 %v3432, 7
    %v3434 = vsub.s32 %v3431, %v3433
    %v3435 = vrot.slane %v3427, %v3434
    %v3437 = vunpack.c.l.s4 1983009808
    %v3438 = vunpack.c.0.s8 %v3437
    %v3439 = vlaneseq
    %v3440 = vshrl.u32 %v3439, 7
    %v3441 = vsub.s32 %v3438, %v3440
    %v3442 = vrot.slane %v3428, %v3441
    %v3443 = vcombine.low %v3419, %v3435
    %v3444 = vcombine.high %v3419, %v3435
    %v3446 = vunpack.c.l.s4 1934713408
    %v3447 = vunpack.c.0.s8 %v3446
    %v3448 = vlaneseq
    %v3449 = vshrl.u32 %v3448, 7
    %v3450 = vsub.s32 %v3447, %v3449
    %v3451 = vrot.slane %v3443, %v3450
    %v3453 = vunpack.c.l.s4 1934713408
    %v3454 = vunpack.c.0.s8 %v3453
    %v3455 = vlaneseq
    %v3456 = vshrl.u32 %v3455, 7
    %v3457 = vsub.s32 %v3454, %v3456
    %v3458 = vrot.slane %v3444, %v3457
    %v3459 = vcombine.low %v3426, %v3442
    %v3460 = vcombine.high %v3426, %v3442
    %v3462 = vunpack.c.l.s4 1934713408
    %v3463 = vunpack.c.0.s8 %v3462
    %v3464 = vlaneseq
    %v3465 = vshrl.u32 %v3464, 7
    %v3466 = vsub.s32 %v3463, %v3465
    %v3467 = vrot.slane %v3459, %v3466
    %v3469 = vunpack.c.l.s4 1934713408
    %v3470 = vunpack.c.0.s8 %v3469
    %v3471 = vlaneseq
    %v3472 = vshrl.u32 %v3471, 7
    %v3473 = vsub.s32 %v3470, %v3472
    %v3474 = vrot.slane %v3460, %v3473
    %v3475 = vcombine.high %v3451, 0.0
    %v3476 = vcombine.high %v3458, 0.0
    %v3477 = vcombine.high %v3467, 0.0
    %v3478 = vcombine.high %v3474, 0.0
    %v3479 = vcombine.low %v3383, %v3390
    %v3481 = vunpack.c.l.s4 1983009808
    %v3482 = vunpack.c.0.s8 %v3481
    %v3483 = vlaneseq
    %v3484 = vshrl.u32 %v3483, 7
    %v3485 = vsub.s32 %v3482, %v3484
    %v3486 = vrot.slane %v3479, %v3485
    %v3487 = vcombine.low %v3407, %v3408
    %v3489 = vunpack.c.l.s4 1983009808
    %v3490 = vunpack.c.0.s8 %v3489
    %v3491 = vlaneseq
    %v3492 = vshrl.u32 %v3491, 7
    %v3493 = vsub.s32 %v3490, %v3492
    %v3494 = vrot.slane %v3487, %v3493
    %v3495 = vcombine.low %v3399, %v3406
    %v3497 = vunpack.c.l.s4 1983009808
    %v3498 = vunpack.c.0.s8 %v3497
    %v3499 = vlaneseq
    %v3500 = vshrl.u32 %v3499, 7
    %v3501 = vsub.s32 %v3498, %v3500
    %v3502 = vrot.slane %v3495, %v3501
    %v3503 = vcombine.low %v3409, %v3410
    %v3505 = vunpack.c.l.s4 1983009808
    %v3506 = vunpack.c.0.s8 %v3505
    %v3507 = vlaneseq
    %v3508 = vshrl.u32 %v3507, 7
    %v3509 = vsub.s32 %v3506, %v3508
    %v3510 = vrot.slane %v3503, %v3509
    %v3511 = vcombine.low %v3486, %v3494
    %v3512 = vcombine.high %v3486, %v3494
    %v3514 = vunpack.c.l.s4 1934713408
    %v3515 = vunpack.c.0.s8 %v3514
    %v3516 = vlaneseq
    %v3517 = vshrl.u32 %v3516, 7
    %v3518 = vsub.s32 %v3515, %v3517
    %v3519 = vrot.slane %v3511, %v3518
    %v3521 = vunpack.c.l.s4 1934713408
    %v3522 = vunpack.c.0.s8 %v3521
    %v3523 = vlaneseq
    %v3524 = vshrl.u32 %v3523, 7
    %v3525 = vsub.s32 %v3522, %v3524
    %v3526 = vrot.slane %v3512, %v3525
    %v3527 = vcombine.low %v3502, %v3510
    %v3528 = vcombine.high %v3502, %v3510
    %v3530 = vunpack.c.l.s4 1934713408
    %v3531 = vunpack.c.0.s8 %v3530
    %v3532 = vlaneseq
    %v3533 = vshrl.u32 %v3532, 7
    %v3534 = vsub.s32 %v3531, %v3533
    %v3535 = vrot.slane %v3527, %v3534
    %v3537 = vunpack.c.l.s4 1934713408
    %v3538 = vunpack.c.0.s8 %v3537
    %v3539 = vlaneseq
    %v3540 = vshrl.u32 %v3539, 7
    %v3541 = vsub.s32 %v3538, %v3540
    %v3542 = vrot.slane %v3528, %v3541
    %v3543 = vcombine.low %v3519, %v3535
    %v3544 = vcombine.high %v3519, %v3535
    %v3545 = vcombine.low %v3526, %v3542
    %v3546 = vcombine.high %v3526, %v3542
    %v3547 = vcombine.low %v3451, %v3458
    %v3549 = vunpack.c.l.s4 1983009808
    %v3550 = vunpack.c.0.s8 %v3549
    %v3551 = vlaneseq
    %v3552 = vshrl.u32 %v3551, 7
    %v3553 = vsub.s32 %v3550, %v3552
    %v3554 = vrot.slane %v3547, %v3553
    %v3555 = vcombine.low %v3475, %v3476
    %v3557 = vunpack.c.l.s4 1983009808
    %v3558 = vunpack.c.0.s8 %v3557
    %v3559 = vlaneseq
    %v3560 = vshrl.u32 %v3559, 7
    %v3561 = vsub.s32 %v3558, %v3560
    %v3562 = vrot.slane %v3555, %v3561
    %v3563 = vcombine.low %v3467, %v3474
    %v3565 = vunpack.c.l.s4 1983009808
    %v3566 = vunpack.c.0.s8 %v3565
    %v3567 = vlaneseq
    %v3568 = vshrl.u32 %v3567, 7
    %v3569 = vsub.s32 %v3566, %v3568
    %v3570 = vrot.slane %v3563, %v3569
    %v3571 = vcombine.low %v3477, %v3478
    %v3573 = vunpack.c.l.s4 1983009808
    %v3574 = vunpack.c.0.s8 %v3573
    %v3575 = vlaneseq
    %v3576 = vshrl.u32 %v3575, 7
    %v3577 = vsub.s32 %v3574, %v3576
    %v3578 = vrot.slane %v3571, %v3577
    %v3579 = vcombine.low %v3554, %v3562
    %v3580 = vcombine.high %v3554, %v3562
    %v3582 = vunpack.c.l.s4 1934713408
    %v3583 = vunpack.c.0.s8 %v3582
    %v3584 = vlaneseq
    %v3585 = vshrl.u32 %v3584, 7
    %v3586 = vsub.s32 %v3583, %v3585
    %v3587 = vrot.slane %v3579, %v3586
    %v3589 = vunpack.c.l.s4 1934713408
    %v3590 = vunpack.c.0.s8 %v3589
    %v3591 = vlaneseq
    %v3592 = vshrl.u32 %v3591, 7
    %v3593 = vsub.s32 %v3590, %v3592
    %v3594 = vrot.slane %v3580, %v3593
    %v3595 = vcombine.low %v3570, %v3578
    %v3596 = vcombine.high %v3570, %v3578
    %v3598 = vunpack.c.l.s4 1934713408
    %v3599 = vunpack.c.0.s8 %v3598
    %v3600 = vlaneseq
    %v3601 = vshrl.u32 %v3600, 7
    %v3602 = vsub.s32 %v3599, %v3601
    %v3603 = vrot.slane %v3595, %v3602
    %v3605 = vunpack.c.l.s4 1934713408
    %v3606 = vunpack.c.0.s8 %v3605
    %v3607 = vlaneseq
    %v3608 = vshrl.u32 %v3607, 7
    %v3609 = vsub.s32 %v3606, %v3608
    %v3610 = vrot.slane %v3596, %v3609
    %v3611 = vcombine.low %v3587, %v3603
    %v3612 = vcombine.high %v3587, %v3603
    %v3613 = vcombine.low %v3594, %v3610
    %v3614 = vcombine.high %v3594, %v3610
    %3617 = vrot.lane.b32.xlu0 %v3544, 16
    %v3618 = vpop.permute.xlu0 %3617
    %3619 = vrot.lane.b32.xlu0 %v3612, 16
    %v3620 = vpop.permute.xlu0 %3619
    %3625 = vrot.lane.b32.xlu0 %v3545, 32
    %v3626 = vpop.permute.xlu0 %3625
    %3627 = vrot.lane.b32.xlu0 %v3613, 32
    %v3628 = vpop.permute.xlu0 %3627
    %3633 = vrot.lane.b32.xlu0 %v3546, 48
    %v3634 = vpop.permute.xlu0 %3633
    %3635 = vrot.lane.b32.xlu0 %v3614, 48
    %v3636 = vpop.permute.xlu0 %3635
    %v3639 = vsel %vm1798, %v3543, %v3618
    %v3640 = vsel %vm1798, %v3611, %v3620
    %vm3641 = vcmask 261120
    %v3642 = vsel %vm3641, %v3639, %v3626
    %v3643 = vsel %vm3641, %v3640, %v3628
    %vm3644 = vcmask 392192
    %v3645 = vsel %vm3644, %v3642, %v3634
    %v3646 = vsel %vm3644, %v3643, %v3636
    %v3647 = vpack.c.bf16 %v3646, %v3645
    %v3648 = vld [vmem:[%s2 + $0x4] sm:$0xf]
    %v3649 = vld [vmem:[%s2 + $0xc] sm:$0xf]
    %v3650 = vld [vmem:[%s2 + $0x14] sm:$0xf]
    %v3651 = vld [vmem:[%s2 + $0x1c] sm:$0xf]
    %v3652 = vld [vmem:[%s2 + $0x24] sm:$0xf]
    %v3653 = vld [vmem:[%s2 + $0x2c] sm:$0xf]
    %v3654 = vld [vmem:[%s2 + $0x34] sm:$0xf]
    %v3655 = vld [vmem:[%s2 + $0x3c] sm:$0xf]
    %v3664 = vunpack.c.l.b16 %v3648
    %v3665 = vunpack.c.l.b16 %v3649
    %v3666 = vunpack.c.l.b16 %v3650
    %v3667 = vunpack.c.l.b16 %v3651
    %v3668 = vunpack.c.l.b16 %v3652
    %v3669 = vunpack.c.l.b16 %v3653
    %v3670 = vunpack.c.l.b16 %v3654
    %v3671 = vunpack.c.l.b16 %v3655
    %v3672 = vpack.c.b16 %v3665, %v3664
    %v3673 = vpack.c.b16 %v3667, %v3666
    %v3674 = vpack.c.b16 %v3669, %v3668
    %v3675 = vpack.c.b16 %v3671, %v3670
    %3676 = vrot.lane.b32.xlu0 %v3672, 64
    %v3677 = vpop.permute.xlu0 %3676
    %3678 = vrot.lane.b32.xlu0 %v3673, 64
    %v3679 = vpop.permute.xlu0 %3678
    %3680 = vrot.lane.b32.xlu0 %v3674, 64
    %v3681 = vpop.permute.xlu0 %3680
    %3682 = vrot.lane.b32.xlu0 %v3675, 64
    %v3683 = vpop.permute.xlu0 %3682
    %v3689 = vsel %vm67, %v3647, 0
    %3691 = vmatprep.subr.bf16.mxu0 0
    %3692 = vmatpush1.bf16.msra.mxu0 %v3677
    %3693 = vmatprep.subr.bf16.mxu0 0
    %3694 = vmatpush1.bf16.msra.mxu0 %v3679
    %3695 = vmatprep.subr.bf16.mxu0 0
    %3696 = vmatpush1.bf16.msra.mxu0 %v3681
    %3697 = vmatprep.subr.bf16.mxu0 0
    %3698 = vmatpush1.bf16.msra.mxu0 %v3683
    %3699 = vmatprep.subr.bf16.mxu0 0
    %3700 = vmatpush1.bf16.msra.mxu0 0
    %3701 = vmatprep.subr.bf16.mxu0 0
    %3702 = vmatpush1.bf16.msra.mxu0 0
    %3703 = vmatprep.subr.bf16.mxu0 0
    %3704 = vmatpush1.bf16.msra.mxu0 0
    %3705 = vmatprep.subr.bf16.mxu0 0
    %3706 = vmatpush1.bf16.msra.mxu0 0
    %3707 = vmatprep.subr.bf16.mxu0 0
    %3708 = vmatpush1.bf16.msra.mxu0 0
    %3709 = vmatprep.subr.bf16.mxu0 0
    %3710 = vmatpush1.bf16.msra.mxu0 0
    %3711 = vmatprep.subr.bf16.mxu0 0
    %3712 = vmatpush1.bf16.msra.mxu0 0
    %3713 = vmatprep.subr.bf16.mxu0 0
    %3714 = vmatpush1.bf16.msra.mxu0 0
    %3715 = vmatprep.subr.bf16.mxu0 0
    %3716 = vmatpush1.bf16.msra.mxu0 0
    %3717 = vmatprep.subr.bf16.mxu0 0
    %3718 = vmatpush1.bf16.msra.mxu0 0
    %3719 = vmatprep.subr.bf16.mxu0 0
    %3720 = vmatpush1.bf16.msra.mxu0 0
    %3721 = vmatprep.subr.bf16.mxu0 0
    %3722 = vmatpush1.bf16.msra.mxu0 0
    %3723 = vmatprep.mubr.bf16.mxu0 0
    %3724 = vmatmul.mubr.bf16.gmra.mrb[0].mxu0 %v3689
    %v3725 = vpop.f32.mrb[0].mxu0
    %v3726 = vadd.f32 0.0, %v3725
    %v3727 = vpop.f32.mrb[0].mxu0
    %v3728 = vpop.f32.mrb[0].mxu0
    %v3729 = vadd.f32 0.0, %v3728
    %v3730 = vpop.f32.mrb[0].mxu0
    %3731 = vdwg.mxu0
    %v3732 = vadd.f32 %v50, %v3726
    %v3733 = vadd.f32 %v51, %v3729
    %v3734 = vmul.f32 %v3732, %v3732
    %v3735 = vmul.f32 %v3733, %v3733
    %v3736 = vsel %vm67, %v3734, 0.0
    %3737 = vadd.xlane.f32.xlu0 %v3736
    %v3738 = vpop.xlane.xlu0 %3737
    %v3739 = vsel %vm67, %v3735, 0.0
    %3740 = vadd.xlane.f32.xlu0 %v3739
    %v3741 = vpop.xlane.xlu0 %3740
    %v3742 = vmul.f32 %v3738, %v74
    %v3743 = vmul.f32 %v3741, %v74
    %v3744 = vadd.f32 %v3742, 1e-05
    %v3745 = vadd.f32 %v3743, 1e-05
    %v3746 = vrsqrt.pop %v3744
    %v3747 = vrsqrt.pop %v3745
    %v3748 = vmul.f32 %v3732, %v3746
    %v3749 = vmul.f32 %v3733, %v3747
    %v3750 = vlaneseq
    %v3751 = vshrl.u32 %v3750, 7
    %v3752 = vsub.s32 1, %v3751
    %v3753 = vrot.slane %v64, %v3752
    %v3754 = vmul.f32 %v3748, %v3753
    %v3755 = vmul.f32 %v3749, %v3753
    %v3756 = vpack.c.bf16 %v3755, %v3754
    %v3757 = vld [vmem:[%s3] sm:$0xff]
    %v3758 = vld [vmem:[%s3 + $0x8] sm:$0xff]
    %v3759 = vld [vmem:[%s3 + $0x10] sm:$0xff]
    %v3760 = vld [vmem:[%s3 + $0x18] sm:$0xff]
    %v3761 = vld [vmem:[%s3 + $0x20] sm:$0xff]
    %v3762 = vld [vmem:[%s3 + $0x28] sm:$0xff]
    %v3763 = vld [vmem:[%s3 + $0x30] sm:$0xff]
    %v3764 = vld [vmem:[%s3 + $0x38] sm:$0xff]
    %v3765 = vld [vmem:[%s3 + $0x40] sm:$0xff]
    %v3766 = vld [vmem:[%s3 + $0x48] sm:$0xff]
    %v3767 = vld [vmem:[%s3 + $0x50] sm:$0xff]
    %v3768 = vld [vmem:[%s3 + $0x58] sm:$0xff]
    %v3769 = vld [vmem:[%s3 + $0x60] sm:$0xff]
    %v3770 = vld [vmem:[%s3 + $0x68] sm:$0xff]
    %v3771 = vld [vmem:[%s3 + $0x70] sm:$0xff]
    %v3772 = vld [vmem:[%s3 + $0x78] sm:$0xff]
    %v3789 = vunpack.c.l.b16 %v3757
    %v3790 = vunpack.c.h.b16 %v3757
    %v3791 = vunpack.c.l.b16 %v3758
    %v3792 = vunpack.c.h.b16 %v3758
    %v3793 = vunpack.c.l.b16 %v3759
    %v3794 = vunpack.c.h.b16 %v3759
    %v3795 = vunpack.c.l.b16 %v3760
    %v3796 = vunpack.c.h.b16 %v3760
    %v3797 = vunpack.c.l.b16 %v3761
    %v3798 = vunpack.c.h.b16 %v3761
    %v3799 = vunpack.c.l.b16 %v3762
    %v3800 = vunpack.c.h.b16 %v3762
    %v3801 = vunpack.c.l.b16 %v3763
    %v3802 = vunpack.c.h.b16 %v3763
    %v3803 = vunpack.c.l.b16 %v3764
    %v3804 = vunpack.c.h.b16 %v3764
    %v3805 = vunpack.c.l.b16 %v3765
    %v3806 = vunpack.c.h.b16 %v3765
    %v3807 = vunpack.c.l.b16 %v3766
    %v3808 = vunpack.c.h.b16 %v3766
    %v3809 = vunpack.c.l.b16 %v3767
    %v3810 = vunpack.c.h.b16 %v3767
    %v3811 = vunpack.c.l.b16 %v3768
    %v3812 = vunpack.c.h.b16 %v3768
    %v3813 = vunpack.c.l.b16 %v3769
    %v3814 = vunpack.c.h.b16 %v3769
    %v3815 = vunpack.c.l.b16 %v3770
    %v3816 = vunpack.c.h.b16 %v3770
    %v3817 = vunpack.c.l.b16 %v3771
    %v3818 = vunpack.c.h.b16 %v3771
    %v3819 = vunpack.c.l.b16 %v3772
    %v3820 = vunpack.c.h.b16 %v3772
    %v3821 = vpack.c.b16 %v3793, %v3789
    %v3822 = vpack.c.b16 %v3794, %v3790
    %v3823 = vpack.c.b16 %v3795, %v3791
    %v3824 = vpack.c.b16 %v3796, %v3792
    %v3825 = vpack.c.b16 %v3801, %v3797
    %v3826 = vpack.c.b16 %v3802, %v3798
    %v3827 = vpack.c.b16 %v3803, %v3799
    %v3828 = vpack.c.b16 %v3804, %v3800
    %v3829 = vpack.c.b16 %v3809, %v3805
    %v3830 = vpack.c.b16 %v3810, %v3806
    %v3831 = vpack.c.b16 %v3811, %v3807
    %v3832 = vpack.c.b16 %v3812, %v3808
    %v3833 = vpack.c.b16 %v3817, %v3813
    %v3834 = vpack.c.b16 %v3818, %v3814
    %v3835 = vpack.c.b16 %v3819, %v3815
    %v3836 = vpack.c.b16 %v3820, %v3816
    %v3854 = vsel %vm67, %v3756, 0
    %3856 = vmatprep.subr.bf16.mxu0 %v3822
    %3857 = vmatpush1.bf16.msra.mxu0 %v3821
    %3858 = vmatprep.subr.bf16.mxu0 %v3826
    %3859 = vmatpush1.bf16.msra.mxu0 %v3825
    %3860 = vmatprep.subr.bf16.mxu0 %v3830
    %3861 = vmatpush1.bf16.msra.mxu0 %v3829
    %3862 = vmatprep.subr.bf16.mxu0 %v3834
    %3863 = vmatpush1.bf16.msra.mxu0 %v3833
    %3864 = vmatprep.subr.bf16.mxu0 0
    %3865 = vmatpush1.bf16.msra.mxu0 0
    %3866 = vmatprep.subr.bf16.mxu0 0
    %3867 = vmatpush1.bf16.msra.mxu0 0
    %3868 = vmatprep.subr.bf16.mxu0 0
    %3869 = vmatpush1.bf16.msra.mxu0 0
    %3870 = vmatprep.subr.bf16.mxu0 0
    %3871 = vmatpush1.bf16.msra.mxu0 0
    %3872 = vmatprep.subr.bf16.mxu0 0
    %3873 = vmatpush1.bf16.msra.mxu0 0
    %3874 = vmatprep.subr.bf16.mxu0 0
    %3875 = vmatpush1.bf16.msra.mxu0 0
    %3876 = vmatprep.subr.bf16.mxu0 0
    %3877 = vmatpush1.bf16.msra.mxu0 0
    %3878 = vmatprep.subr.bf16.mxu0 0
    %3879 = vmatpush1.bf16.msra.mxu0 0
    %3880 = vmatprep.subr.bf16.mxu0 0
    %3881 = vmatpush1.bf16.msra.mxu0 0
    %3882 = vmatprep.subr.bf16.mxu0 0
    %3883 = vmatpush1.bf16.msra.mxu0 0
    %3884 = vmatprep.subr.bf16.mxu0 0
    %3885 = vmatpush1.bf16.msra.mxu0 0
    %3886 = vmatprep.subr.bf16.mxu0 0
    %3887 = vmatpush1.bf16.msra.mxu0 0
    %3888 = vmatprep.mubr.bf16.mxu0 0
    %3889 = vmatmul.mubr.bf16.gmra.mrb[0].mxu0 %v3854
    %v3890 = vpop.f32.mrb[0].mxu0
    %v3891 = vadd.f32 0.0, %v3890
    %v3892 = vpop.f32.mrb[0].mxu0
    %v3893 = vadd.f32 0.0, %v3892
    %v3894 = vpop.f32.mrb[0].mxu0
    %v3895 = vadd.f32 0.0, %v3894
    %v3896 = vpop.f32.mrb[0].mxu0
    %v3897 = vadd.f32 0.0, %v3896
    %3898 = vdwg.mxu0
    %3899 = vmatprep.subr.bf16.mxu0 %v3824
    %3900 = vmatpush1.bf16.msra.mxu0 %v3823
    %3901 = vmatprep.subr.bf16.mxu0 %v3828
    %3902 = vmatpush1.bf16.msra.mxu0 %v3827
    %3903 = vmatprep.subr.bf16.mxu0 %v3832
    %3904 = vmatpush1.bf16.msra.mxu0 %v3831
    %3905 = vmatprep.subr.bf16.mxu0 %v3836
    %3906 = vmatpush1.bf16.msra.mxu0 %v3835
    %3907 = vmatprep.subr.bf16.mxu0 0
    %3908 = vmatpush1.bf16.msra.mxu0 0
    %3909 = vmatprep.subr.bf16.mxu0 0
    %3910 = vmatpush1.bf16.msra.mxu0 0
    %3911 = vmatprep.subr.bf16.mxu0 0
    %3912 = vmatpush1.bf16.msra.mxu0 0
    %3913 = vmatprep.subr.bf16.mxu0 0
    %3914 = vmatpush1.bf16.msra.mxu0 0
    %3915 = vmatprep.subr.bf16.mxu0 0
    %3916 = vmatpush1.bf16.msra.mxu0 0
    %3917 = vmatprep.subr.bf16.mxu0 0
    %3918 = vmatpush1.bf16.msra.mxu0 0
    %3919 = vmatprep.subr.bf16.mxu0 0
    %3920 = vmatpush1.bf16.msra.mxu0 0
    %3921 = vmatprep.subr.bf16.mxu0 0
    %3922 = vmatpush1.bf16.msra.mxu0 0
    %3923 = vmatprep.subr.bf16.mxu0 0
    %3924 = vmatpush1.bf16.msra.mxu0 0
    %3925 = vmatprep.subr.bf16.mxu0 0
    %3926 = vmatpush1.bf16.msra.mxu0 0
    %3927 = vmatprep.subr.bf16.mxu0 0
    %3928 = vmatpush1.bf16.msra.mxu0 0
    %3929 = vmatprep.subr.bf16.mxu0 0
    %3930 = vmatpush1.bf16.msra.mxu0 0
    %3931 = vmatprep.mubr.bf16.mxu0 0
    %3932 = vmatmul.mubr.bf16.gmra.mrb[0].mxu0 %v3854
    %v3933 = vpop.f32.mrb[0].mxu0
    %v3934 = vadd.f32 0.0, %v3933
    %v3935 = vpop.f32.mrb[0].mxu0
    %v3936 = vadd.f32 0.0, %v3935
    %v3937 = vpop.f32.mrb[0].mxu0
    %v3938 = vadd.f32 0.0, %v3937
    %v3939 = vpop.f32.mrb[0].mxu0
    %v3940 = vadd.f32 0.0, %v3939
    %3941 = vdwg.mxu0
    %v3942 = vxor.u32 %v3891, 2147483648
    %v3943 = vxor.u32 %v3893, 2147483648
    %v3944 = vxor.u32 %v3895, 2147483648
    %v3945 = vxor.u32 %v3897, 2147483648
    %v3946 = vmul.f32 %v3942, 1.442695
    %v3947 = vpow.pop %v3946
    %v3948 = vmul.f32 %v3943, 1.442695
    %v3949 = vpow.pop %v3948
    %v3950 = vmul.f32 %v3944, 1.442695
    %v3951 = vpow.pop %v3950
    %v3952 = vmul.f32 %v3945, 1.442695
    %v3953 = vpow.pop %v3952
    %v3954 = vadd.f32 %v3947, 1.0
    %v3955 = vadd.f32 %v3949, 1.0
    %v3956 = vadd.f32 %v3951, 1.0
    %v3957 = vadd.f32 %v3953, 1.0
    %v3958 = vrcp.pop %v3954
    %v3959 = vmul.f32 1.0, %v3958
    %v3960 = vrcp.pop %v3955
    %v3961 = vmul.f32 1.0, %v3960
    %v3962 = vrcp.pop %v3956
    %v3963 = vmul.f32 1.0, %v3962
    %v3964 = vrcp.pop %v3957
    %v3965 = vmul.f32 1.0, %v3964
    %v3966 = vmul.f32 %v3891, %v3959
    %v3967 = vmul.f32 %v3893, %v3961
    %v3968 = vmul.f32 %v3895, %v3963
    %v3969 = vmul.f32 %v3897, %v3965
    %v3970 = vmul.f32 %v3966, %v3934
    %v3971 = vmul.f32 %v3967, %v3936
    %v3972 = vmul.f32 %v3968, %v3938
    %v3973 = vmul.f32 %v3969, %v3940
    %v3974 = vpack.c.bf16 %v3972, %v3970
    %v3975 = vpack.c.bf16 %v3973, %v3971
    %v3976 = vld [vmem:[%s4] sm:$0xf]
    %v3977 = vld [vmem:[%s4 + $0x4] sm:$0xf]
    %v3978 = vld [vmem:[%s4 + $0x8] sm:$0xf]
    %v3979 = vld [vmem:[%s4 + $0xc] sm:$0xf]
    %v3980 = vld [vmem:[%s4 + $0x10] sm:$0xf]
    %v3981 = vld [vmem:[%s4 + $0x14] sm:$0xf]
    %v3982 = vld [vmem:[%s4 + $0x18] sm:$0xf]
    %v3983 = vld [vmem:[%s4 + $0x1c] sm:$0xf]
    %v3984 = vld [vmem:[%s4 + $0x20] sm:$0xf]
    %v3985 = vld [vmem:[%s4 + $0x24] sm:$0xf]
    %v3986 = vld [vmem:[%s4 + $0x28] sm:$0xf]
    %v3987 = vld [vmem:[%s4 + $0x2c] sm:$0xf]
    %v3988 = vld [vmem:[%s4 + $0x30] sm:$0xf]
    %v3989 = vld [vmem:[%s4 + $0x34] sm:$0xf]
    %v3990 = vld [vmem:[%s4 + $0x38] sm:$0xf]
    %v3991 = vld [vmem:[%s4 + $0x3c] sm:$0xf]
    %v3992 = vld [vmem:[%s4 + $0x40] sm:$0xf]
    %v3993 = vld [vmem:[%s4 + $0x44] sm:$0xf]
    %v3994 = vld [vmem:[%s4 + $0x48] sm:$0xf]
    %v3995 = vld [vmem:[%s4 + $0x4c] sm:$0xf]
    %v3996 = vld [vmem:[%s4 + $0x50] sm:$0xf]
    %v3997 = vld [vmem:[%s4 + $0x54] sm:$0xf]
    %v3998 = vld [vmem:[%s4 + $0x58] sm:$0xf]
    %v3999 = vld [vmem:[%s4 + $0x5c] sm:$0xf]
    %v4000 = vld [vmem:[%s4 + $0x60] sm:$0xf]
    %v4001 = vld [vmem:[%s4 + $0x64] sm:$0xf]
    %v4002 = vld [vmem:[%s4 + $0x68] sm:$0xf]
    %v4003 = vld [vmem:[%s4 + $0x6c] sm:$0xf]
    %v4004 = vld [vmem:[%s4 + $0x70] sm:$0xf]
    %v4005 = vld [vmem:[%s4 + $0x74] sm:$0xf]
    %v4006 = vld [vmem:[%s4 + $0x78] sm:$0xf]
    %v4007 = vld [vmem:[%s4 + $0x7c] sm:$0xf]
    %v4040 = vunpack.c.l.b16 %v3976
    %v4041 = vunpack.c.l.b16 %v3977
    %v4042 = vunpack.c.l.b16 %v3978
    %v4043 = vunpack.c.l.b16 %v3979
    %v4044 = vunpack.c.l.b16 %v3980
    %v4045 = vunpack.c.l.b16 %v3981
    %v4046 = vunpack.c.l.b16 %v3982
    %v4047 = vunpack.c.l.b16 %v3983
    %v4048 = vunpack.c.l.b16 %v3984
    %v4049 = vunpack.c.l.b16 %v3985
    %v4050 = vunpack.c.l.b16 %v3986
    %v4051 = vunpack.c.l.b16 %v3987
    %v4052 = vunpack.c.l.b16 %v3988
    %v4053 = vunpack.c.l.b16 %v3989
    %v4054 = vunpack.c.l.b16 %v3990
    %v4055 = vunpack.c.l.b16 %v3991
    %v4056 = vunpack.c.l.b16 %v3992
    %v4057 = vunpack.c.l.b16 %v3993
    %v4058 = vunpack.c.l.b16 %v3994
    %v4059 = vunpack.c.l.b16 %v3995
    %v4060 = vunpack.c.l.b16 %v3996
    %v4061 = vunpack.c.l.b16 %v3997
    %v4062 = vunpack.c.l.b16 %v3998
    %v4063 = vunpack.c.l.b16 %v3999
    %v4064 = vunpack.c.l.b16 %v4000
    %v4065 = vunpack.c.l.b16 %v4001
    %v4066 = vunpack.c.l.b16 %v4002
    %v4067 = vunpack.c.l.b16 %v4003
    %v4068 = vunpack.c.l.b16 %v4004
    %v4069 = vunpack.c.l.b16 %v4005
    %v4070 = vunpack.c.l.b16 %v4006
    %v4071 = vunpack.c.l.b16 %v4007
    %v4072 = vpack.c.b16 %v4041, %v4040
    %v4073 = vpack.c.b16 %v4043, %v4042
    %v4074 = vpack.c.b16 %v4045, %v4044
    %v4075 = vpack.c.b16 %v4047, %v4046
    %v4076 = vpack.c.b16 %v4049, %v4048
    %v4077 = vpack.c.b16 %v4051, %v4050
    %v4078 = vpack.c.b16 %v4053, %v4052
    %v4079 = vpack.c.b16 %v4055, %v4054
    %v4080 = vpack.c.b16 %v4057, %v4056
    %v4081 = vpack.c.b16 %v4059, %v4058
    %v4082 = vpack.c.b16 %v4061, %v4060
    %v4083 = vpack.c.b16 %v4063, %v4062
    %v4084 = vpack.c.b16 %v4065, %v4064
    %v4085 = vpack.c.b16 %v4067, %v4066
    %v4086 = vpack.c.b16 %v4069, %v4068
    %v4087 = vpack.c.b16 %v4071, %v4070
    %4104 = vmatprep.subr.bf16.mxu0 0
    %4105 = vmatpush1.bf16.msra.mxu0 %v4072
    %4106 = vmatprep.subr.bf16.mxu0 0
    %4107 = vmatpush1.bf16.msra.mxu0 %v4073
    %4108 = vmatprep.subr.bf16.mxu0 0
    %4109 = vmatpush1.bf16.msra.mxu0 %v4074
    %4110 = vmatprep.subr.bf16.mxu0 0
    %4111 = vmatpush1.bf16.msra.mxu0 %v4075
    %4112 = vmatprep.subr.bf16.mxu0 0
    %4113 = vmatpush1.bf16.msra.mxu0 %v4076
    %4114 = vmatprep.subr.bf16.mxu0 0
    %4115 = vmatpush1.bf16.msra.mxu0 %v4077
    %4116 = vmatprep.subr.bf16.mxu0 0
    %4117 = vmatpush1.bf16.msra.mxu0 %v4078
    %4118 = vmatprep.subr.bf16.mxu0 0
    %4119 = vmatpush1.bf16.msra.mxu0 %v4079
    %4120 = vmatprep.subr.bf16.mxu0 0
    %4121 = vmatpush1.bf16.msra.mxu0 %v4080
    %4122 = vmatprep.subr.bf16.mxu0 0
    %4123 = vmatpush1.bf16.msra.mxu0 %v4081
    %4124 = vmatprep.subr.bf16.mxu0 0
    %4125 = vmatpush1.bf16.msra.mxu0 %v4082
    %4126 = vmatprep.subr.bf16.mxu0 0
    %4127 = vmatpush1.bf16.msra.mxu0 %v4083
    %4128 = vmatprep.subr.bf16.mxu0 0
    %4129 = vmatpush1.bf16.msra.mxu0 %v4084
    %4130 = vmatprep.subr.bf16.mxu0 0
    %4131 = vmatpush1.bf16.msra.mxu0 %v4085
    %4132 = vmatprep.subr.bf16.mxu0 0
    %4133 = vmatpush1.bf16.msra.mxu0 %v4086
    %4134 = vmatprep.subr.bf16.mxu0 0
    %4135 = vmatpush1.bf16.msra.mxu0 %v4087
    %4136 = vmatprep.mubr.bf16.mxu0 %v3975
    %4137 = vmatmul.mubr.bf16.gmra.mrb[0].mxu0 %v3974
    %v4138 = vpop.f32.mrb[0].mxu0
    %v4139 = vadd.f32 0.0, %v4138
    %v4140 = vpop.f32.mrb[0].mxu0
    %v4141 = vpop.f32.mrb[0].mxu0
    %v4142 = vadd.f32 0.0, %v4141
    %v4143 = vpop.f32.mrb[0].mxu0
    %4144 = vdwg.mxu0
    %v4145 = vadd.f32 %v3732, %v4139
    %v4146 = vadd.f32 %v3733, %v4142
    %4147 = vst.msk [vmem:[#allocation7] sm:$0xff] %vm67, %v4145
    %4148 = vst.msk [vmem:[#allocation7 + $0x8] sm:$0xff] %vm67, %v4146
    // Predicated region
    $region30: #{tpu_custom_call.1} parent=1 // pred_check
      _
    $region31: #{tpu_custom_call.1} parent=1 // pred_check_branch
      %4150 = sbr.rel (0) target = $region33
    $region32: #{tpu_custom_call.1} parent=1 // pred_region
      %s4152 = ssub.s32 256, 256
      %4153 = vsyncadd [#allocation4], %s4152
      %s4154 = sshll.u32 [#allocation7], 4
      %s4155 = int_to_ptr.vmem [resolvable:$true] %s4154
      %4160 = dma.vmem_to_hbm [thread:$0]  %s4155, 256, %s5, [#allocation4], 128, 128, 8
    $region33: #{tpu_custom_call.1} parent=1 // pred_fallthru
      _
    // Predicated region
    $region34: #{tpu_custom_call.1} parent=1 // pred_check
      _
    $region35: #{tpu_custom_call.1} parent=1 // pred_check_branch
      %4162 = sbr.rel (0) target = $region37
    $region36: #{tpu_custom_call.1} parent=1 // pred_region
      %4163 = dma.done [#allocation4], 256
    $region37: #{tpu_custom_call.1} parent=1 // pred_fallthru
      _
    %4164 = vsyncpa [#allocation3], 1
    %4165 = vsyncpa [#allocation6], 1
    %4166 = vsyncpa [#allocation4], 1

</llo_original>
